<compile_context>
chip_gen: v7x
topology: tpu7x:2x2x1
jax: 0.10.0
libtpu: 0.0.40
codegen_flags: <defaults>
</compile_context>

<pallas_src>
import math
from functools import partial

import jax
import jax.numpy as jnp
from jax.experimental import pallas as pl
from jax.experimental.pallas import tpu as pltpu

D_MODEL = 32
N_HEADS = 4
D_HEAD = D_MODEL // N_HEADS
D_FF = 64
EPS = 1e-6


# --------------------------- fused Pallas kernel ----------------------------

def _decoder_layer_kernel(
    x_ref, m_ref, tgt_ref, src_ref,            # activations + masks (per batch)
    ln_g_ref, ln_b_ref,                        # [3, D] stacked LayerNorm params
    sa_wqkv_ref, sa_bqkv_ref, sa_wo_ref, sa_bo_ref,   # self-attention
    ca_wq_ref, ca_bq_ref, ca_wkv_ref, ca_bkv_ref,     # cross-attention
    ca_wo_ref, ca_bo_ref,
    ff_w1_ref, ff_b1_ref, ff_w2_ref, ff_b2_ref,       # feed-forward
    o_ref,
):
    x = x_ref[0]          # [T, D]
    m = m_ref[0]          # [S, D]
    tgt_mask = tgt_ref[0]  # [T, T]
    src_mask = src_ref[0]  # [T, S]

    inv_sqrt_dk = 1.0 / math.sqrt(D_HEAD)

    def layer_norm(v, idx):
        g = ln_g_ref[pl.ds(idx, 1), :]            # [1, D]
        b = ln_b_ref[pl.ds(idx, 1), :]            # [1, D]
        mean = jnp.mean(v, axis=-1, keepdims=True)
        # torch.std() default: unbiased estimator (divide by N-1)
        var = jnp.sum((v - mean) ** 2, axis=-1, keepdims=True) / (D_MODEL - 1)
        std = jnp.sqrt(var)
        return g * (v - mean) / (std + EPS) + b

    def attention_head(q, k, v, mask):
        # q: [Tq, dk]; k, v: [Tk, dk]; mask: [Tq, Tk]
        scores = jax.lax.dot_general(
            q, k, (((1,), (1,)), ((), ())),
            preferred_element_type=jnp.float32) * inv_sqrt_dk
        scores = jnp.where(mask > 0, scores, -1e9)
        smax = jnp.max(scores, axis=-1, keepdims=True)
        p = jnp.exp(scores - smax)
        denom = jnp.sum(p, axis=-1, keepdims=True)
        p = p * pl.reciprocal(denom, approx=True)     # divide -> EUP slot
        return jnp.dot(p, v, preferred_element_type=jnp.float32)

    def multi_head(q_all, k_all, v_all, mask, wo_ref_, bo_ref_):
        # q_all: [Tq, D]; k_all, v_all: [Tk, D] — heads live on static lane slices
        heads = []
        for h in range(N_HEADS):
            lo, hi = h * D_HEAD, (h + 1) * D_HEAD
            heads.append(attention_head(q_all[:, lo:hi],
                                        k_all[:, lo:hi],
                                        v_all[:, lo:hi],
                                        mask))
        o = jnp.concatenate(heads, axis=-1)           # [Tq, D]
        return jnp.dot(o, wo_ref_[...],
                       preferred_element_type=jnp.float32) + bo_ref_[...]

    # --- sublayer 0: x + self_attn(norm(x), norm(x), norm(x), tgt_mask) -----
    y = layer_norm(x, 0)
    qkv = jnp.dot(y, sa_wqkv_ref[...],
                  preferred_element_type=jnp.float32) + sa_bqkv_ref[...]  # [T, 3D]
    q = qkv[:, 0:D_MODEL]
    k = qkv[:, D_MODEL:2 * D_MODEL]
    v = qkv[:, 2 * D_MODEL:3 * D_MODEL]
    x = x + multi_head(q, k, v, tgt_mask, sa_wo_ref, sa_bo_ref)

    # --- sublayer 1: x + src_attn(norm(x), m, m, src_mask) ------------------
    y = layer_norm(x, 1)
    q = jnp.dot(y, ca_wq_ref[...],
                preferred_element_type=jnp.float32) + ca_bq_ref[...]      # [T, D]
    kv = jnp.dot(m, ca_wkv_ref[...],
                 preferred_element_type=jnp.float32) + ca_bkv_ref[...]    # [S, 2D]
    k = kv[:, 0:D_MODEL]
    v = kv[:, D_MODEL:2 * D_MODEL]
    x = x + multi_head(q, k, v, src_mask, ca_wo_ref, ca_bo_ref)

    # --- sublayer 2: x + feed_forward(norm(x)) ------------------------------
    y = layer_norm(x, 2)
    h = jnp.dot(y, ff_w1_ref[...],
                preferred_element_type=jnp.float32) + ff_b1_ref[...]
    h = jnp.maximum(h, 0.0)
    ff = jnp.dot(h, ff_w2_ref[...],
                 preferred_element_type=jnp.float32) + ff_b2_ref[...]
    o_ref[0] = x + ff


# ------------------------------- JAX wrapper ---------------------------------

@partial(jax.jit)
def decoder_layer(params, x, hidden_states, src_mask, tgt_mask):
    B, T, D = x.shape
    S = hidden_states.shape[1]
    sa = params["self_attn"]
    ca = params["src_attn"]

    # Fuse QKV (self-attn) and KV (cross-attn) projections into single matmuls.
    sa_wqkv = jnp.concatenate([sa["wq"], sa["wk"], sa["wv"]], axis=1)       # [D, 3D]
    sa_bqkv = jnp.concatenate([sa["bq"], sa["bk"], sa["bv"]]).reshape(1, 3 * D)
    ca_wkv = jnp.concatenate([ca["wk"], ca["wv"]], axis=1)                  # [D, 2D]
    ca_bkv = jnp.concatenate([ca["bk"], ca["bv"]]).reshape(1, 2 * D)
    ln_g = jnp.stack([params["ln0_g"], params["ln1_g"], params["ln2_g"]])   # [3, D]
    ln_b = jnp.stack([params["ln0_b"], params["ln1_b"], params["ln2_b"]])   # [3, D]

    def batch_spec(t, d):
        return pl.BlockSpec((1, t, d), lambda b: (b, 0, 0))

    def rep_spec(r, c):
        return pl.BlockSpec((r, c), lambda b: (0, 0))

    in_specs = [
        batch_spec(T, D),              # x
        batch_spec(S, D),              # hidden_states
        batch_spec(T, T),              # tgt_mask
        batch_spec(T, S),              # src_mask
        rep_spec(3, D), rep_spec(3, D),                 # ln gamma / beta
        rep_spec(D, 3 * D), rep_spec(1, 3 * D),         # self-attn wqkv / bqkv
        rep_spec(D, D), rep_spec(1, D),                 # self-attn wo / bo
        rep_spec(D, D), rep_spec(1, D),                 # cross-attn wq / bq
        rep_spec(D, 2 * D), rep_spec(1, 2 * D),         # cross-attn wkv / bkv
        rep_spec(D, D), rep_spec(1, D),                 # cross-attn wo / bo
        rep_spec(D, D_FF), rep_spec(1, D_FF),           # ffn w1 / b1
        rep_spec(D_FF, D), rep_spec(1, D),              # ffn w2 / b2
    ]

    return pl.pallas_call(
        _decoder_layer_kernel,
        out_shape=jax.ShapeDtypeStruct((B, T, D), jnp.float32),
        grid=(B,),                                       # parallel over batch
        in_specs=in_specs,
        out_specs=batch_spec(T, D),
        compiler_params=pltpu.CompilerParams(
            dimension_semantics=("parallel",)),
    )(
        x, hidden_states, tgt_mask, src_mask,
        ln_g, ln_b,
        sa_wqkv, sa_bqkv, sa["wo"], sa["bo"].reshape(1, D),
        ca["wq"], ca["bq"].reshape(1, D), ca_wkv, ca_bkv,
        ca["wo"], ca["bo"].reshape(1, D),
        params["ff_w1"], params["ff_b1"].reshape(1, D_FF),
        params["ff_w2"], params["ff_b2"].reshape(1, D),
    )


def init_params(key):
    def dense(k, din, dout):
        return jax.random.normal(k, (din, dout), jnp.float32) * 0.02

    keys = jax.random.split(key, 12)

    def attn_params(ks):
        return {
            "wq": dense(ks[0], D_MODEL, D_MODEL), "bq": jnp.zeros((D_MODEL,), jnp.float32),
            "wk": dense(ks[1], D_MODEL, D_MODEL), "bk": jnp.zeros((D_MODEL,), jnp.float32),
            "wv": dense(ks[2], D_MODEL, D_MODEL), "bv": jnp.zeros((D_MODEL,), jnp.float32),
            "wo": dense(ks[3], D_MODEL, D_MODEL), "bo": jnp.zeros((D_MODEL,), jnp.float32),
        }

    return {
        "self_attn": attn_params(keys[0:4]),
        "src_attn": attn_params(keys[4:8]),
        "ff_w1": dense(keys[8], D_MODEL, D_FF), "ff_b1": jnp.zeros((D_FF,), jnp.float32),
        "ff_w2": dense(keys[9], D_FF, D_MODEL), "ff_b2": jnp.zeros((D_MODEL,), jnp.float32),
        "ln0_g": jnp.ones((D_MODEL,), jnp.float32), "ln0_b": jnp.zeros((D_MODEL,), jnp.float32),
        "ln1_g": jnp.ones((D_MODEL,), jnp.float32), "ln1_b": jnp.zeros((D_MODEL,), jnp.float32),
        "ln2_g": jnp.ones((D_MODEL,), jnp.float32), "ln2_b": jnp.zeros((D_MODEL,), jnp.float32),
    }


if __name__ == "__main__":
    B, T, S = 2, 8, 10
    root = jax.random.PRNGKey(0)
    kp, kx, km = jax.random.split(root, 3)

    params = init_params(kp)
    x = jax.random.normal(kx, (B, T, D_MODEL), jnp.float32)
    hidden_states = jax.random.normal(km, (B, S, D_MODEL), jnp.float32)

    # tgt_mask: causal [B, T, T]; src_mask: all-valid [B, T, S]
    tgt_mask = jnp.tril(jnp.ones((T, T), jnp.float32))[None].repeat(B, axis=0)
    src_mask = jnp.ones((B, T, S), jnp.float32)

    out = decoder_layer(params, x, hidden_states, src_mask, tgt_mask)
    out = jax.block_until_ready(out)
    assert out.shape == (B, T, D_MODEL)
    assert bool(jnp.all(jnp.isfinite(out)))
    print("KERNEL_OK")
</pallas_src>

<mosaic_0001>
module attributes {stable_mosaic.version = 11 : i64} {
  func.func @_decoder_layer_kernel(%arg0: i32, %arg1: memref<1x8x32xf32, #tpu.memory_space<vmem>>, %arg2: memref<1x10x32xf32, #tpu.memory_space<vmem>>, %arg3: memref<1x8x8xf32, #tpu.memory_space<vmem>>, %arg4: memref<1x8x10xf32, #tpu.memory_space<vmem>>, %arg5: memref<3x32xf32, #tpu.memory_space<vmem>>, %arg6: memref<3x32xf32, #tpu.memory_space<vmem>>, %arg7: memref<32x96xf32, #tpu.memory_space<vmem>>, %arg8: memref<1x96xf32, #tpu.memory_space<vmem>>, %arg9: memref<32x32xf32, #tpu.memory_space<vmem>>, %arg10: memref<1x32xf32, #tpu.memory_space<vmem>>, %arg11: memref<32x32xf32, #tpu.memory_space<vmem>>, %arg12: memref<1x32xf32, #tpu.memory_space<vmem>>, %arg13: memref<32x64xf32, #tpu.memory_space<vmem>>, %arg14: memref<1x64xf32, #tpu.memory_space<vmem>>, %arg15: memref<32x32xf32, #tpu.memory_space<vmem>>, %arg16: memref<1x32xf32, #tpu.memory_space<vmem>>, %arg17: memref<32x64xf32, #tpu.memory_space<vmem>>, %arg18: memref<1x64xf32, #tpu.memory_space<vmem>>, %arg19: memref<64x32xf32, #tpu.memory_space<vmem>>, %arg20: memref<1x32xf32, #tpu.memory_space<vmem>>, %arg21: memref<1x8x32xf32, #tpu.memory_space<vmem>>) attributes {dimension_semantics = [#tpu.dimension_semantics<parallel>], iteration_bounds = array<i64: 2>, scalar_prefetch = 0 : i64, scratch_operands = 0 : i64, tpu.core_type = #tpu.core_type<tc>, window_params = [{transform_indices = @transform_0, window_bounds = array<i64: 1, 8, 32>}, {transform_indices = @transform_1, window_bounds = array<i64: 1, 10, 32>}, {transform_indices = @transform_2, window_bounds = array<i64: 1, 8, 8>}, {transform_indices = @transform_3, window_bounds = array<i64: 1, 8, 10>}, {pipeline_mode = #tpu.pipeline_mode<synchronous>, transform_indices = @transform_4, window_bounds = array<i64: 3, 32>}, {pipeline_mode = #tpu.pipeline_mode<synchronous>, transform_indices = @transform_5, window_bounds = array<i64: 3, 32>}, {pipeline_mode = #tpu.pipeline_mode<synchronous>, transform_indices = @transform_6, window_bounds = array<i64: 32, 96>}, {pipeline_mode = #tpu.pipeline_mode<synchronous>, transform_indices = @transform_7, window_bounds = array<i64: 1, 96>}, {pipeline_mode = #tpu.pipeline_mode<synchronous>, transform_indices = @transform_8, window_bounds = array<i64: 32, 32>}, {pipeline_mode = #tpu.pipeline_mode<synchronous>, transform_indices = @transform_9, window_bounds = array<i64: 1, 32>}, {pipeline_mode = #tpu.pipeline_mode<synchronous>, transform_indices = @transform_10, window_bounds = array<i64: 32, 32>}, {pipeline_mode = #tpu.pipeline_mode<synchronous>, transform_indices = @transform_11, window_bounds = array<i64: 1, 32>}, {pipeline_mode = #tpu.pipeline_mode<synchronous>, transform_indices = @transform_12, window_bounds = array<i64: 32, 64>}, {pipeline_mode = #tpu.pipeline_mode<synchronous>, transform_indices = @transform_13, window_bounds = array<i64: 1, 64>}, {pipeline_mode = #tpu.pipeline_mode<synchronous>, transform_indices = @transform_14, window_bounds = array<i64: 32, 32>}, {pipeline_mode = #tpu.pipeline_mode<synchronous>, transform_indices = @transform_15, window_bounds = array<i64: 1, 32>}, {pipeline_mode = #tpu.pipeline_mode<synchronous>, transform_indices = @transform_16, window_bounds = array<i64: 32, 64>}, {pipeline_mode = #tpu.pipeline_mode<synchronous>, transform_indices = @transform_17, window_bounds = array<i64: 1, 64>}, {pipeline_mode = #tpu.pipeline_mode<synchronous>, transform_indices = @transform_18, window_bounds = array<i64: 64, 32>}, {pipeline_mode = #tpu.pipeline_mode<synchronous>, transform_indices = @transform_19, window_bounds = array<i64: 1, 32>}, {transform_indices = @transform_20, window_bounds = array<i64: 1, 8, 32>}]} {
    %c0 = arith.constant 0 : index
    %c0_0 = arith.constant 0 : index
    %c0_1 = arith.constant 0 : index
    %0 = vector.load %arg1[%c0, %c0_0, %c0_1] : memref<1x8x32xf32, #tpu.memory_space<vmem>>, vector<1x8x32xf32>
    %1 = vector.shape_cast %0 : vector<1x8x32xf32> to vector<8x32xf32>
    %c0_2 = arith.constant 0 : index
    %c0_3 = arith.constant 0 : index
    %c0_4 = arith.constant 0 : index
    %2 = vector.load %arg2[%c0_2, %c0_3, %c0_4] : memref<1x10x32xf32, #tpu.memory_space<vmem>>, vector<1x10x32xf32>
    %3 = vector.shape_cast %2 : vector<1x10x32xf32> to vector<10x32xf32>
    %c0_5 = arith.constant 0 : index
    %c0_6 = arith.constant 0 : index
    %c0_7 = arith.constant 0 : index
    %4 = vector.load %arg3[%c0_5, %c0_6, %c0_7] : memref<1x8x8xf32, #tpu.memory_space<vmem>>, vector<1x8x8xf32>
    %5 = vector.shape_cast %4 : vector<1x8x8xf32> to vector<8x8xf32>
    %c0_8 = arith.constant 0 : index
    %c0_9 = arith.constant 0 : index
    %c0_10 = arith.constant 0 : index
    %6 = vector.load %arg4[%c0_8, %c0_9, %c0_10] : memref<1x8x10xf32, #tpu.memory_space<vmem>>, vector<1x8x10xf32>
    %7 = vector.shape_cast %6 : vector<1x8x10xf32> to vector<8x10xf32>
    %c0_11 = arith.constant 0 : index
    %c0_12 = arith.constant 0 : index
    %8 = vector.load %arg5[%c0_11, %c0_12] : memref<3x32xf32, #tpu.memory_space<vmem>>, vector<1x32xf32>
    %c0_13 = arith.constant 0 : index
    %c0_14 = arith.constant 0 : index
    %9 = vector.load %arg6[%c0_13, %c0_14] : memref<3x32xf32, #tpu.memory_space<vmem>>, vector<1x32xf32>
    %cst = arith.constant dense<0.000000e+00> : vector<8xf32>
    %10 = vector.multi_reduction <add>, %1, %cst [1] : vector<8x32xf32> to vector<8xf32>
    %11 = vector.shape_cast %10 : vector<8xf32> to vector<8x1xf32>
    %cst_15 = arith.constant 3.200000e+01 : f32
    %12 = vector.broadcast %cst_15 : f32 to vector<8x1xf32>
    %13 = arith.divf %11, %12 : vector<8x1xf32>
    %14 = vector.broadcast %13 : vector<8x1xf32> to vector<8x32xf32>
    %15 = arith.subf %1, %14 : vector<8x32xf32>
    %16 = arith.mulf %15, %15 : vector<8x32xf32>
    %cst_16 = arith.constant dense<0.000000e+00> : vector<8xf32>
    %17 = vector.multi_reduction <add>, %16, %cst_16 [1] : vector<8x32xf32> to vector<8xf32>
    %18 = vector.shape_cast %17 : vector<8xf32> to vector<8x1xf32>
    %cst_17 = arith.constant 3.100000e+01 : f32
    %19 = vector.broadcast %cst_17 : f32 to vector<8x1xf32>
    %20 = arith.divf %18, %19 : vector<8x1xf32>
    %21 = math.sqrt %20 : vector<8x1xf32>
    %22 = vector.broadcast %13 : vector<8x1xf32> to vector<8x32xf32>
    %23 = arith.subf %1, %22 : vector<8x32xf32>
    %24 = vector.broadcast %8 : vector<1x32xf32> to vector<8x32xf32>
    %25 = arith.mulf %24, %23 : vector<8x32xf32>
    %cst_18 = arith.constant 9.99999997E-7 : f32
    %26 = vector.broadcast %cst_18 : f32 to vector<8x1xf32>
    %27 = arith.addf %21, %26 : vector<8x1xf32>
    %28 = vector.broadcast %27 : vector<8x1xf32> to vector<8x32xf32>
    %29 = arith.divf %25, %28 : vector<8x32xf32>
    %30 = vector.broadcast %9 : vector<1x32xf32> to vector<8x32xf32>
    %31 = arith.addf %29, %30 : vector<8x32xf32>
    %c0_19 = arith.constant 0 : index
    %c0_20 = arith.constant 0 : index
    %32 = vector.load %arg7[%c0_19, %c0_20] : memref<32x96xf32, #tpu.memory_space<vmem>>, vector<32x96xf32>
    %cst_21 = arith.constant dense<0.000000e+00> : vector<8x96xf32>
    %33 = tpu.matmul %31, %32, %cst_21 {dimension_numbers = #tpu.dot_dimension_numbers<[1], [0], [0], [1], [0, 0, 1, 1], [], []>} : vector<8x32xf32>, vector<32x96xf32>, vector<8x96xf32> -> vector<8x96xf32>
    %c0_22 = arith.constant 0 : index
    %c0_23 = arith.constant 0 : index
    %34 = vector.load %arg8[%c0_22, %c0_23] : memref<1x96xf32, #tpu.memory_space<vmem>>, vector<1x96xf32>
    %35 = vector.broadcast %34 : vector<1x96xf32> to vector<8x96xf32>
    %36 = arith.addf %33, %35 : vector<8x96xf32>
    %37 = vector.extract_strided_slice %36 {offsets = [0, 0], sizes = [8, 32], strides = [1, 1]} : vector<8x96xf32> to vector<8x32xf32>
    %38 = vector.extract_strided_slice %36 {offsets = [0, 32], sizes = [8, 32], strides = [1, 1]} : vector<8x96xf32> to vector<8x32xf32>
    %39 = vector.extract_strided_slice %36 {offsets = [0, 64], sizes = [8, 32], strides = [1, 1]} : vector<8x96xf32> to vector<8x32xf32>
    %40 = vector.extract_strided_slice %37 {offsets = [0, 0], sizes = [8, 8], strides = [1, 1]} : vector<8x32xf32> to vector<8x8xf32>
    %41 = vector.extract_strided_slice %38 {offsets = [0, 0], sizes = [8, 8], strides = [1, 1]} : vector<8x32xf32> to vector<8x8xf32>
    %42 = vector.extract_strided_slice %39 {offsets = [0, 0], sizes = [8, 8], strides = [1, 1]} : vector<8x32xf32> to vector<8x8xf32>
    %cst_24 = arith.constant dense<0.000000e+00> : vector<8x8xf32>
    %43 = tpu.matmul %40, %41, %cst_24 {dimension_numbers = #tpu.dot_dimension_numbers<[1], [1], [0], [0], [0, 0, 1, 0], [], []>} : vector<8x8xf32>, vector<8x8xf32>, vector<8x8xf32> -> vector<8x8xf32>
    %cst_25 = arith.constant 0.353553385 : f32
    %44 = vector.broadcast %cst_25 : f32 to vector<8x8xf32>
    %45 = arith.mulf %43, %44 : vector<8x8xf32>
    %cst_26 = arith.constant 0.000000e+00 : f32
    %46 = vector.broadcast %cst_26 : f32 to vector<8x8xf32>
    %47 = arith.cmpf ogt, %5, %46 : vector<8x8xf32>
    %cst_27 = arith.constant -1.000000e+09 : f32
    %48 = vector.broadcast %cst_27 : f32 to vector<8x8xf32>
    %49 = arith.select %47, %45, %48 : vector<8x8xi1>, vector<8x8xf32>
    %cst_28 = arith.constant dense<0xFF800000> : vector<8xf32>
    %50 = vector.multi_reduction <maximumf>, %49, %cst_28 [1] : vector<8x8xf32> to vector<8xf32>
    %51 = vector.shape_cast %50 : vector<8xf32> to vector<8x1xf32>
    %52 = vector.broadcast %51 : vector<8x1xf32> to vector<8x8xf32>
    %53 = arith.subf %49, %52 : vector<8x8xf32>
    %54 = math.exp %53 : vector<8x8xf32>
    %cst_29 = arith.constant dense<0.000000e+00> : vector<8xf32>
    %55 = vector.multi_reduction <add>, %54, %cst_29 [1] : vector<8x8xf32> to vector<8xf32>
    %56 = vector.shape_cast %55 : vector<8xf32> to vector<8x1xf32>
    %57 = tpu.reciprocal %56 {approx = true} : vector<8x1xf32> -> vector<8x1xf32>
    %58 = vector.broadcast %57 : vector<8x1xf32> to vector<8x8xf32>
    %59 = arith.mulf %54, %58 : vector<8x8xf32>
    %cst_30 = arith.constant dense<0.000000e+00> : vector<8x8xf32>
    %60 = tpu.matmul %59, %42, %cst_30 {dimension_numbers = #tpu.dot_dimension_numbers<[1], [0], [0], [1], [0, 0, 1, 1], [], []>} : vector<8x8xf32>, vector<8x8xf32>, vector<8x8xf32> -> vector<8x8xf32>
    %61 = vector.extract_strided_slice %37 {offsets = [0, 8], sizes = [8, 8], strides = [1, 1]} : vector<8x32xf32> to vector<8x8xf32>
    %62 = vector.extract_strided_slice %38 {offsets = [0, 8], sizes = [8, 8], strides = [1, 1]} : vector<8x32xf32> to vector<8x8xf32>
    %63 = vector.extract_strided_slice %39 {offsets = [0, 8], sizes = [8, 8], strides = [1, 1]} : vector<8x32xf32> to vector<8x8xf32>
    %cst_31 = arith.constant dense<0.000000e+00> : vector<8x8xf32>
    %64 = tpu.matmul %61, %62, %cst_31 {dimension_numbers = #tpu.dot_dimension_numbers<[1], [1], [0], [0], [0, 0, 1, 0], [], []>} : vector<8x8xf32>, vector<8x8xf32>, vector<8x8xf32> -> vector<8x8xf32>
    %cst_32 = arith.constant 0.353553385 : f32
    %65 = vector.broadcast %cst_32 : f32 to vector<8x8xf32>
    %66 = arith.mulf %64, %65 : vector<8x8xf32>
    %cst_33 = arith.constant 0.000000e+00 : f32
    %67 = vector.broadcast %cst_33 : f32 to vector<8x8xf32>
    %68 = arith.cmpf ogt, %5, %67 : vector<8x8xf32>
    %cst_34 = arith.constant -1.000000e+09 : f32
    %69 = vector.broadcast %cst_34 : f32 to vector<8x8xf32>
    %70 = arith.select %68, %66, %69 : vector<8x8xi1>, vector<8x8xf32>
    %cst_35 = arith.constant dense<0xFF800000> : vector<8xf32>
    %71 = vector.multi_reduction <maximumf>, %70, %cst_35 [1] : vector<8x8xf32> to vector<8xf32>
    %72 = vector.shape_cast %71 : vector<8xf32> to vector<8x1xf32>
    %73 = vector.broadcast %72 : vector<8x1xf32> to vector<8x8xf32>
    %74 = arith.subf %70, %73 : vector<8x8xf32>
    %75 = math.exp %74 : vector<8x8xf32>
    %cst_36 = arith.constant dense<0.000000e+00> : vector<8xf32>
    %76 = vector.multi_reduction <add>, %75, %cst_36 [1] : vector<8x8xf32> to vector<8xf32>
    %77 = vector.shape_cast %76 : vector<8xf32> to vector<8x1xf32>
    %78 = tpu.reciprocal %77 {approx = true} : vector<8x1xf32> -> vector<8x1xf32>
    %79 = vector.broadcast %78 : vector<8x1xf32> to vector<8x8xf32>
    %80 = arith.mulf %75, %79 : vector<8x8xf32>
    %cst_37 = arith.constant dense<0.000000e+00> : vector<8x8xf32>
    %81 = tpu.matmul %80, %63, %cst_37 {dimension_numbers = #tpu.dot_dimension_numbers<[1], [0], [0], [1], [0, 0, 1, 1], [], []>} : vector<8x8xf32>, vector<8x8xf32>, vector<8x8xf32> -> vector<8x8xf32>
    %82 = vector.extract_strided_slice %37 {offsets = [0, 16], sizes = [8, 8], strides = [1, 1]} : vector<8x32xf32> to vector<8x8xf32>
    %83 = vector.extract_strided_slice %38 {offsets = [0, 16], sizes = [8, 8], strides = [1, 1]} : vector<8x32xf32> to vector<8x8xf32>
    %84 = vector.extract_strided_slice %39 {offsets = [0, 16], sizes = [8, 8], strides = [1, 1]} : vector<8x32xf32> to vector<8x8xf32>
    %cst_38 = arith.constant dense<0.000000e+00> : vector<8x8xf32>
    %85 = tpu.matmul %82, %83, %cst_38 {dimension_numbers = #tpu.dot_dimension_numbers<[1], [1], [0], [0], [0, 0, 1, 0], [], []>} : vector<8x8xf32>, vector<8x8xf32>, vector<8x8xf32> -> vector<8x8xf32>
    %cst_39 = arith.constant 0.353553385 : f32
    %86 = vector.broadcast %cst_39 : f32 to vector<8x8xf32>
    %87 = arith.mulf %85, %86 : vector<8x8xf32>
    %cst_40 = arith.constant 0.000000e+00 : f32
    %88 = vector.broadcast %cst_40 : f32 to vector<8x8xf32>
    %89 = arith.cmpf ogt, %5, %88 : vector<8x8xf32>
    %cst_41 = arith.constant -1.000000e+09 : f32
    %90 = vector.broadcast %cst_41 : f32 to vector<8x8xf32>
    %91 = arith.select %89, %87, %90 : vector<8x8xi1>, vector<8x8xf32>
    %cst_42 = arith.constant dense<0xFF800000> : vector<8xf32>
    %92 = vector.multi_reduction <maximumf>, %91, %cst_42 [1] : vector<8x8xf32> to vector<8xf32>
    %93 = vector.shape_cast %92 : vector<8xf32> to vector<8x1xf32>
    %94 = vector.broadcast %93 : vector<8x1xf32> to vector<8x8xf32>
    %95 = arith.subf %91, %94 : vector<8x8xf32>
    %96 = math.exp %95 : vector<8x8xf32>
    %cst_43 = arith.constant dense<0.000000e+00> : vector<8xf32>
    %97 = vector.multi_reduction <add>, %96, %cst_43 [1] : vector<8x8xf32> to vector<8xf32>
    %98 = vector.shape_cast %97 : vector<8xf32> to vector<8x1xf32>
    %99 = tpu.reciprocal %98 {approx = true} : vector<8x1xf32> -> vector<8x1xf32>
    %100 = vector.broadcast %99 : vector<8x1xf32> to vector<8x8xf32>
    %101 = arith.mulf %96, %100 : vector<8x8xf32>
    %cst_44 = arith.constant dense<0.000000e+00> : vector<8x8xf32>
    %102 = tpu.matmul %101, %84, %cst_44 {dimension_numbers = #tpu.dot_dimension_numbers<[1], [0], [0], [1], [0, 0, 1, 1], [], []>} : vector<8x8xf32>, vector<8x8xf32>, vector<8x8xf32> -> vector<8x8xf32>
    %103 = vector.extract_strided_slice %37 {offsets = [0, 24], sizes = [8, 8], strides = [1, 1]} : vector<8x32xf32> to vector<8x8xf32>
    %104 = vector.extract_strided_slice %38 {offsets = [0, 24], sizes = [8, 8], strides = [1, 1]} : vector<8x32xf32> to vector<8x8xf32>
    %105 = vector.extract_strided_slice %39 {offsets = [0, 24], sizes = [8, 8], strides = [1, 1]} : vector<8x32xf32> to vector<8x8xf32>
    %cst_45 = arith.constant dense<0.000000e+00> : vector<8x8xf32>
    %106 = tpu.matmul %103, %104, %cst_45 {dimension_numbers = #tpu.dot_dimension_numbers<[1], [1], [0], [0], [0, 0, 1, 0], [], []>} : vector<8x8xf32>, vector<8x8xf32>, vector<8x8xf32> -> vector<8x8xf32>
    %cst_46 = arith.constant 0.353553385 : f32
    %107 = vector.broadcast %cst_46 : f32 to vector<8x8xf32>
    %108 = arith.mulf %106, %107 : vector<8x8xf32>
    %cst_47 = arith.constant 0.000000e+00 : f32
    %109 = vector.broadcast %cst_47 : f32 to vector<8x8xf32>
    %110 = arith.cmpf ogt, %5, %109 : vector<8x8xf32>
    %cst_48 = arith.constant -1.000000e+09 : f32
    %111 = vector.broadcast %cst_48 : f32 to vector<8x8xf32>
    %112 = arith.select %110, %108, %111 : vector<8x8xi1>, vector<8x8xf32>
    %cst_49 = arith.constant dense<0xFF800000> : vector<8xf32>
    %113 = vector.multi_reduction <maximumf>, %112, %cst_49 [1] : vector<8x8xf32> to vector<8xf32>
    %114 = vector.shape_cast %113 : vector<8xf32> to vector<8x1xf32>
    %115 = vector.broadcast %114 : vector<8x1xf32> to vector<8x8xf32>
    %116 = arith.subf %112, %115 : vector<8x8xf32>
    %117 = math.exp %116 : vector<8x8xf32>
    %cst_50 = arith.constant dense<0.000000e+00> : vector<8xf32>
    %118 = vector.multi_reduction <add>, %117, %cst_50 [1] : vector<8x8xf32> to vector<8xf32>
    %119 = vector.shape_cast %118 : vector<8xf32> to vector<8x1xf32>
    %120 = tpu.reciprocal %119 {approx = true} : vector<8x1xf32> -> vector<8x1xf32>
    %121 = vector.broadcast %120 : vector<8x1xf32> to vector<8x8xf32>
    %122 = arith.mulf %117, %121 : vector<8x8xf32>
    %cst_51 = arith.constant dense<0.000000e+00> : vector<8x8xf32>
    %123 = tpu.matmul %122, %105, %cst_51 {dimension_numbers = #tpu.dot_dimension_numbers<[1], [0], [0], [1], [0, 0, 1, 1], [], []>} : vector<8x8xf32>, vector<8x8xf32>, vector<8x8xf32> -> vector<8x8xf32>
    %124 = tpu.concatenate %60, %81, %102, %123 in 1 : vector<8x8xf32>, vector<8x8xf32>, vector<8x8xf32>, vector<8x8xf32> -> vector<8x32xf32>
    %c0_52 = arith.constant 0 : index
    %c0_53 = arith.constant 0 : index
    %125 = vector.load %arg9[%c0_52, %c0_53] : memref<32x32xf32, #tpu.memory_space<vmem>>, vector<32x32xf32>
    %cst_54 = arith.constant dense<0.000000e+00> : vector<8x32xf32>
    %126 = tpu.matmul %124, %125, %cst_54 {dimension_numbers = #tpu.dot_dimension_numbers<[1], [0], [0], [1], [0, 0, 1, 1], [], []>} : vector<8x32xf32>, vector<32x32xf32>, vector<8x32xf32> -> vector<8x32xf32>
    %c0_55 = arith.constant 0 : index
    %c0_56 = arith.constant 0 : index
    %127 = vector.load %arg10[%c0_55, %c0_56] : memref<1x32xf32, #tpu.memory_space<vmem>>, vector<1x32xf32>
    %128 = vector.broadcast %127 : vector<1x32xf32> to vector<8x32xf32>
    %129 = arith.addf %126, %128 : vector<8x32xf32>
    %130 = arith.addf %1, %129 : vector<8x32xf32>
    %c1 = arith.constant 1 : index
    %c0_57 = arith.constant 0 : index
    %131 = vector.load %arg5[%c1, %c0_57] : memref<3x32xf32, #tpu.memory_space<vmem>>, vector<1x32xf32>
    %c1_58 = arith.constant 1 : index
    %c0_59 = arith.constant 0 : index
    %132 = vector.load %arg6[%c1_58, %c0_59] : memref<3x32xf32, #tpu.memory_space<vmem>>, vector<1x32xf32>
    %cst_60 = arith.constant dense<0.000000e+00> : vector<8xf32>
    %133 = vector.multi_reduction <add>, %130, %cst_60 [1] : vector<8x32xf32> to vector<8xf32>
    %134 = vector.shape_cast %133 : vector<8xf32> to vector<8x1xf32>
    %cst_61 = arith.constant 3.200000e+01 : f32
    %135 = vector.broadcast %cst_61 : f32 to vector<8x1xf32>
    %136 = arith.divf %134, %135 : vector<8x1xf32>
    %137 = vector.broadcast %136 : vector<8x1xf32> to vector<8x32xf32>
    %138 = arith.subf %130, %137 : vector<8x32xf32>
    %139 = arith.mulf %138, %138 : vector<8x32xf32>
    %cst_62 = arith.constant dense<0.000000e+00> : vector<8xf32>
    %140 = vector.multi_reduction <add>, %139, %cst_62 [1] : vector<8x32xf32> to vector<8xf32>
    %141 = vector.shape_cast %140 : vector<8xf32> to vector<8x1xf32>
    %cst_63 = arith.constant 3.100000e+01 : f32
    %142 = vector.broadcast %cst_63 : f32 to vector<8x1xf32>
    %143 = arith.divf %141, %142 : vector<8x1xf32>
    %144 = math.sqrt %143 : vector<8x1xf32>
    %145 = vector.broadcast %136 : vector<8x1xf32> to vector<8x32xf32>
    %146 = arith.subf %130, %145 : vector<8x32xf32>
    %147 = vector.broadcast %131 : vector<1x32xf32> to vector<8x32xf32>
    %148 = arith.mulf %147, %146 : vector<8x32xf32>
    %cst_64 = arith.constant 9.99999997E-7 : f32
    %149 = vector.broadcast %cst_64 : f32 to vector<8x1xf32>
    %150 = arith.addf %144, %149 : vector<8x1xf32>
    %151 = vector.broadcast %150 : vector<8x1xf32> to vector<8x32xf32>
    %152 = arith.divf %148, %151 : vector<8x32xf32>
    %153 = vector.broadcast %132 : vector<1x32xf32> to vector<8x32xf32>
    %154 = arith.addf %152, %153 : vector<8x32xf32>
    %c0_65 = arith.constant 0 : index
    %c0_66 = arith.constant 0 : index
    %155 = vector.load %arg11[%c0_65, %c0_66] : memref<32x32xf32, #tpu.memory_space<vmem>>, vector<32x32xf32>
    %cst_67 = arith.constant dense<0.000000e+00> : vector<8x32xf32>
    %156 = tpu.matmul %154, %155, %cst_67 {dimension_numbers = #tpu.dot_dimension_numbers<[1], [0], [0], [1], [0, 0, 1, 1], [], []>} : vector<8x32xf32>, vector<32x32xf32>, vector<8x32xf32> -> vector<8x32xf32>
    %c0_68 = arith.constant 0 : index
    %c0_69 = arith.constant 0 : index
    %157 = vector.load %arg12[%c0_68, %c0_69] : memref<1x32xf32, #tpu.memory_space<vmem>>, vector<1x32xf32>
    %158 = vector.broadcast %157 : vector<1x32xf32> to vector<8x32xf32>
    %159 = arith.addf %156, %158 : vector<8x32xf32>
    %c0_70 = arith.constant 0 : index
    %c0_71 = arith.constant 0 : index
    %160 = vector.load %arg13[%c0_70, %c0_71] : memref<32x64xf32, #tpu.memory_space<vmem>>, vector<32x64xf32>
    %cst_72 = arith.constant dense<0.000000e+00> : vector<10x64xf32>
    %161 = tpu.matmul %3, %160, %cst_72 {dimension_numbers = #tpu.dot_dimension_numbers<[1], [0], [0], [1], [0, 0, 1, 1], [], []>} : vector<10x32xf32>, vector<32x64xf32>, vector<10x64xf32> -> vector<10x64xf32>
    %c0_73 = arith.constant 0 : index
    %c0_74 = arith.constant 0 : index
    %162 = vector.load %arg14[%c0_73, %c0_74] : memref<1x64xf32, #tpu.memory_space<vmem>>, vector<1x64xf32>
    %163 = vector.broadcast %162 : vector<1x64xf32> to vector<10x64xf32>
    %164 = arith.addf %161, %163 : vector<10x64xf32>
    %165 = vector.extract_strided_slice %164 {offsets = [0, 0], sizes = [10, 32], strides = [1, 1]} : vector<10x64xf32> to vector<10x32xf32>
    %166 = vector.extract_strided_slice %164 {offsets = [0, 32], sizes = [10, 32], strides = [1, 1]} : vector<10x64xf32> to vector<10x32xf32>
    %167 = vector.extract_strided_slice %159 {offsets = [0, 0], sizes = [8, 8], strides = [1, 1]} : vector<8x32xf32> to vector<8x8xf32>
    %168 = vector.extract_strided_slice %165 {offsets = [0, 0], sizes = [10, 8], strides = [1, 1]} : vector<10x32xf32> to vector<10x8xf32>
    %169 = vector.extract_strided_slice %166 {offsets = [0, 0], sizes = [10, 8], strides = [1, 1]} : vector<10x32xf32> to vector<10x8xf32>
    %cst_75 = arith.constant dense<0.000000e+00> : vector<8x10xf32>
    %170 = tpu.matmul %167, %168, %cst_75 {dimension_numbers = #tpu.dot_dimension_numbers<[1], [1], [0], [0], [0, 0, 1, 0], [], []>} : vector<8x8xf32>, vector<10x8xf32>, vector<8x10xf32> -> vector<8x10xf32>
    %cst_76 = arith.constant 0.353553385 : f32
    %171 = vector.broadcast %cst_76 : f32 to vector<8x10xf32>
    %172 = arith.mulf %170, %171 : vector<8x10xf32>
    %cst_77 = arith.constant 0.000000e+00 : f32
    %173 = vector.broadcast %cst_77 : f32 to vector<8x10xf32>
    %174 = arith.cmpf ogt, %7, %173 : vector<8x10xf32>
    %cst_78 = arith.constant -1.000000e+09 : f32
    %175 = vector.broadcast %cst_78 : f32 to vector<8x10xf32>
    %176 = arith.select %174, %172, %175 : vector<8x10xi1>, vector<8x10xf32>
    %cst_79 = arith.constant dense<0xFF800000> : vector<8xf32>
    %177 = vector.multi_reduction <maximumf>, %176, %cst_79 [1] : vector<8x10xf32> to vector<8xf32>
    %178 = vector.shape_cast %177 : vector<8xf32> to vector<8x1xf32>
    %179 = vector.broadcast %178 : vector<8x1xf32> to vector<8x10xf32>
    %180 = arith.subf %176, %179 : vector<8x10xf32>
    %181 = math.exp %180 : vector<8x10xf32>
    %cst_80 = arith.constant dense<0.000000e+00> : vector<8xf32>
    %182 = vector.multi_reduction <add>, %181, %cst_80 [1] : vector<8x10xf32> to vector<8xf32>
    %183 = vector.shape_cast %182 : vector<8xf32> to vector<8x1xf32>
    %184 = tpu.reciprocal %183 {approx = true} : vector<8x1xf32> -> vector<8x1xf32>
    %185 = vector.broadcast %184 : vector<8x1xf32> to vector<8x10xf32>
    %186 = arith.mulf %181, %185 : vector<8x10xf32>
    %cst_81 = arith.constant dense<0.000000e+00> : vector<8x8xf32>
    %187 = tpu.matmul %186, %169, %cst_81 {dimension_numbers = #tpu.dot_dimension_numbers<[1], [0], [0], [1], [0, 0, 1, 1], [], []>} : vector<8x10xf32>, vector<10x8xf32>, vector<8x8xf32> -> vector<8x8xf32>
    %188 = vector.extract_strided_slice %159 {offsets = [0, 8], sizes = [8, 8], strides = [1, 1]} : vector<8x32xf32> to vector<8x8xf32>
    %189 = vector.extract_strided_slice %165 {offsets = [0, 8], sizes = [10, 8], strides = [1, 1]} : vector<10x32xf32> to vector<10x8xf32>
    %190 = vector.extract_strided_slice %166 {offsets = [0, 8], sizes = [10, 8], strides = [1, 1]} : vector<10x32xf32> to vector<10x8xf32>
    %cst_82 = arith.constant dense<0.000000e+00> : vector<8x10xf32>
    %191 = tpu.matmul %188, %189, %cst_82 {dimension_numbers = #tpu.dot_dimension_numbers<[1], [1], [0], [0], [0, 0, 1, 0], [], []>} : vector<8x8xf32>, vector<10x8xf32>, vector<8x10xf32> -> vector<8x10xf32>
    %cst_83 = arith.constant 0.353553385 : f32
    %192 = vector.broadcast %cst_83 : f32 to vector<8x10xf32>
    %193 = arith.mulf %191, %192 : vector<8x10xf32>
    %cst_84 = arith.constant 0.000000e+00 : f32
    %194 = vector.broadcast %cst_84 : f32 to vector<8x10xf32>
    %195 = arith.cmpf ogt, %7, %194 : vector<8x10xf32>
    %cst_85 = arith.constant -1.000000e+09 : f32
    %196 = vector.broadcast %cst_85 : f32 to vector<8x10xf32>
    %197 = arith.select %195, %193, %196 : vector<8x10xi1>, vector<8x10xf32>
    %cst_86 = arith.constant dense<0xFF800000> : vector<8xf32>
    %198 = vector.multi_reduction <maximumf>, %197, %cst_86 [1] : vector<8x10xf32> to vector<8xf32>
    %199 = vector.shape_cast %198 : vector<8xf32> to vector<8x1xf32>
    %200 = vector.broadcast %199 : vector<8x1xf32> to vector<8x10xf32>
    %201 = arith.subf %197, %200 : vector<8x10xf32>
    %202 = math.exp %201 : vector<8x10xf32>
    %cst_87 = arith.constant dense<0.000000e+00> : vector<8xf32>
    %203 = vector.multi_reduction <add>, %202, %cst_87 [1] : vector<8x10xf32> to vector<8xf32>
    %204 = vector.shape_cast %203 : vector<8xf32> to vector<8x1xf32>
    %205 = tpu.reciprocal %204 {approx = true} : vector<8x1xf32> -> vector<8x1xf32>
    %206 = vector.broadcast %205 : vector<8x1xf32> to vector<8x10xf32>
    %207 = arith.mulf %202, %206 : vector<8x10xf32>
    %cst_88 = arith.constant dense<0.000000e+00> : vector<8x8xf32>
    %208 = tpu.matmul %207, %190, %cst_88 {dimension_numbers = #tpu.dot_dimension_numbers<[1], [0], [0], [1], [0, 0, 1, 1], [], []>} : vector<8x10xf32>, vector<10x8xf32>, vector<8x8xf32> -> vector<8x8xf32>
    %209 = vector.extract_strided_slice %159 {offsets = [0, 16], sizes = [8, 8], strides = [1, 1]} : vector<8x32xf32> to vector<8x8xf32>
    %210 = vector.extract_strided_slice %165 {offsets = [0, 16], sizes = [10, 8], strides = [1, 1]} : vector<10x32xf32> to vector<10x8xf32>
    %211 = vector.extract_strided_slice %166 {offsets = [0, 16], sizes = [10, 8], strides = [1, 1]} : vector<10x32xf32> to vector<10x8xf32>
    %cst_89 = arith.constant dense<0.000000e+00> : vector<8x10xf32>
    %212 = tpu.matmul %209, %210, %cst_89 {dimension_numbers = #tpu.dot_dimension_numbers<[1], [1], [0], [0], [0, 0, 1, 0], [], []>} : vector<8x8xf32>, vector<10x8xf32>, vector<8x10xf32> -> vector<8x10xf32>
    %cst_90 = arith.constant 0.353553385 : f32
    %213 = vector.broadcast %cst_90 : f32 to vector<8x10xf32>
    %214 = arith.mulf %212, %213 : vector<8x10xf32>
    %cst_91 = arith.constant 0.000000e+00 : f32
    %215 = vector.broadcast %cst_91 : f32 to vector<8x10xf32>
    %216 = arith.cmpf ogt, %7, %215 : vector<8x10xf32>
    %cst_92 = arith.constant -1.000000e+09 : f32
    %217 = vector.broadcast %cst_92 : f32 to vector<8x10xf32>
    %218 = arith.select %216, %214, %217 : vector<8x10xi1>, vector<8x10xf32>
    %cst_93 = arith.constant dense<0xFF800000> : vector<8xf32>
    %219 = vector.multi_reduction <maximumf>, %218, %cst_93 [1] : vector<8x10xf32> to vector<8xf32>
    %220 = vector.shape_cast %219 : vector<8xf32> to vector<8x1xf32>
    %221 = vector.broadcast %220 : vector<8x1xf32> to vector<8x10xf32>
    %222 = arith.subf %218, %221 : vector<8x10xf32>
    %223 = math.exp %222 : vector<8x10xf32>
    %cst_94 = arith.constant dense<0.000000e+00> : vector<8xf32>
    %224 = vector.multi_reduction <add>, %223, %cst_94 [1] : vector<8x10xf32> to vector<8xf32>
    %225 = vector.shape_cast %224 : vector<8xf32> to vector<8x1xf32>
    %226 = tpu.reciprocal %225 {approx = true} : vector<8x1xf32> -> vector<8x1xf32>
    %227 = vector.broadcast %226 : vector<8x1xf32> to vector<8x10xf32>
    %228 = arith.mulf %223, %227 : vector<8x10xf32>
    %cst_95 = arith.constant dense<0.000000e+00> : vector<8x8xf32>
    %229 = tpu.matmul %228, %211, %cst_95 {dimension_numbers = #tpu.dot_dimension_numbers<[1], [0], [0], [1], [0, 0, 1, 1], [], []>} : vector<8x10xf32>, vector<10x8xf32>, vector<8x8xf32> -> vector<8x8xf32>
    %230 = vector.extract_strided_slice %159 {offsets = [0, 24], sizes = [8, 8], strides = [1, 1]} : vector<8x32xf32> to vector<8x8xf32>
    %231 = vector.extract_strided_slice %165 {offsets = [0, 24], sizes = [10, 8], strides = [1, 1]} : vector<10x32xf32> to vector<10x8xf32>
    %232 = vector.extract_strided_slice %166 {offsets = [0, 24], sizes = [10, 8], strides = [1, 1]} : vector<10x32xf32> to vector<10x8xf32>
    %cst_96 = arith.constant dense<0.000000e+00> : vector<8x10xf32>
    %233 = tpu.matmul %230, %231, %cst_96 {dimension_numbers = #tpu.dot_dimension_numbers<[1], [1], [0], [0], [0, 0, 1, 0], [], []>} : vector<8x8xf32>, vector<10x8xf32>, vector<8x10xf32> -> vector<8x10xf32>
    %cst_97 = arith.constant 0.353553385 : f32
    %234 = vector.broadcast %cst_97 : f32 to vector<8x10xf32>
    %235 = arith.mulf %233, %234 : vector<8x10xf32>
    %cst_98 = arith.constant 0.000000e+00 : f32
    %236 = vector.broadcast %cst_98 : f32 to vector<8x10xf32>
    %237 = arith.cmpf ogt, %7, %236 : vector<8x10xf32>
    %cst_99 = arith.constant -1.000000e+09 : f32
    %238 = vector.broadcast %cst_99 : f32 to vector<8x10xf32>
    %239 = arith.select %237, %235, %238 : vector<8x10xi1>, vector<8x10xf32>
    %cst_100 = arith.constant dense<0xFF800000> : vector<8xf32>
    %240 = vector.multi_reduction <maximumf>, %239, %cst_100 [1] : vector<8x10xf32> to vector<8xf32>
    %241 = vector.shape_cast %240 : vector<8xf32> to vector<8x1xf32>
    %242 = vector.broadcast %241 : vector<8x1xf32> to vector<8x10xf32>
    %243 = arith.subf %239, %242 : vector<8x10xf32>
    %244 = math.exp %243 : vector<8x10xf32>
    %cst_101 = arith.constant dense<0.000000e+00> : vector<8xf32>
    %245 = vector.multi_reduction <add>, %244, %cst_101 [1] : vector<8x10xf32> to vector<8xf32>
    %246 = vector.shape_cast %245 : vector<8xf32> to vector<8x1xf32>
    %247 = tpu.reciprocal %246 {approx = true} : vector<8x1xf32> -> vector<8x1xf32>
    %248 = vector.broadcast %247 : vector<8x1xf32> to vector<8x10xf32>
    %249 = arith.mulf %244, %248 : vector<8x10xf32>
    %cst_102 = arith.constant dense<0.000000e+00> : vector<8x8xf32>
    %250 = tpu.matmul %249, %232, %cst_102 {dimension_numbers = #tpu.dot_dimension_numbers<[1], [0], [0], [1], [0, 0, 1, 1], [], []>} : vector<8x10xf32>, vector<10x8xf32>, vector<8x8xf32> -> vector<8x8xf32>
    %251 = tpu.concatenate %187, %208, %229, %250 in 1 : vector<8x8xf32>, vector<8x8xf32>, vector<8x8xf32>, vector<8x8xf32> -> vector<8x32xf32>
    %c0_103 = arith.constant 0 : index
    %c0_104 = arith.constant 0 : index
    %252 = vector.load %arg15[%c0_103, %c0_104] : memref<32x32xf32, #tpu.memory_space<vmem>>, vector<32x32xf32>
    %cst_105 = arith.constant dense<0.000000e+00> : vector<8x32xf32>
    %253 = tpu.matmul %251, %252, %cst_105 {dimension_numbers = #tpu.dot_dimension_numbers<[1], [0], [0], [1], [0, 0, 1, 1], [], []>} : vector<8x32xf32>, vector<32x32xf32>, vector<8x32xf32> -> vector<8x32xf32>
    %c0_106 = arith.constant 0 : index
    %c0_107 = arith.constant 0 : index
    %254 = vector.load %arg16[%c0_106, %c0_107] : memref<1x32xf32, #tpu.memory_space<vmem>>, vector<1x32xf32>
    %255 = vector.broadcast %254 : vector<1x32xf32> to vector<8x32xf32>
    %256 = arith.addf %253, %255 : vector<8x32xf32>
    %257 = arith.addf %130, %256 : vector<8x32xf32>
    %c2 = arith.constant 2 : index
    %c0_108 = arith.constant 0 : index
    %258 = vector.load %arg5[%c2, %c0_108] : memref<3x32xf32, #tpu.memory_space<vmem>>, vector<1x32xf32>
    %c2_109 = arith.constant 2 : index
    %c0_110 = arith.constant 0 : index
    %259 = vector.load %arg6[%c2_109, %c0_110] : memref<3x32xf32, #tpu.memory_space<vmem>>, vector<1x32xf32>
    %cst_111 = arith.constant dense<0.000000e+00> : vector<8xf32>
    %260 = vector.multi_reduction <add>, %257, %cst_111 [1] : vector<8x32xf32> to vector<8xf32>
    %261 = vector.shape_cast %260 : vector<8xf32> to vector<8x1xf32>
    %cst_112 = arith.constant 3.200000e+01 : f32
    %262 = vector.broadcast %cst_112 : f32 to vector<8x1xf32>
    %263 = arith.divf %261, %262 : vector<8x1xf32>
    %264 = vector.broadcast %263 : vector<8x1xf32> to vector<8x32xf32>
    %265 = arith.subf %257, %264 : vector<8x32xf32>
    %266 = arith.mulf %265, %265 : vector<8x32xf32>
    %cst_113 = arith.constant dense<0.000000e+00> : vector<8xf32>
    %267 = vector.multi_reduction <add>, %266, %cst_113 [1] : vector<8x32xf32> to vector<8xf32>
    %268 = vector.shape_cast %267 : vector<8xf32> to vector<8x1xf32>
    %cst_114 = arith.constant 3.100000e+01 : f32
    %269 = vector.broadcast %cst_114 : f32 to vector<8x1xf32>
    %270 = arith.divf %268, %269 : vector<8x1xf32>
    %271 = math.sqrt %270 : vector<8x1xf32>
    %272 = vector.broadcast %263 : vector<8x1xf32> to vector<8x32xf32>
    %273 = arith.subf %257, %272 : vector<8x32xf32>
    %274 = vector.broadcast %258 : vector<1x32xf32> to vector<8x32xf32>
    %275 = arith.mulf %274, %273 : vector<8x32xf32>
    %cst_115 = arith.constant 9.99999997E-7 : f32
    %276 = vector.broadcast %cst_115 : f32 to vector<8x1xf32>
    %277 = arith.addf %271, %276 : vector<8x1xf32>
    %278 = vector.broadcast %277 : vector<8x1xf32> to vector<8x32xf32>
    %279 = arith.divf %275, %278 : vector<8x32xf32>
    %280 = vector.broadcast %259 : vector<1x32xf32> to vector<8x32xf32>
    %281 = arith.addf %279, %280 : vector<8x32xf32>
    %c0_116 = arith.constant 0 : index
    %c0_117 = arith.constant 0 : index
    %282 = vector.load %arg17[%c0_116, %c0_117] : memref<32x64xf32, #tpu.memory_space<vmem>>, vector<32x64xf32>
    %cst_118 = arith.constant dense<0.000000e+00> : vector<8x64xf32>
    %283 = tpu.matmul %281, %282, %cst_118 {dimension_numbers = #tpu.dot_dimension_numbers<[1], [0], [0], [1], [0, 0, 1, 1], [], []>} : vector<8x32xf32>, vector<32x64xf32>, vector<8x64xf32> -> vector<8x64xf32>
    %c0_119 = arith.constant 0 : index
    %c0_120 = arith.constant 0 : index
    %284 = vector.load %arg18[%c0_119, %c0_120] : memref<1x64xf32, #tpu.memory_space<vmem>>, vector<1x64xf32>
    %285 = vector.broadcast %284 : vector<1x64xf32> to vector<8x64xf32>
    %286 = arith.addf %283, %285 : vector<8x64xf32>
    %cst_121 = arith.constant 0.000000e+00 : f32
    %287 = vector.broadcast %cst_121 : f32 to vector<8x64xf32>
    %288 = arith.maximumf %286, %287 : vector<8x64xf32>
    %c0_122 = arith.constant 0 : index
    %c0_123 = arith.constant 0 : index
    %289 = vector.load %arg19[%c0_122, %c0_123] : memref<64x32xf32, #tpu.memory_space<vmem>>, vector<64x32xf32>
    %cst_124 = arith.constant dense<0.000000e+00> : vector<8x32xf32>
    %290 = tpu.matmul %288, %289, %cst_124 {dimension_numbers = #tpu.dot_dimension_numbers<[1], [0], [0], [1], [0, 0, 1, 1], [], []>} : vector<8x64xf32>, vector<64x32xf32>, vector<8x32xf32> -> vector<8x32xf32>
    %c0_125 = arith.constant 0 : index
    %c0_126 = arith.constant 0 : index
    %291 = vector.load %arg20[%c0_125, %c0_126] : memref<1x32xf32, #tpu.memory_space<vmem>>, vector<1x32xf32>
    %292 = vector.broadcast %291 : vector<1x32xf32> to vector<8x32xf32>
    %293 = arith.addf %290, %292 : vector<8x32xf32>
    %294 = arith.addf %257, %293 : vector<8x32xf32>
    %c0_127 = arith.constant 0 : index
    %c0_128 = arith.constant 0 : index
    %c0_129 = arith.constant 0 : index
    %295 = vector.load %arg21[%c0_127, %c0_128, %c0_129] : memref<1x8x32xf32, #tpu.memory_space<vmem>>, vector<1x8x32xf32>
    %296 = vector.shape_cast %295 : vector<1x8x32xf32> to vector<8x32xf32>
    %297 = vector.shape_cast %294 : vector<8x32xf32> to vector<1x8x32xf32>
    tpu.vector_store %arg21[%c0_127, %c0_128, %c0_129], %297 {strides = array<i32>} : memref<1x8x32xf32, #tpu.memory_space<vmem>>, vector<1x8x32xf32>,
    return
  }
  func.func @transform_0(%arg0: i32) -> (i32, i32, i32) {
    %c0_i32 = arith.constant 0 : i32
    %c0_i32_0 = arith.constant 0 : i32
    %c0_i32_1 = arith.constant 0 : i32
    return %arg0, %c0_i32, %c0_i32_0 : i32, i32, i32
  }
  func.func @transform_1(%arg0: i32) -> (i32, i32, i32) {
    %c0_i32 = arith.constant 0 : i32
    %c0_i32_0 = arith.constant 0 : i32
    %c0_i32_1 = arith.constant 0 : i32
    return %arg0, %c0_i32, %c0_i32_0 : i32, i32, i32
  }
  func.func @transform_2(%arg0: i32) -> (i32, i32, i32) {
    %c0_i32 = arith.constant 0 : i32
    %c0_i32_0 = arith.constant 0 : i32
    %c0_i32_1 = arith.constant 0 : i32
    return %arg0, %c0_i32, %c0_i32_0 : i32, i32, i32
  }
  func.func @transform_3(%arg0: i32) -> (i32, i32, i32) {
    %c0_i32 = arith.constant 0 : i32
    %c0_i32_0 = arith.constant 0 : i32
    %c0_i32_1 = arith.constant 0 : i32
    return %arg0, %c0_i32, %c0_i32_0 : i32, i32, i32
  }
  func.func @transform_4(%arg0: i32) -> (i32, i32) {
    %c0_i32 = arith.constant 0 : i32
    %c0_i32_0 = arith.constant 0 : i32
    %c0_i32_1 = arith.constant 0 : i32
    return %c0_i32, %c0_i32_0 : i32, i32
  }
  func.func @transform_5(%arg0: i32) -> (i32, i32) {
    %c0_i32 = arith.constant 0 : i32
    %c0_i32_0 = arith.constant 0 : i32
    %c0_i32_1 = arith.constant 0 : i32
    return %c0_i32, %c0_i32_0 : i32, i32
  }
  func.func @transform_6(%arg0: i32) -> (i32, i32) {
    %c0_i32 = arith.constant 0 : i32
    %c0_i32_0 = arith.constant 0 : i32
    %c0_i32_1 = arith.constant 0 : i32
    return %c0_i32, %c0_i32_0 : i32, i32
  }
  func.func @transform_7(%arg0: i32) -> (i32, i32) {
    %c0_i32 = arith.constant 0 : i32
    %c0_i32_0 = arith.constant 0 : i32
    %c0_i32_1 = arith.constant 0 : i32
    return %c0_i32, %c0_i32_0 : i32, i32
  }
  func.func @transform_8(%arg0: i32) -> (i32, i32) {
    %c0_i32 = arith.constant 0 : i32
    %c0_i32_0 = arith.constant 0 : i32
    %c0_i32_1 = arith.constant 0 : i32
    return %c0_i32, %c0_i32_0 : i32, i32
  }
  func.func @transform_9(%arg0: i32) -> (i32, i32) {
    %c0_i32 = arith.constant 0 : i32
    %c0_i32_0 = arith.constant 0 : i32
    %c0_i32_1 = arith.constant 0 : i32
    return %c0_i32, %c0_i32_0 : i32, i32
  }
  func.func @transform_10(%arg0: i32) -> (i32, i32) {
    %c0_i32 = arith.constant 0 : i32
    %c0_i32_0 = arith.constant 0 : i32
    %c0_i32_1 = arith.constant 0 : i32
    return %c0_i32, %c0_i32_0 : i32, i32
  }
  func.func @transform_11(%arg0: i32) -> (i32, i32) {
    %c0_i32 = arith.constant 0 : i32
    %c0_i32_0 = arith.constant 0 : i32
    %c0_i32_1 = arith.constant 0 : i32
    return %c0_i32, %c0_i32_0 : i32, i32
  }
  func.func @transform_12(%arg0: i32) -> (i32, i32) {
    %c0_i32 = arith.constant 0 : i32
    %c0_i32_0 = arith.constant 0 : i32
    %c0_i32_1 = arith.constant 0 : i32
    return %c0_i32, %c0_i32_0 : i32, i32
  }
  func.func @transform_13(%arg0: i32) -> (i32, i32) {
    %c0_i32 = arith.constant 0 : i32
    %c0_i32_0 = arith.constant 0 : i32
    %c0_i32_1 = arith.constant 0 : i32
    return %c0_i32, %c0_i32_0 : i32, i32
  }
  func.func @transform_14(%arg0: i32) -> (i32, i32) {
    %c0_i32 = arith.constant 0 : i32
    %c0_i32_0 = arith.constant 0 : i32
    %c0_i32_1 = arith.constant 0 : i32
    return %c0_i32, %c0_i32_0 : i32, i32
  }
  func.func @transform_15(%arg0: i32) -> (i32, i32) {
    %c0_i32 = arith.constant 0 : i32
    %c0_i32_0 = arith.constant 0 : i32
    %c0_i32_1 = arith.constant 0 : i32
    return %c0_i32, %c0_i32_0 : i32, i32
  }
  func.func @transform_16(%arg0: i32) -> (i32, i32) {
    %c0_i32 = arith.constant 0 : i32
    %c0_i32_0 = arith.constant 0 : i32
    %c0_i32_1 = arith.constant 0 : i32
    return %c0_i32, %c0_i32_0 : i32, i32
  }
  func.func @transform_17(%arg0: i32) -> (i32, i32) {
    %c0_i32 = arith.constant 0 : i32
    %c0_i32_0 = arith.constant 0 : i32
    %c0_i32_1 = arith.constant 0 : i32
    return %c0_i32, %c0_i32_0 : i32, i32
  }
  func.func @transform_18(%arg0: i32) -> (i32, i32) {
    %c0_i32 = arith.constant 0 : i32
    %c0_i32_0 = arith.constant 0 : i32
    %c0_i32_1 = arith.constant 0 : i32
    return %c0_i32, %c0_i32_0 : i32, i32
  }
  func.func @transform_19(%arg0: i32) -> (i32, i32) {
    %c0_i32 = arith.constant 0 : i32
    %c0_i32_0 = arith.constant 0 : i32
    %c0_i32_1 = arith.constant 0 : i32
    return %c0_i32, %c0_i32_0 : i32, i32
  }
  func.func @transform_20(%arg0: i32) -> (i32, i32, i32) {
    %c0_i32 = arith.constant 0 : i32
    %c0_i32_0 = arith.constant 0 : i32
    %c0_i32_1 = arith.constant 0 : i32
    return %arg0, %c0_i32, %c0_i32_0 : i32, i32, i32
  }
}

</mosaic_0001>

<llo_original>
// kernel: decoder_layer.1
$region0: #{decoder_layer.1}
  #allocation0 [shape = 'u32[]', space=smem, size = 0x4, offset = 0x4, fixed_abs, tag = 'smem constant byte address 0x4 - core index']
  #allocation1 [shape = 'u32[144,128]{1,0:T(1,128)}', space=vmem, size = 0x12000, scoped, tag = 'internal scratch']
  %s0 = inlined_call_operand.vmem [shape: f32[2,8,32], index: 0, kind: input, shape index: {}]
  %s1 = inlined_call_operand.vmem [shape: f32[2,10,32], index: 1, kind: input, shape index: {}]
  %s2 = inlined_call_operand.vmem [shape: f32[2,8,8], index: 2, kind: input, shape index: {}]
  %s3 = inlined_call_operand.vmem [shape: f32[2,8,10], index: 3, kind: input, shape index: {}]
  %s4 = inlined_call_operand.vmem [shape: f32[3,32], index: 4, kind: input, shape index: {}]
  %s5 = inlined_call_operand.vmem [shape: f32[3,32], index: 5, kind: input, shape index: {}]
  %s6 = inlined_call_operand.vmem [shape: f32[32,96], index: 6, kind: input, shape index: {}]
  %s7 = inlined_call_operand.vmem [shape: f32[1,96], index: 7, kind: input, shape index: {}]
  %s8 = inlined_call_operand.vmem [shape: f32[32,32], index: 8, kind: input, shape index: {}]
  %s9 = inlined_call_operand.vmem [shape: f32[1,32], index: 9, kind: input, shape index: {}]
  %s10 = inlined_call_operand.vmem [shape: f32[32,32], index: 10, kind: input, shape index: {}]
  %s11 = inlined_call_operand.vmem [shape: f32[1,32], index: 11, kind: input, shape index: {}]
  %s12 = inlined_call_operand.vmem [shape: f32[32,64], index: 12, kind: input, shape index: {}]
  %s13 = inlined_call_operand.vmem [shape: f32[1,64], index: 13, kind: input, shape index: {}]
  %s14 = inlined_call_operand.vmem [shape: f32[32,32], index: 14, kind: input, shape index: {}]
  %s15 = inlined_call_operand.vmem [shape: f32[1,32], index: 15, kind: input, shape index: {}]
  %s16 = inlined_call_operand.vmem [shape: f32[32,64], index: 16, kind: input, shape index: {}]
  %s17 = inlined_call_operand.vmem [shape: f32[1,64], index: 17, kind: input, shape index: {}]
  %s18 = inlined_call_operand.vmem [shape: f32[64,32], index: 18, kind: input, shape index: {}]
  %s19 = inlined_call_operand.vmem [shape: f32[1,32], index: 19, kind: input, shape index: {}]
  %s20 = inlined_call_operand.hbm [shape: f32[2,8,32], index: 20, kind: output, shape index: {}]
  %s21 = sld [smem:[#allocation0]]
  $region113: #{decoder_layer.1} parent=0
    _
  %s23 = ssub.s32 1, %s21
  %s24 = scalar_select 0, %s23, %s21
  $region1: #{decoder_layer.1} parent=0
    #allocation2 [shape = 'u8[8192]{0}', space=vmem, size = 0x2000, scoped, tag = 'output window, operand 0']
    #allocation3 [shape = 's32[2]{0}', space=sflag, size = 0x8, scoped, tag = 'scoped memory for decoder_layer.1']
    %25 = vsyncpa [#allocation3], 0
    %s26 = scalar_lea.sflag [#allocation3], 1
    %27 = vsyncpa %s26, 0
    loop: start=0, step=1, limit=4
    $region2: #{decoder_layer.1} parent=1 // loop_pre_header
      _
    $region3: #{decoder_layer.1} parent=1 // loop_header
      %s29 = sphi 0, %s33
      %p30 = scmp.ge.s32.totalorder %s29, 4
      %s39 = sphi 0, %s41
      %s42 = sphi 0, %s39
      %s43 = sphi 0, %s42
      %s59 = sphi 0, %s43
      %s65 = sphi 0, %s67
      %s68 = sphi 0, %s65
      %s69 = sphi 0, %s68
      %s85 = sphi 0, %s69
      %s91 = sphi 0, %s93
      %s94 = sphi 0, %s91
      %s95 = sphi 0, %s94
      %s111 = sphi 0, %s95
      %s117 = sphi 0, %s119
      %s120 = sphi 0, %s117
      %s121 = sphi 0, %s120
      %s137 = sphi 0, %s121
      %s141 = sphi 0, %s141
      %s143 = sphi 0, %s141
      %s144 = sphi 0, %s143
      %s158 = sphi 0, %s144
      %s162 = sphi 0, %s162
      %s164 = sphi 0, %s162
      %s165 = sphi 0, %s164
      %s179 = sphi 0, %s165
      %s183 = sphi 0, %s183
      %s185 = sphi 0, %s183
      %s186 = sphi 0, %s185
      %s200 = sphi 0, %s186
      %s204 = sphi 0, %s204
      %s206 = sphi 0, %s204
      %s207 = sphi 0, %s206
      %s221 = sphi 0, %s207
      %s225 = sphi 0, %s225
      %s227 = sphi 0, %s225
      %s228 = sphi 0, %s227
      %s242 = sphi 0, %s228
      %s246 = sphi 0, %s246
      %s248 = sphi 0, %s246
      %s249 = sphi 0, %s248
      %s263 = sphi 0, %s249
      %s267 = sphi 0, %s267
      %s269 = sphi 0, %s267
      %s270 = sphi 0, %s269
      %s284 = sphi 0, %s270
      %s288 = sphi 0, %s288
      %s290 = sphi 0, %s288
      %s291 = sphi 0, %s290
      %s305 = sphi 0, %s291
      %s309 = sphi 0, %s309
      %s311 = sphi 0, %s309
      %s312 = sphi 0, %s311
      %s326 = sphi 0, %s312
      %s330 = sphi 0, %s330
      %s332 = sphi 0, %s330
      %s333 = sphi 0, %s332
      %s347 = sphi 0, %s333
      %s351 = sphi 0, %s351
      %s353 = sphi 0, %s351
      %s354 = sphi 0, %s353
      %s368 = sphi 0, %s354
      %s372 = sphi 0, %s372
      %s374 = sphi 0, %s372
      %s375 = sphi 0, %s374
      %s389 = sphi 0, %s375
      %s393 = sphi 0, %s393
      %s395 = sphi 0, %s393
      %s396 = sphi 0, %s395
      %s410 = sphi 0, %s396
      %s414 = sphi 0, %s414
      %s416 = sphi 0, %s414
      %s417 = sphi 0, %s416
      %s431 = sphi 0, %s417
      %s435 = sphi 0, %s435
      %s437 = sphi 0, %s435
      %s438 = sphi 0, %s437
      %s452 = sphi 0, %s438
      %s456 = sphi 0, %s456
      %s458 = sphi 0, %s456
      %s459 = sphi 0, %s458
      %s473 = sphi 0, %s459
      %s479 = sphi 0, %s481
      %s482 = sphi 0, %s479
      %s483 = sphi 0, %s482
      %s499 = sphi 0, %s483
    $region4: #{decoder_layer.1} parent=1 // loop_header_branch
      %32 = sbr.rel (%p30) target = $region8
    $region5: #{decoder_layer.1} parent=1 // loop_body
      %s34 = ssub.s32 %s29, 1
      %s35 = ssub.s32 %s29, 2
      %s36 = sadd.s32 %s29, 1
      %s37 = ssub.s32 %s29, %s36
      %p38 = scmp.eq.s32.totalorder %s37, 0
      %s40 = sadd.s32 %s39, 1
      %s41 = scalar_select %p38, %s39, %s40
      %p44 = pneg %p38
      %p45 = scmp.eq.s32.totalorder %s29, 1
      %p46 = por %p44, %p45
      %p47 = scmp.ne.s32.totalorder %s39, %s42
      %p48 = scmp.eq.s32.totalorder %s29, 0
      %p49 = por %p47, %p48
      %p50 = scmp.ne.s32.totalorder %s39, %s42
      %p51 = scmp.eq.s32.totalorder %s34, 1
      %p52 = por %p50, %p51
      %p53 = scmp.ne.s32.totalorder %s42, %s43
      %p54 = scmp.eq.s32.totalorder %s34, 0
      %p55 = por %p53, %p54
      %p56 = scmp.ne.s32.totalorder %s42, %s43
      %p57 = scmp.eq.s32.totalorder %s35, 1
      %p58 = por %p56, %p57
      %p60 = scmp.ne.s32.totalorder %s43, %s59
      %p61 = scmp.eq.s32.totalorder %s35, 0
      %p62 = por %p60, %p61
      %s63 = ssub.s32 %s29, %s36
      %p64 = scmp.eq.s32.totalorder %s63, 0
      %s66 = sadd.s32 %s65, 1
      %s67 = scalar_select %p64, %s65, %s66
      %p70 = pneg %p64
      %p71 = scmp.eq.s32.totalorder %s29, 1
      %p72 = por %p70, %p71
      %p73 = scmp.ne.s32.totalorder %s65, %s68
      %p74 = scmp.eq.s32.totalorder %s29, 0
      %p75 = por %p73, %p74
      %p76 = scmp.ne.s32.totalorder %s65, %s68
      %p77 = scmp.eq.s32.totalorder %s34, 1
      %p78 = por %p76, %p77
      %p79 = scmp.ne.s32.totalorder %s68, %s69
      %p80 = scmp.eq.s32.totalorder %s34, 0
      %p81 = por %p79, %p80
      %p82 = scmp.ne.s32.totalorder %s68, %s69
      %p83 = scmp.eq.s32.totalorder %s35, 1
      %p84 = por %p82, %p83
      %p86 = scmp.ne.s32.totalorder %s69, %s85
      %p87 = scmp.eq.s32.totalorder %s35, 0
      %p88 = por %p86, %p87
      %s89 = ssub.s32 %s29, %s36
      %p90 = scmp.eq.s32.totalorder %s89, 0
      %s92 = sadd.s32 %s91, 1
      %s93 = scalar_select %p90, %s91, %s92
      %p96 = pneg %p90
      %p97 = scmp.eq.s32.totalorder %s29, 1
      %p98 = por %p96, %p97
      %p99 = scmp.ne.s32.totalorder %s91, %s94
      %p100 = scmp.eq.s32.totalorder %s29, 0
      %p101 = por %p99, %p100
      %p102 = scmp.ne.s32.totalorder %s91, %s94
      %p103 = scmp.eq.s32.totalorder %s34, 1
      %p104 = por %p102, %p103
      %p105 = scmp.ne.s32.totalorder %s94, %s95
      %p106 = scmp.eq.s32.totalorder %s34, 0
      %p107 = por %p105, %p106
      %p108 = scmp.ne.s32.totalorder %s94, %s95
      %p109 = scmp.eq.s32.totalorder %s35, 1
      %p110 = por %p108, %p109
      %p112 = scmp.ne.s32.totalorder %s95, %s111
      %p113 = scmp.eq.s32.totalorder %s35, 0
      %p114 = por %p112, %p113
      %s115 = ssub.s32 %s29, %s36
      %p116 = scmp.eq.s32.totalorder %s115, 0
      %s118 = sadd.s32 %s117, 1
      %s119 = scalar_select %p116, %s117, %s118
      %p122 = pneg %p116
      %p123 = scmp.eq.s32.totalorder %s29, 1
      %p124 = por %p122, %p123
      %p125 = scmp.ne.s32.totalorder %s117, %s120
      %p126 = scmp.eq.s32.totalorder %s29, 0
      %p127 = por %p125, %p126
      %p128 = scmp.ne.s32.totalorder %s117, %s120
      %p129 = scmp.eq.s32.totalorder %s34, 1
      %p130 = por %p128, %p129
      %p131 = scmp.ne.s32.totalorder %s120, %s121
      %p132 = scmp.eq.s32.totalorder %s34, 0
      %p133 = por %p131, %p132
      %p134 = scmp.ne.s32.totalorder %s120, %s121
      %p135 = scmp.eq.s32.totalorder %s35, 1
      %p136 = por %p134, %p135
      %p138 = scmp.ne.s32.totalorder %s121, %s137
      %p139 = scmp.eq.s32.totalorder %s35, 0
      %p140 = por %p138, %p139
      %s142 = sadd.s32 %s141, 1
      %p145 = scmp.eq.s32.totalorder %s29, 1
      %p146 = scmp.ne.s32.totalorder %s141, %s143
      %p147 = scmp.eq.s32.totalorder %s29, 0
      %p148 = por %p146, %p147
      %p149 = scmp.ne.s32.totalorder %s141, %s143
      %p150 = scmp.eq.s32.totalorder %s34, 1
      %p151 = por %p149, %p150
      %p152 = scmp.ne.s32.totalorder %s143, %s144
      %p153 = scmp.eq.s32.totalorder %s34, 0
      %p154 = por %p152, %p153
      %p155 = scmp.ne.s32.totalorder %s143, %s144
      %p156 = scmp.eq.s32.totalorder %s35, 1
      %p157 = por %p155, %p156
      %p159 = scmp.ne.s32.totalorder %s144, %s158
      %p160 = scmp.eq.s32.totalorder %s35, 0
      %p161 = por %p159, %p160
      %s163 = sadd.s32 %s162, 1
      %p166 = scmp.eq.s32.totalorder %s29, 1
      %p167 = scmp.ne.s32.totalorder %s162, %s164
      %p168 = scmp.eq.s32.totalorder %s29, 0
      %p169 = por %p167, %p168
      %p170 = scmp.ne.s32.totalorder %s162, %s164
      %p171 = scmp.eq.s32.totalorder %s34, 1
      %p172 = por %p170, %p171
      %p173 = scmp.ne.s32.totalorder %s164, %s165
      %p174 = scmp.eq.s32.totalorder %s34, 0
      %p175 = por %p173, %p174
      %p176 = scmp.ne.s32.totalorder %s164, %s165
      %p177 = scmp.eq.s32.totalorder %s35, 1
      %p178 = por %p176, %p177
      %p180 = scmp.ne.s32.totalorder %s165, %s179
      %p181 = scmp.eq.s32.totalorder %s35, 0
      %p182 = por %p180, %p181
      %s184 = sadd.s32 %s183, 1
      %p187 = scmp.eq.s32.totalorder %s29, 1
      %p188 = scmp.ne.s32.totalorder %s183, %s185
      %p189 = scmp.eq.s32.totalorder %s29, 0
      %p190 = por %p188, %p189
      %p191 = scmp.ne.s32.totalorder %s183, %s185
      %p192 = scmp.eq.s32.totalorder %s34, 1
      %p193 = por %p191, %p192
      %p194 = scmp.ne.s32.totalorder %s185, %s186
      %p195 = scmp.eq.s32.totalorder %s34, 0
      %p196 = por %p194, %p195
      %p197 = scmp.ne.s32.totalorder %s185, %s186
      %p198 = scmp.eq.s32.totalorder %s35, 1
      %p199 = por %p197, %p198
      %p201 = scmp.ne.s32.totalorder %s186, %s200
      %p202 = scmp.eq.s32.totalorder %s35, 0
      %p203 = por %p201, %p202
      %s205 = sadd.s32 %s204, 1
      %p208 = scmp.eq.s32.totalorder %s29, 1
      %p209 = scmp.ne.s32.totalorder %s204, %s206
      %p210 = scmp.eq.s32.totalorder %s29, 0
      %p211 = por %p209, %p210
      %p212 = scmp.ne.s32.totalorder %s204, %s206
      %p213 = scmp.eq.s32.totalorder %s34, 1
      %p214 = por %p212, %p213
      %p215 = scmp.ne.s32.totalorder %s206, %s207
      %p216 = scmp.eq.s32.totalorder %s34, 0
      %p217 = por %p215, %p216
      %p218 = scmp.ne.s32.totalorder %s206, %s207
      %p219 = scmp.eq.s32.totalorder %s35, 1
      %p220 = por %p218, %p219
      %p222 = scmp.ne.s32.totalorder %s207, %s221
      %p223 = scmp.eq.s32.totalorder %s35, 0
      %p224 = por %p222, %p223
      %s226 = sadd.s32 %s225, 1
      %p229 = scmp.eq.s32.totalorder %s29, 1
      %p230 = scmp.ne.s32.totalorder %s225, %s227
      %p231 = scmp.eq.s32.totalorder %s29, 0
      %p232 = por %p230, %p231
      %p233 = scmp.ne.s32.totalorder %s225, %s227
      %p234 = scmp.eq.s32.totalorder %s34, 1
      %p235 = por %p233, %p234
      %p236 = scmp.ne.s32.totalorder %s227, %s228
      %p237 = scmp.eq.s32.totalorder %s34, 0
      %p238 = por %p236, %p237
      %p239 = scmp.ne.s32.totalorder %s227, %s228
      %p240 = scmp.eq.s32.totalorder %s35, 1
      %p241 = por %p239, %p240
      %p243 = scmp.ne.s32.totalorder %s228, %s242
      %p244 = scmp.eq.s32.totalorder %s35, 0
      %p245 = por %p243, %p244
      %s247 = sadd.s32 %s246, 1
      %p250 = scmp.eq.s32.totalorder %s29, 1
      %p251 = scmp.ne.s32.totalorder %s246, %s248
      %p252 = scmp.eq.s32.totalorder %s29, 0
      %p253 = por %p251, %p252
      %p254 = scmp.ne.s32.totalorder %s246, %s248
      %p255 = scmp.eq.s32.totalorder %s34, 1
      %p256 = por %p254, %p255
      %p257 = scmp.ne.s32.totalorder %s248, %s249
      %p258 = scmp.eq.s32.totalorder %s34, 0
      %p259 = por %p257, %p258
      %p260 = scmp.ne.s32.totalorder %s248, %s249
      %p261 = scmp.eq.s32.totalorder %s35, 1
      %p262 = por %p260, %p261
      %p264 = scmp.ne.s32.totalorder %s249, %s263
      %p265 = scmp.eq.s32.totalorder %s35, 0
      %p266 = por %p264, %p265
      %s268 = sadd.s32 %s267, 1
      %p271 = scmp.eq.s32.totalorder %s29, 1
      %p272 = scmp.ne.s32.totalorder %s267, %s269
      %p273 = scmp.eq.s32.totalorder %s29, 0
      %p274 = por %p272, %p273
      %p275 = scmp.ne.s32.totalorder %s267, %s269
      %p276 = scmp.eq.s32.totalorder %s34, 1
      %p277 = por %p275, %p276
      %p278 = scmp.ne.s32.totalorder %s269, %s270
      %p279 = scmp.eq.s32.totalorder %s34, 0
      %p280 = por %p278, %p279
      %p281 = scmp.ne.s32.totalorder %s269, %s270
      %p282 = scmp.eq.s32.totalorder %s35, 1
      %p283 = por %p281, %p282
      %p285 = scmp.ne.s32.totalorder %s270, %s284
      %p286 = scmp.eq.s32.totalorder %s35, 0
      %p287 = por %p285, %p286
      %s289 = sadd.s32 %s288, 1
      %p292 = scmp.eq.s32.totalorder %s29, 1
      %p293 = scmp.ne.s32.totalorder %s288, %s290
      %p294 = scmp.eq.s32.totalorder %s29, 0
      %p295 = por %p293, %p294
      %p296 = scmp.ne.s32.totalorder %s288, %s290
      %p297 = scmp.eq.s32.totalorder %s34, 1
      %p298 = por %p296, %p297
      %p299 = scmp.ne.s32.totalorder %s290, %s291
      %p300 = scmp.eq.s32.totalorder %s34, 0
      %p301 = por %p299, %p300
      %p302 = scmp.ne.s32.totalorder %s290, %s291
      %p303 = scmp.eq.s32.totalorder %s35, 1
      %p304 = por %p302, %p303
      %p306 = scmp.ne.s32.totalorder %s291, %s305
      %p307 = scmp.eq.s32.totalorder %s35, 0
      %p308 = por %p306, %p307
      %s310 = sadd.s32 %s309, 1
      %p313 = scmp.eq.s32.totalorder %s29, 1
      %p314 = scmp.ne.s32.totalorder %s309, %s311
      %p315 = scmp.eq.s32.totalorder %s29, 0
      %p316 = por %p314, %p315
      %p317 = scmp.ne.s32.totalorder %s309, %s311
      %p318 = scmp.eq.s32.totalorder %s34, 1
      %p319 = por %p317, %p318
      %p320 = scmp.ne.s32.totalorder %s311, %s312
      %p321 = scmp.eq.s32.totalorder %s34, 0
      %p322 = por %p320, %p321
      %p323 = scmp.ne.s32.totalorder %s311, %s312
      %p324 = scmp.eq.s32.totalorder %s35, 1
      %p325 = por %p323, %p324
      %p327 = scmp.ne.s32.totalorder %s312, %s326
      %p328 = scmp.eq.s32.totalorder %s35, 0
      %p329 = por %p327, %p328
      %s331 = sadd.s32 %s330, 1
      %p334 = scmp.eq.s32.totalorder %s29, 1
      %p335 = scmp.ne.s32.totalorder %s330, %s332
      %p336 = scmp.eq.s32.totalorder %s29, 0
      %p337 = por %p335, %p336
      %p338 = scmp.ne.s32.totalorder %s330, %s332
      %p339 = scmp.eq.s32.totalorder %s34, 1
      %p340 = por %p338, %p339
      %p341 = scmp.ne.s32.totalorder %s332, %s333
      %p342 = scmp.eq.s32.totalorder %s34, 0
      %p343 = por %p341, %p342
      %p344 = scmp.ne.s32.totalorder %s332, %s333
      %p345 = scmp.eq.s32.totalorder %s35, 1
      %p346 = por %p344, %p345
      %p348 = scmp.ne.s32.totalorder %s333, %s347
      %p349 = scmp.eq.s32.totalorder %s35, 0
      %p350 = por %p348, %p349
      %s352 = sadd.s32 %s351, 1
      %p355 = scmp.eq.s32.totalorder %s29, 1
      %p356 = scmp.ne.s32.totalorder %s351, %s353
      %p357 = scmp.eq.s32.totalorder %s29, 0
      %p358 = por %p356, %p357
      %p359 = scmp.ne.s32.totalorder %s351, %s353
      %p360 = scmp.eq.s32.totalorder %s34, 1
      %p361 = por %p359, %p360
      %p362 = scmp.ne.s32.totalorder %s353, %s354
      %p363 = scmp.eq.s32.totalorder %s34, 0
      %p364 = por %p362, %p363
      %p365 = scmp.ne.s32.totalorder %s353, %s354
      %p366 = scmp.eq.s32.totalorder %s35, 1
      %p367 = por %p365, %p366
      %p369 = scmp.ne.s32.totalorder %s354, %s368
      %p370 = scmp.eq.s32.totalorder %s35, 0
      %p371 = por %p369, %p370
      %s373 = sadd.s32 %s372, 1
      %p376 = scmp.eq.s32.totalorder %s29, 1
      %p377 = scmp.ne.s32.totalorder %s372, %s374
      %p378 = scmp.eq.s32.totalorder %s29, 0
      %p379 = por %p377, %p378
      %p380 = scmp.ne.s32.totalorder %s372, %s374
      %p381 = scmp.eq.s32.totalorder %s34, 1
      %p382 = por %p380, %p381
      %p383 = scmp.ne.s32.totalorder %s374, %s375
      %p384 = scmp.eq.s32.totalorder %s34, 0
      %p385 = por %p383, %p384
      %p386 = scmp.ne.s32.totalorder %s374, %s375
      %p387 = scmp.eq.s32.totalorder %s35, 1
      %p388 = por %p386, %p387
      %p390 = scmp.ne.s32.totalorder %s375, %s389
      %p391 = scmp.eq.s32.totalorder %s35, 0
      %p392 = por %p390, %p391
      %s394 = sadd.s32 %s393, 1
      %p397 = scmp.eq.s32.totalorder %s29, 1
      %p398 = scmp.ne.s32.totalorder %s393, %s395
      %p399 = scmp.eq.s32.totalorder %s29, 0
      %p400 = por %p398, %p399
      %p401 = scmp.ne.s32.totalorder %s393, %s395
      %p402 = scmp.eq.s32.totalorder %s34, 1
      %p403 = por %p401, %p402
      %p404 = scmp.ne.s32.totalorder %s395, %s396
      %p405 = scmp.eq.s32.totalorder %s34, 0
      %p406 = por %p404, %p405
      %p407 = scmp.ne.s32.totalorder %s395, %s396
      %p408 = scmp.eq.s32.totalorder %s35, 1
      %p409 = por %p407, %p408
      %p411 = scmp.ne.s32.totalorder %s396, %s410
      %p412 = scmp.eq.s32.totalorder %s35, 0
      %p413 = por %p411, %p412
      %s415 = sadd.s32 %s414, 1
      %p418 = scmp.eq.s32.totalorder %s29, 1
      %p419 = scmp.ne.s32.totalorder %s414, %s416
      %p420 = scmp.eq.s32.totalorder %s29, 0
      %p421 = por %p419, %p420
      %p422 = scmp.ne.s32.totalorder %s414, %s416
      %p423 = scmp.eq.s32.totalorder %s34, 1
      %p424 = por %p422, %p423
      %p425 = scmp.ne.s32.totalorder %s416, %s417
      %p426 = scmp.eq.s32.totalorder %s34, 0
      %p427 = por %p425, %p426
      %p428 = scmp.ne.s32.totalorder %s416, %s417
      %p429 = scmp.eq.s32.totalorder %s35, 1
      %p430 = por %p428, %p429
      %p432 = scmp.ne.s32.totalorder %s417, %s431
      %p433 = scmp.eq.s32.totalorder %s35, 0
      %p434 = por %p432, %p433
      %s436 = sadd.s32 %s435, 1
      %p439 = scmp.eq.s32.totalorder %s29, 1
      %p440 = scmp.ne.s32.totalorder %s435, %s437
      %p441 = scmp.eq.s32.totalorder %s29, 0
      %p442 = por %p440, %p441
      %p443 = scmp.ne.s32.totalorder %s435, %s437
      %p444 = scmp.eq.s32.totalorder %s34, 1
      %p445 = por %p443, %p444
      %p446 = scmp.ne.s32.totalorder %s437, %s438
      %p447 = scmp.eq.s32.totalorder %s34, 0
      %p448 = por %p446, %p447
      %p449 = scmp.ne.s32.totalorder %s437, %s438
      %p450 = scmp.eq.s32.totalorder %s35, 1
      %p451 = por %p449, %p450
      %p453 = scmp.ne.s32.totalorder %s438, %s452
      %p454 = scmp.eq.s32.totalorder %s35, 0
      %p455 = por %p453, %p454
      %s457 = sadd.s32 %s456, 1
      %p460 = scmp.eq.s32.totalorder %s29, 1
      %p461 = scmp.ne.s32.totalorder %s456, %s458
      %p462 = scmp.eq.s32.totalorder %s29, 0
      %p463 = por %p461, %p462
      %p464 = scmp.ne.s32.totalorder %s456, %s458
      %p465 = scmp.eq.s32.totalorder %s34, 1
      %p466 = por %p464, %p465
      %p467 = scmp.ne.s32.totalorder %s458, %s459
      %p468 = scmp.eq.s32.totalorder %s34, 0
      %p469 = por %p467, %p468
      %p470 = scmp.ne.s32.totalorder %s458, %s459
      %p471 = scmp.eq.s32.totalorder %s35, 1
      %p472 = por %p470, %p471
      %p474 = scmp.ne.s32.totalorder %s459, %s473
      %p475 = scmp.eq.s32.totalorder %s35, 0
      %p476 = por %p474, %p475
      %s477 = ssub.s32 %s29, %s36
      %p478 = scmp.eq.s32.totalorder %s477, 0
      %s480 = sadd.s32 %s479, 1
      %s481 = scalar_select %p478, %s479, %s480
      %p484 = pneg %p478
      %p485 = scmp.eq.s32.totalorder %s29, 1
      %p486 = por %p484, %p485
      %p487 = scmp.ne.s32.totalorder %s479, %s482
      %p488 = scmp.eq.s32.totalorder %s29, 0
      %p489 = por %p487, %p488
      %p490 = scmp.ne.s32.totalorder %s479, %s482
      %p491 = scmp.eq.s32.totalorder %s34, 1
      %p492 = por %p490, %p491
      %p493 = scmp.ne.s32.totalorder %s482, %s483
      %p494 = scmp.eq.s32.totalorder %s34, 0
      %p495 = por %p493, %p494
      %p496 = scmp.ne.s32.totalorder %s482, %s483
      %p497 = scmp.eq.s32.totalorder %s35, 1
      %p498 = por %p496, %p497
      %p500 = scmp.ne.s32.totalorder %s483, %s499
      %p501 = scmp.eq.s32.totalorder %s35, 0
      %p502 = por %p500, %p501
      %p503 = scmp.le.s32.totalorder 1, %s29
      %p504 = scmp.lt.s32.totalorder %s29, 3
      %p505 = pnand %p503, %p504
      %p506 = pneg %p505
      // Predicated region
      $region9: #{decoder_layer.1} parent=5 // pred_check
        _
      $region10: #{decoder_layer.1} parent=5 // pred_check_branch
        %508 = sbr.rel (%p505) target = $region12
      $region11: #{decoder_layer.1} parent=5 // pred_region
        %s509 = ssub.s32 %s29, 1
        // Predicated region
        $region13: #{decoder_layer.1} parent=11 // pred_check
          %p510 = pneg %p154
        $region14: #{decoder_layer.1} parent=11 // pred_check_branch
          %512 = sbr.rel (%p510) target = $region16
        $region15: #{decoder_layer.1} parent=11 // pred_region
          _
        $region16: #{decoder_layer.1} parent=11 // pred_fallthru
          _
        // Predicated region
        $region17: #{decoder_layer.1} parent=11 // pred_check
          %p513 = pneg %p175
        $region18: #{decoder_layer.1} parent=11 // pred_check_branch
          %515 = sbr.rel (%p513) target = $region20
        $region19: #{decoder_layer.1} parent=11 // pred_region
          _
        $region20: #{decoder_layer.1} parent=11 // pred_fallthru
          _
        // Predicated region
        $region21: #{decoder_layer.1} parent=11 // pred_check
          %p516 = pneg %p196
        $region22: #{decoder_layer.1} parent=11 // pred_check_branch
          %518 = sbr.rel (%p516) target = $region24
        $region23: #{decoder_layer.1} parent=11 // pred_region
          _
        $region24: #{decoder_layer.1} parent=11 // pred_fallthru
          _
        // Predicated region
        $region25: #{decoder_layer.1} parent=11 // pred_check
          %p519 = pneg %p217
        $region26: #{decoder_layer.1} parent=11 // pred_check_branch
          %521 = sbr.rel (%p519) target = $region28
        $region27: #{decoder_layer.1} parent=11 // pred_region
          _
        $region28: #{decoder_layer.1} parent=11 // pred_fallthru
          _
        // Predicated region
        $region29: #{decoder_layer.1} parent=11 // pred_check
          %p522 = pneg %p238
        $region30: #{decoder_layer.1} parent=11 // pred_check_branch
          %524 = sbr.rel (%p522) target = $region32
        $region31: #{decoder_layer.1} parent=11 // pred_region
          _
        $region32: #{decoder_layer.1} parent=11 // pred_fallthru
          _
        // Predicated region
        $region33: #{decoder_layer.1} parent=11 // pred_check
          %p525 = pneg %p259
        $region34: #{decoder_layer.1} parent=11 // pred_check_branch
          %527 = sbr.rel (%p525) target = $region36
        $region35: #{decoder_layer.1} parent=11 // pred_region
          _
        $region36: #{decoder_layer.1} parent=11 // pred_fallthru
          _
        // Predicated region
        $region37: #{decoder_layer.1} parent=11 // pred_check
          %p528 = pneg %p280
        $region38: #{decoder_layer.1} parent=11 // pred_check_branch
          %530 = sbr.rel (%p528) target = $region40
        $region39: #{decoder_layer.1} parent=11 // pred_region
          _
        $region40: #{decoder_layer.1} parent=11 // pred_fallthru
          _
        // Predicated region
        $region41: #{decoder_layer.1} parent=11 // pred_check
          %p531 = pneg %p301
        $region42: #{decoder_layer.1} parent=11 // pred_check_branch
          %533 = sbr.rel (%p531) target = $region44
        $region43: #{decoder_layer.1} parent=11 // pred_region
          _
        $region44: #{decoder_layer.1} parent=11 // pred_fallthru
          _
        // Predicated region
        $region45: #{decoder_layer.1} parent=11 // pred_check
          %p534 = pneg %p322
        $region46: #{decoder_layer.1} parent=11 // pred_check_branch
          %536 = sbr.rel (%p534) target = $region48
        $region47: #{decoder_layer.1} parent=11 // pred_region
          _
        $region48: #{decoder_layer.1} parent=11 // pred_fallthru
          _
        // Predicated region
        $region49: #{decoder_layer.1} parent=11 // pred_check
          %p537 = pneg %p343
        $region50: #{decoder_layer.1} parent=11 // pred_check_branch
          %539 = sbr.rel (%p537) target = $region52
        $region51: #{decoder_layer.1} parent=11 // pred_region
          _
        $region52: #{decoder_layer.1} parent=11 // pred_fallthru
          _
        // Predicated region
        $region53: #{decoder_layer.1} parent=11 // pred_check
          %p540 = pneg %p364
        $region54: #{decoder_layer.1} parent=11 // pred_check_branch
          %542 = sbr.rel (%p540) target = $region56
        $region55: #{decoder_layer.1} parent=11 // pred_region
          _
        $region56: #{decoder_layer.1} parent=11 // pred_fallthru
          _
        // Predicated region
        $region57: #{decoder_layer.1} parent=11 // pred_check
          %p543 = pneg %p385
        $region58: #{decoder_layer.1} parent=11 // pred_check_branch
          %545 = sbr.rel (%p543) target = $region60
        $region59: #{decoder_layer.1} parent=11 // pred_region
          _
        $region60: #{decoder_layer.1} parent=11 // pred_fallthru
          _
        // Predicated region
        $region61: #{decoder_layer.1} parent=11 // pred_check
          %p546 = pneg %p406
        $region62: #{decoder_layer.1} parent=11 // pred_check_branch
          %548 = sbr.rel (%p546) target = $region64
        $region63: #{decoder_layer.1} parent=11 // pred_region
          _
        $region64: #{decoder_layer.1} parent=11 // pred_fallthru
          _
        // Predicated region
        $region65: #{decoder_layer.1} parent=11 // pred_check
          %p549 = pneg %p427
        $region66: #{decoder_layer.1} parent=11 // pred_check_branch
          %551 = sbr.rel (%p549) target = $region68
        $region67: #{decoder_layer.1} parent=11 // pred_region
          _
        $region68: #{decoder_layer.1} parent=11 // pred_fallthru
          _
        // Predicated region
        $region69: #{decoder_layer.1} parent=11 // pred_check
          %p552 = pneg %p448
        $region70: #{decoder_layer.1} parent=11 // pred_check_branch
          %554 = sbr.rel (%p552) target = $region72
        $region71: #{decoder_layer.1} parent=11 // pred_region
          _
        $region72: #{decoder_layer.1} parent=11 // pred_fallthru
          _
        // Predicated region
        $region73: #{decoder_layer.1} parent=11 // pred_check
          %p555 = pneg %p469
        $region74: #{decoder_layer.1} parent=11 // pred_check_branch
          %557 = sbr.rel (%p555) target = $region76
        $region75: #{decoder_layer.1} parent=11 // pred_region
          _
        $region76: #{decoder_layer.1} parent=11 // pred_fallthru
          _
      $region12: #{decoder_layer.1} parent=5 // pred_fallthru
        _
      %p558 = scmp.lt.s32.totalorder %s29, 2
      // Predicated region
      $region77: #{decoder_layer.1} parent=5 // pred_check
        %p559 = pneg %p558
      $region78: #{decoder_layer.1} parent=5 // pred_check_branch
        %561 = sbr.rel (%p559) target = $region80
      $region79: #{decoder_layer.1} parent=5 // pred_region
        // Predicated region
        $region81: #{decoder_layer.1} parent=79 // pred_check
          %p562 = pneg %p49
        $region82: #{decoder_layer.1} parent=79 // pred_check_branch
          %564 = sbr.rel (%p562) target = $region84
        $region83: #{decoder_layer.1} parent=79 // pred_region
          %p565 = scmp.lt.s32.totalorder %s29, 1
          %s566 = scalar_select %p565, %s29, 1
          %s567 = smul.addr %s566, 8
          %s568 = scalar_lea.vmem %s0, %s567
        $region84: #{decoder_layer.1} parent=79 // pred_fallthru
          _
        // Predicated region
        $region85: #{decoder_layer.1} parent=79 // pred_check
          %p569 = pneg %p75
        $region86: #{decoder_layer.1} parent=79 // pred_check_branch
          %571 = sbr.rel (%p569) target = $region88
        $region87: #{decoder_layer.1} parent=79 // pred_region
          %p572 = scmp.lt.s32.totalorder %s29, 1
          %s573 = scalar_select %p572, %s29, 1
          %s574 = smul.addr %s573, 2
          %s575 = smul.addr %s574, 8
          %s576 = scalar_lea.vmem %s1, %s575
        $region88: #{decoder_layer.1} parent=79 // pred_fallthru
          _
        // Predicated region
        $region89: #{decoder_layer.1} parent=79 // pred_check
          %p577 = pneg %p101
        $region90: #{decoder_layer.1} parent=79 // pred_check_branch
          %579 = sbr.rel (%p577) target = $region92
        $region91: #{decoder_layer.1} parent=79 // pred_region
          %p580 = scmp.lt.s32.totalorder %s29, 1
          %s581 = scalar_select %p580, %s29, 1
          %s582 = smul.addr %s581, 8
          %s583 = scalar_lea.vmem %s2, %s582
        $region92: #{decoder_layer.1} parent=79 // pred_fallthru
          _
        // Predicated region
        $region93: #{decoder_layer.1} parent=79 // pred_check
          %p584 = pneg %p127
        $region94: #{decoder_layer.1} parent=79 // pred_check_branch
          %586 = sbr.rel (%p584) target = $region96
        $region95: #{decoder_layer.1} parent=79 // pred_region
          %p587 = scmp.lt.s32.totalorder %s29, 1
          %s588 = scalar_select %p587, %s29, 1
          %s589 = smul.addr %s588, 8
          %s590 = scalar_lea.vmem %s3, %s589
        $region96: #{decoder_layer.1} parent=79 // pred_fallthru
          _
      $region80: #{decoder_layer.1} parent=5 // pred_fallthru
        _
      %p591 = scmp.le.s32.totalorder 1, %s29
      %p592 = scmp.lt.s32.totalorder %s29, 3
      %p593 = pnand %p591, %p592
      %p594 = pneg %p593
      // Predicated region
      $region97: #{decoder_layer.1} parent=5 // pred_check
        _
      $region98: #{decoder_layer.1} parent=5 // pred_check_branch
        %596 = sbr.rel (%p593) target = $region100
      $region99: #{decoder_layer.1} parent=5 // pred_region
        %s597 = ssub.s32 %s29, 1
        %p598 = scmp.lt.s32.totalorder %s34, 1
        %s599 = scalar_select %p598, %s34, 1
        %s600 = smul.addr %s599, 8
        %s601 = scalar_lea.vmem %s0, %s600
        %p602 = pneg %p55
        %p603 = pneg %p52
        %p604 = scmp.lt.s32.totalorder %s34, 1
        %s605 = scalar_select %p604, %s34, 1
        %s606 = smul.addr %s605, 2
        %s607 = smul.addr %s606, 8
        %s608 = scalar_lea.vmem %s1, %s607
        %p609 = pneg %p81
        %p610 = pneg %p78
        %p611 = scmp.lt.s32.totalorder %s34, 1
        %s612 = scalar_select %p611, %s34, 1
        %s613 = smul.addr %s612, 8
        %s614 = scalar_lea.vmem %s2, %s613
        %p615 = pneg %p107
        %p616 = pneg %p104
        %p617 = scmp.lt.s32.totalorder %s34, 1
        %s618 = scalar_select %p617, %s34, 1
        %s619 = smul.addr %s618, 8
        %s620 = scalar_lea.vmem %s3, %s619
        %p621 = pneg %p133
        %p622 = pneg %p130
        %p623 = pneg %p154
        %p624 = pneg %p151
        %p625 = pneg %p175
        %p626 = pneg %p172
        %p627 = pneg %p196
        %p628 = pneg %p193
        %p629 = pneg %p217
        %p630 = pneg %p214
        %p631 = pneg %p238
        %p632 = pneg %p235
        %p633 = pneg %p259
        %p634 = pneg %p256
        %p635 = pneg %p280
        %p636 = pneg %p277
        %p637 = pneg %p301
        %p638 = pneg %p298
        %p639 = pneg %p322
        %p640 = pneg %p319
        %p641 = pneg %p343
        %p642 = pneg %p340
        %p643 = pneg %p364
        %p644 = pneg %p361
        %p645 = pneg %p385
        %p646 = pneg %p382
        %p647 = pneg %p406
        %p648 = pneg %p403
        %p649 = pneg %p427
        %p650 = pneg %p424
        %p651 = pneg %p448
        %p652 = pneg %p445
        %p653 = pneg %p469
        %p654 = pneg %p466
        %p655 = pneg %p495
        %p656 = pneg %p492
        %s657 = sand.u32 %s482, 1
        %s658 = scalar_lea.sflag [#allocation3], %s657
        %s659 = sand.u32 %s482, 1
        %s660 = smul.addr %s659, 8
        %s661 = scalar_lea.vmem [#allocation2], %s660
        %p662 = scmp.lt.s32.totalorder %s34, 1
        %s663 = scalar_select %p662, %s34, 1
        %s664 = smul.addr %s663, 8
        %s665 = scalar_lea.vmem %s0, %s664
        %p666 = scmp.lt.s32.totalorder %s34, 1
        %s667 = scalar_select %p666, %s34, 1
        %s668 = smul.addr %s667, 2
        %s669 = smul.addr %s668, 8
        %s670 = scalar_lea.vmem %s1, %s669
        %p671 = scmp.lt.s32.totalorder %s34, 1
        %s672 = scalar_select %p671, %s34, 1
        %s673 = smul.addr %s672, 8
        %s674 = scalar_lea.vmem %s2, %s673
        %p675 = scmp.lt.s32.totalorder %s34, 1
        %s676 = scalar_select %p675, %s34, 1
        %s677 = smul.addr %s676, 8
        %s678 = scalar_lea.vmem %s3, %s677
        %v679 = vld [vmem:[%s665] sm:$0xff]
        %v680 = vld [vmem:[%s670] sm:$0xff]
        %v681 = vld [vmem:[%s670 + $0x8] sm:$0x3]
        %v682 = vld [vmem:[%s674] sm:$0xff]
        %v683 = vld [vmem:[%s678] sm:$0xff]
        %v684 = vld [vmem:[%s4] sm:$0x1]
        %v685 = vld [vmem:[%s5] sm:$0x1]
        %vm686 = vcmask 261120
        %v687 = vsel %vm686, %v679, 0.0
        %688 = vadd.xlane.f32.xlu0 %v687
        %v689 = vpop.xlane.xlu0 %688
        %v690 = vrcp.pop 32.0
        %v691 = vmul.f32 %v689, %v690
        %v692 = vsub.f32 %v679, %v691
        %v693 = vmul.f32 %v692, %v692
        %v694 = vsel %vm686, %v693, 0.0
        %695 = vadd.xlane.f32.xlu0 %v694
        %v696 = vpop.xlane.xlu0 %695
        %v697 = vrcp.pop 31.0
        %v698 = vmul.f32 %v696, %v697
        %v699 = vrsqrt.pop %v698
        %v700 = vmul.f32 %v698, %v699
        %vm701 = vcmp.eq.f32.partialorder %v698, inf
        %v702 = vsel %vm701, %v698, %v700
        %vm703 = vcmp.eq.f32.partialorder %v698, 0.0
        %v704 = vand.u32 %v698, 2147483648
        %v705 = vsel %vm703, %v704, %v702
        %v706 = vlaneseq
        %v707 = vshrl.u32 %v706, 7
        %v708 = vsub.s32 0, %v707
        %v709 = vrot.slane %v684, %v708
        %v710 = vmul.f32 %v709, %v692
        %v711 = vadd.f32 %v705, 1e-06
        %v712 = vrcp.pop %v711
        %v713 = vmul.f32 %v710, %v712
        %v714 = vlaneseq
        %v715 = vshrl.u32 %v714, 7
        %v716 = vsub.s32 0, %v715
        %v717 = vrot.slane %v685, %v716
        %v718 = vadd.f32 %v713, %v717
        %v719 = vld [vmem:[%s6] sm:$0xff]
        %v720 = vld [vmem:[%s6 + $0x8] sm:$0xff]
        %v721 = vld [vmem:[%s6 + $0x10] sm:$0xff]
        %v722 = vld [vmem:[%s6 + $0x18] sm:$0xff]
        %v723 = vld [vmem:[%s7] sm:$0x1]
        %v725 = vlaneseq
        %v726 = vshrl.u32 %v725, 7
        %v727 = vsub.s32 0, %v726
        %v728 = vrot.slane %v723, %v727
        %v731 = vsel %vm686, %v718, 0
        %733 = vmatprep.subr.mxu0 0.0
        %734 = vmatpush1.msra.mxu0 %v719
        %735 = vmatprep.subr.mxu0 0.0
        %736 = vmatpush1.msra.mxu0 %v720
        %737 = vmatprep.subr.mxu0 0.0
        %738 = vmatpush1.msra.mxu0 %v721
        %739 = vmatprep.subr.mxu0 0.0
        %740 = vmatpush1.msra.mxu0 %v722
        %741 = vmatprep.subr.mxu0 0.0
        %742 = vmatpush1.msra.mxu0 0.0
        %743 = vmatprep.subr.mxu0 0.0
        %744 = vmatpush1.msra.mxu0 0.0
        %745 = vmatprep.subr.mxu0 0.0
        %746 = vmatpush1.msra.mxu0 0.0
        %747 = vmatprep.subr.mxu0 0.0
        %748 = vmatpush1.msra.mxu0 0.0
        %749 = vmatprep.subr.mxu0 0.0
        %750 = vmatpush1.msra.mxu0 0.0
        %751 = vmatprep.subr.mxu0 0.0
        %752 = vmatpush1.msra.mxu0 0.0
        %753 = vmatprep.subr.mxu0 0.0
        %754 = vmatpush1.msra.mxu0 0.0
        %755 = vmatprep.subr.mxu0 0.0
        %756 = vmatpush1.msra.mxu0 0.0
        %757 = vmatprep.subr.mxu0 0.0
        %758 = vmatpush1.msra.mxu0 0.0
        %759 = vmatprep.subr.mxu0 0.0
        %760 = vmatpush1.msra.mxu0 0.0
        %761 = vmatprep.subr.mxu0 0.0
        %762 = vmatpush1.msra.mxu0 0.0
        %763 = vmatprep.subr.mxu0 0.0
        %764 = vmatpush1.msra.mxu0 0.0
        %765 = vmatprep.subr.mxu0 0.0
        %766 = vmatpush1.msra.mxu0 0.0
        %767 = vmatprep.subr.mxu0 0.0
        %768 = vmatpush1.msra.mxu0 0.0
        %769 = vmatprep.subr.mxu0 0.0
        %770 = vmatpush1.msra.mxu0 0.0
        %771 = vmatprep.subr.mxu0 0.0
        %772 = vmatpush1.msra.mxu0 0.0
        %773 = vmatprep.subr.mxu0 0.0
        %774 = vmatpush1.msra.mxu0 0.0
        %775 = vmatprep.subr.mxu0 0.0
        %776 = vmatpush1.msra.mxu0 0.0
        %777 = vmatprep.subr.mxu0 0.0
        %778 = vmatpush1.msra.mxu0 0.0
        %779 = vmatprep.subr.mxu0 0.0
        %780 = vmatpush1.msra.mxu0 0.0
        %781 = vmatprep.subr.mxu0 0.0
        %782 = vmatpush1.msra.mxu0 0.0
        %783 = vmatprep.subr.mxu0 0.0
        %784 = vmatpush1.msra.mxu0 0.0
        %785 = vmatprep.subr.mxu0 0.0
        %786 = vmatpush1.msra.mxu0 0.0
        %787 = vmatprep.subr.mxu0 0.0
        %788 = vmatpush1.msra.mxu0 0.0
        %789 = vmatprep.subr.mxu0 0.0
        %790 = vmatpush1.msra.mxu0 0.0
        %791 = vmatprep.subr.mxu0 0.0
        %792 = vmatpush1.msra.mxu0 0.0
        %793 = vmatprep.subr.mxu0 0.0
        %794 = vmatpush1.msra.mxu0 0.0
        %795 = vmatprep.subr.mxu0 0.0
        %796 = vmatpush1.msra.mxu0 0.0
        %797 = vmatprep.mubr.f32.mxu0 0.0
        %798 = vmatmul.mubr.f32.gmra.mrb[0].mxu0 %v731
        %v799 = vpop.f32.mrb[0].mxu0
        %v800 = vadd.f32 %v728, %v799
        %v801 = vpop.f32.mrb[0].mxu0
        %802 = vdwg.mxu0
        %804 = vrot.lane.b32.xlu0 %v800, 96
        %v805 = vpop.permute.xlu0 %804
        %vm806 = vcmask 64512
        %v807 = vsel %vm806, %v800, 0
        %v809 = vsel %vm806, %v805, 0
        %811 = vmatprep.subr.mxu0 0.0
        %812 = vmatpush1.xpose.msra.mxu0 %v809
        %813 = vmatprep.subr.mxu0 0.0
        %814 = vmatpush1.xpose.msra.mxu0 0.0
        %815 = vmatprep.subr.mxu0 0.0
        %816 = vmatpush1.xpose.msra.mxu0 0.0
        %817 = vmatprep.subr.mxu0 0.0
        %818 = vmatpush1.xpose.msra.mxu0 0.0
        %819 = vmatprep.subr.mxu0 0.0
        %820 = vmatpush1.xpose.msra.mxu0 0.0
        %821 = vmatprep.subr.mxu0 0.0
        %822 = vmatpush1.xpose.msra.mxu0 0.0
        %823 = vmatprep.subr.mxu0 0.0
        %824 = vmatpush1.xpose.msra.mxu0 0.0
        %825 = vmatprep.subr.mxu0 0.0
        %826 = vmatpush1.xpose.msra.mxu0 0.0
        %827 = vmatprep.subr.mxu0 0.0
        %828 = vmatpush1.xpose.msra.mxu0 0.0
        %829 = vmatprep.subr.mxu0 0.0
        %830 = vmatpush1.xpose.msra.mxu0 0.0
        %831 = vmatprep.subr.mxu0 0.0
        %832 = vmatpush1.xpose.msra.mxu0 0.0
        %833 = vmatprep.subr.mxu0 0.0
        %834 = vmatpush1.xpose.msra.mxu0 0.0
        %835 = vmatprep.subr.mxu0 0.0
        %836 = vmatpush1.xpose.msra.mxu0 0.0
        %837 = vmatprep.subr.mxu0 0.0
        %838 = vmatpush1.xpose.msra.mxu0 0.0
        %839 = vmatprep.subr.mxu0 0.0
        %840 = vmatpush1.xpose.msra.mxu0 0.0
        %841 = vmatprep.subr.mxu0 0.0
        %842 = vmatpush1.xpose.msra.mxu0 0.0
        %843 = vmatprep.subr.mxu0 0.0
        %844 = vmatpush1.xpose.msra.mxu0 0.0
        %845 = vmatprep.subr.mxu0 0.0
        %846 = vmatpush1.xpose.msra.mxu0 0.0
        %847 = vmatprep.subr.mxu0 0.0
        %848 = vmatpush1.xpose.msra.mxu0 0.0
        %849 = vmatprep.subr.mxu0 0.0
        %850 = vmatpush1.xpose.msra.mxu0 0.0
        %851 = vmatprep.subr.mxu0 0.0
        %852 = vmatpush1.xpose.msra.mxu0 0.0
        %853 = vmatprep.subr.mxu0 0.0
        %854 = vmatpush1.xpose.msra.mxu0 0.0
        %855 = vmatprep.subr.mxu0 0.0
        %856 = vmatpush1.xpose.msra.mxu0 0.0
        %857 = vmatprep.subr.mxu0 0.0
        %858 = vmatpush1.xpose.msra.mxu0 0.0
        %859 = vmatprep.subr.mxu0 0.0
        %860 = vmatpush1.xpose.msra.mxu0 0.0
        %861 = vmatprep.subr.mxu0 0.0
        %862 = vmatpush1.xpose.msra.mxu0 0.0
        %863 = vmatprep.subr.mxu0 0.0
        %864 = vmatpush1.xpose.msra.mxu0 0.0
        %865 = vmatprep.subr.mxu0 0.0
        %866 = vmatpush1.xpose.msra.mxu0 0.0
        %867 = vmatprep.subr.mxu0 0.0
        %868 = vmatpush1.xpose.msra.mxu0 0.0
        %869 = vmatprep.subr.mxu0 0.0
        %870 = vmatpush1.xpose.msra.mxu0 0.0
        %871 = vmatprep.subr.mxu0 0.0
        %872 = vmatpush1.xpose.msra.mxu0 0.0
        %873 = vmatprep.subr.mxu0 0.0
        %874 = vmatpush1.xpose.msra.mxu0 0.0
        %875 = vmatprep.mubr.f32.mxu0 0.0
        %876 = vmatmul.mubr.f32.gmra.mrb[0].mxu0 %v807
        %v877 = vpop.f32.mrb[0].mxu0
        %v878 = vadd.f32 0.0, %v877
        %v879 = vpop.f32.mrb[0].mxu0
        %880 = vdwg.mxu0
        %v881 = vmul.f32 %v878, 0.35355338
        %vm882 = vcmp.gt.f32.partialorder %v682, 0.0
        %v883 = vsel %vm882, %v881, -1e+09
        %v884 = vsel %vm806, %v883, -inf
        %885 = vmax.xlane.f32.xlu0 %v884
        %v886 = vpop.xlane.xlu0 %885
        %v887 = vsub.f32 %v883, %v886
        %v888 = vmul.f32 %v887, 1.442695
        %v889 = vpow.pop %v888
        %v890 = vsel %vm806, %v889, 0.0
        %891 = vadd.xlane.f32.xlu0 %v890
        %v892 = vpop.xlane.xlu0 %891
        %v893 = vrcp.pop %v892
        %v894 = vmul.f32 %v889, %v893
        %895 = vrot.lane.b32.xlu0 %v800, 64
        %v896 = vpop.permute.xlu0 %895
        %v899 = vsel %vm806, %v894, 0
        %901 = vmatprep.subr.mxu0 0.0
        %902 = vmatpush1.msra.mxu0 %v896
        %903 = vmatprep.subr.mxu0 0.0
        %904 = vmatpush1.msra.mxu0 0.0
        %905 = vmatprep.subr.mxu0 0.0
        %906 = vmatpush1.msra.mxu0 0.0
        %907 = vmatprep.subr.mxu0 0.0
        %908 = vmatpush1.msra.mxu0 0.0
        %909 = vmatprep.subr.mxu0 0.0
        %910 = vmatpush1.msra.mxu0 0.0
        %911 = vmatprep.subr.mxu0 0.0
        %912 = vmatpush1.msra.mxu0 0.0
        %913 = vmatprep.subr.mxu0 0.0
        %914 = vmatpush1.msra.mxu0 0.0
        %915 = vmatprep.subr.mxu0 0.0
        %916 = vmatpush1.msra.mxu0 0.0
        %917 = vmatprep.subr.mxu0 0.0
        %918 = vmatpush1.msra.mxu0 0.0
        %919 = vmatprep.subr.mxu0 0.0
        %920 = vmatpush1.msra.mxu0 0.0
        %921 = vmatprep.subr.mxu0 0.0
        %922 = vmatpush1.msra.mxu0 0.0
        %923 = vmatprep.subr.mxu0 0.0
        %924 = vmatpush1.msra.mxu0 0.0
        %925 = vmatprep.subr.mxu0 0.0
        %926 = vmatpush1.msra.mxu0 0.0
        %927 = vmatprep.subr.mxu0 0.0
        %928 = vmatpush1.msra.mxu0 0.0
        %929 = vmatprep.subr.mxu0 0.0
        %930 = vmatpush1.msra.mxu0 0.0
        %931 = vmatprep.subr.mxu0 0.0
        %932 = vmatpush1.msra.mxu0 0.0
        %933 = vmatprep.subr.mxu0 0.0
        %934 = vmatpush1.msra.mxu0 0.0
        %935 = vmatprep.subr.mxu0 0.0
        %936 = vmatpush1.msra.mxu0 0.0
        %937 = vmatprep.subr.mxu0 0.0
        %938 = vmatpush1.msra.mxu0 0.0
        %939 = vmatprep.subr.mxu0 0.0
        %940 = vmatpush1.msra.mxu0 0.0
        %941 = vmatprep.subr.mxu0 0.0
        %942 = vmatpush1.msra.mxu0 0.0
        %943 = vmatprep.subr.mxu0 0.0
        %944 = vmatpush1.msra.mxu0 0.0
        %945 = vmatprep.subr.mxu0 0.0
        %946 = vmatpush1.msra.mxu0 0.0
        %947 = vmatprep.subr.mxu0 0.0
        %948 = vmatpush1.msra.mxu0 0.0
        %949 = vmatprep.subr.mxu0 0.0
        %950 = vmatpush1.msra.mxu0 0.0
        %951 = vmatprep.subr.mxu0 0.0
        %952 = vmatpush1.msra.mxu0 0.0
        %953 = vmatprep.subr.mxu0 0.0
        %954 = vmatpush1.msra.mxu0 0.0
        %955 = vmatprep.subr.mxu0 0.0
        %956 = vmatpush1.msra.mxu0 0.0
        %957 = vmatprep.subr.mxu0 0.0
        %958 = vmatpush1.msra.mxu0 0.0
        %959 = vmatprep.subr.mxu0 0.0
        %960 = vmatpush1.msra.mxu0 0.0
        %961 = vmatprep.subr.mxu0 0.0
        %962 = vmatpush1.msra.mxu0 0.0
        %963 = vmatprep.subr.mxu0 0.0
        %964 = vmatpush1.msra.mxu0 0.0
        %965 = vmatprep.mubr.f32.mxu0 0.0
        %966 = vmatmul.mubr.f32.gmra.mrb[0].mxu0 %v899
        %v967 = vpop.f32.mrb[0].mxu0
        %v968 = vadd.f32 0.0, %v967
        %v969 = vpop.f32.mrb[0].mxu0
        %970 = vdwg.mxu0
        %971 = vrot.lane.b32.xlu0 %v800, 120
        %v972 = vpop.permute.xlu0 %971
        %973 = vrot.lane.b32.xlu0 %v800, 88
        %v974 = vpop.permute.xlu0 %973
        %v975 = vsel %vm806, %v972, 0
        %v977 = vsel %vm806, %v974, 0
        %979 = vmatprep.subr.mxu0 0.0
        %980 = vmatpush1.xpose.msra.mxu0 %v977
        %981 = vmatprep.subr.mxu0 0.0
        %982 = vmatpush1.xpose.msra.mxu0 0.0
        %983 = vmatprep.subr.mxu0 0.0
        %984 = vmatpush1.xpose.msra.mxu0 0.0
        %985 = vmatprep.subr.mxu0 0.0
        %986 = vmatpush1.xpose.msra.mxu0 0.0
        %987 = vmatprep.subr.mxu0 0.0
        %988 = vmatpush1.xpose.msra.mxu0 0.0
        %989 = vmatprep.subr.mxu0 0.0
        %990 = vmatpush1.xpose.msra.mxu0 0.0
        %991 = vmatprep.subr.mxu0 0.0
        %992 = vmatpush1.xpose.msra.mxu0 0.0
        %993 = vmatprep.subr.mxu0 0.0
        %994 = vmatpush1.xpose.msra.mxu0 0.0
        %995 = vmatprep.subr.mxu0 0.0
        %996 = vmatpush1.xpose.msra.mxu0 0.0
        %997 = vmatprep.subr.mxu0 0.0
        %998 = vmatpush1.xpose.msra.mxu0 0.0
        %999 = vmatprep.subr.mxu0 0.0
        %1000 = vmatpush1.xpose.msra.mxu0 0.0
        %1001 = vmatprep.subr.mxu0 0.0
        %1002 = vmatpush1.xpose.msra.mxu0 0.0
        %1003 = vmatprep.subr.mxu0 0.0
        %1004 = vmatpush1.xpose.msra.mxu0 0.0
        %1005 = vmatprep.subr.mxu0 0.0
        %1006 = vmatpush1.xpose.msra.mxu0 0.0
        %1007 = vmatprep.subr.mxu0 0.0
        %1008 = vmatpush1.xpose.msra.mxu0 0.0
        %1009 = vmatprep.subr.mxu0 0.0
        %1010 = vmatpush1.xpose.msra.mxu0 0.0
        %1011 = vmatprep.subr.mxu0 0.0
        %1012 = vmatpush1.xpose.msra.mxu0 0.0
        %1013 = vmatprep.subr.mxu0 0.0
        %1014 = vmatpush1.xpose.msra.mxu0 0.0
        %1015 = vmatprep.subr.mxu0 0.0
        %1016 = vmatpush1.xpose.msra.mxu0 0.0
        %1017 = vmatprep.subr.mxu0 0.0
        %1018 = vmatpush1.xpose.msra.mxu0 0.0
        %1019 = vmatprep.subr.mxu0 0.0
        %1020 = vmatpush1.xpose.msra.mxu0 0.0
        %1021 = vmatprep.subr.mxu0 0.0
        %1022 = vmatpush1.xpose.msra.mxu0 0.0
        %1023 = vmatprep.subr.mxu0 0.0
        %1024 = vmatpush1.xpose.msra.mxu0 0.0
        %1025 = vmatprep.subr.mxu0 0.0
        %1026 = vmatpush1.xpose.msra.mxu0 0.0
        %1027 = vmatprep.subr.mxu0 0.0
        %1028 = vmatpush1.xpose.msra.mxu0 0.0
        %1029 = vmatprep.subr.mxu0 0.0
        %1030 = vmatpush1.xpose.msra.mxu0 0.0
        %1031 = vmatprep.subr.mxu0 0.0
        %1032 = vmatpush1.xpose.msra.mxu0 0.0
        %1033 = vmatprep.subr.mxu0 0.0
        %1034 = vmatpush1.xpose.msra.mxu0 0.0
        %1035 = vmatprep.subr.mxu0 0.0
        %1036 = vmatpush1.xpose.msra.mxu0 0.0
        %1037 = vmatprep.subr.mxu0 0.0
        %1038 = vmatpush1.xpose.msra.mxu0 0.0
        %1039 = vmatprep.subr.mxu0 0.0
        %1040 = vmatpush1.xpose.msra.mxu0 0.0
        %1041 = vmatprep.subr.mxu0 0.0
        %1042 = vmatpush1.xpose.msra.mxu0 0.0
        %1043 = vmatprep.mubr.f32.mxu0 0.0
        %1044 = vmatmul.mubr.f32.gmra.mrb[0].mxu0 %v975
        %v1045 = vpop.f32.mrb[0].mxu0
        %v1046 = vadd.f32 0.0, %v1045
        %v1047 = vpop.f32.mrb[0].mxu0
        %1048 = vdwg.mxu0
        %v1049 = vmul.f32 %v1046, 0.35355338
        %v1050 = vsel %vm882, %v1049, -1e+09
        %v1051 = vsel %vm806, %v1050, -inf
        %1052 = vmax.xlane.f32.xlu0 %v1051
        %v1053 = vpop.xlane.xlu0 %1052
        %v1054 = vsub.f32 %v1050, %v1053
        %v1055 = vmul.f32 %v1054, 1.442695
        %v1056 = vpow.pop %v1055
        %v1057 = vsel %vm806, %v1056, 0.0
        %1058 = vadd.xlane.f32.xlu0 %v1057
        %v1059 = vpop.xlane.xlu0 %1058
        %v1060 = vrcp.pop %v1059
        %v1061 = vmul.f32 %v1056, %v1060
        %1062 = vrot.lane.b32.xlu0 %v800, 56
        %v1063 = vpop.permute.xlu0 %1062
        %v1066 = vsel %vm806, %v1061, 0
        %1068 = vmatprep.subr.mxu0 0.0
        %1069 = vmatpush1.msra.mxu0 %v1063
        %1070 = vmatprep.subr.mxu0 0.0
        %1071 = vmatpush1.msra.mxu0 0.0
        %1072 = vmatprep.subr.mxu0 0.0
        %1073 = vmatpush1.msra.mxu0 0.0
        %1074 = vmatprep.subr.mxu0 0.0
        %1075 = vmatpush1.msra.mxu0 0.0
        %1076 = vmatprep.subr.mxu0 0.0
        %1077 = vmatpush1.msra.mxu0 0.0
        %1078 = vmatprep.subr.mxu0 0.0
        %1079 = vmatpush1.msra.mxu0 0.0
        %1080 = vmatprep.subr.mxu0 0.0
        %1081 = vmatpush1.msra.mxu0 0.0
        %1082 = vmatprep.subr.mxu0 0.0
        %1083 = vmatpush1.msra.mxu0 0.0
        %1084 = vmatprep.subr.mxu0 0.0
        %1085 = vmatpush1.msra.mxu0 0.0
        %1086 = vmatprep.subr.mxu0 0.0
        %1087 = vmatpush1.msra.mxu0 0.0
        %1088 = vmatprep.subr.mxu0 0.0
        %1089 = vmatpush1.msra.mxu0 0.0
        %1090 = vmatprep.subr.mxu0 0.0
        %1091 = vmatpush1.msra.mxu0 0.0
        %1092 = vmatprep.subr.mxu0 0.0
        %1093 = vmatpush1.msra.mxu0 0.0
        %1094 = vmatprep.subr.mxu0 0.0
        %1095 = vmatpush1.msra.mxu0 0.0
        %1096 = vmatprep.subr.mxu0 0.0
        %1097 = vmatpush1.msra.mxu0 0.0
        %1098 = vmatprep.subr.mxu0 0.0
        %1099 = vmatpush1.msra.mxu0 0.0
        %1100 = vmatprep.subr.mxu0 0.0
        %1101 = vmatpush1.msra.mxu0 0.0
        %1102 = vmatprep.subr.mxu0 0.0
        %1103 = vmatpush1.msra.mxu0 0.0
        %1104 = vmatprep.subr.mxu0 0.0
        %1105 = vmatpush1.msra.mxu0 0.0
        %1106 = vmatprep.subr.mxu0 0.0
        %1107 = vmatpush1.msra.mxu0 0.0
        %1108 = vmatprep.subr.mxu0 0.0
        %1109 = vmatpush1.msra.mxu0 0.0
        %1110 = vmatprep.subr.mxu0 0.0
        %1111 = vmatpush1.msra.mxu0 0.0
        %1112 = vmatprep.subr.mxu0 0.0
        %1113 = vmatpush1.msra.mxu0 0.0
        %1114 = vmatprep.subr.mxu0 0.0
        %1115 = vmatpush1.msra.mxu0 0.0
        %1116 = vmatprep.subr.mxu0 0.0
        %1117 = vmatpush1.msra.mxu0 0.0
        %1118 = vmatprep.subr.mxu0 0.0
        %1119 = vmatpush1.msra.mxu0 0.0
        %1120 = vmatprep.subr.mxu0 0.0
        %1121 = vmatpush1.msra.mxu0 0.0
        %1122 = vmatprep.subr.mxu0 0.0
        %1123 = vmatpush1.msra.mxu0 0.0
        %1124 = vmatprep.subr.mxu0 0.0
        %1125 = vmatpush1.msra.mxu0 0.0
        %1126 = vmatprep.subr.mxu0 0.0
        %1127 = vmatpush1.msra.mxu0 0.0
        %1128 = vmatprep.subr.mxu0 0.0
        %1129 = vmatpush1.msra.mxu0 0.0
        %1130 = vmatprep.subr.mxu0 0.0
        %1131 = vmatpush1.msra.mxu0 0.0
        %1132 = vmatprep.mubr.f32.mxu0 0.0
        %1133 = vmatmul.mubr.f32.gmra.mrb[0].mxu0 %v1066
        %v1134 = vpop.f32.mrb[0].mxu0
        %v1135 = vadd.f32 0.0, %v1134
        %v1136 = vpop.f32.mrb[0].mxu0
        %1137 = vdwg.mxu0
        %1138 = vrot.lane.b32.xlu0 %v800, 112
        %v1139 = vpop.permute.xlu0 %1138
        %1140 = vrot.lane.b32.xlu0 %v800, 80
        %v1141 = vpop.permute.xlu0 %1140
        %v1142 = vsel %vm806, %v1139, 0
        %v1144 = vsel %vm806, %v1141, 0
        %1146 = vmatprep.subr.mxu0 0.0
        %1147 = vmatpush1.xpose.msra.mxu0 %v1144
        %1148 = vmatprep.subr.mxu0 0.0
        %1149 = vmatpush1.xpose.msra.mxu0 0.0
        %1150 = vmatprep.subr.mxu0 0.0
        %1151 = vmatpush1.xpose.msra.mxu0 0.0
        %1152 = vmatprep.subr.mxu0 0.0
        %1153 = vmatpush1.xpose.msra.mxu0 0.0
        %1154 = vmatprep.subr.mxu0 0.0
        %1155 = vmatpush1.xpose.msra.mxu0 0.0
        %1156 = vmatprep.subr.mxu0 0.0
        %1157 = vmatpush1.xpose.msra.mxu0 0.0
        %1158 = vmatprep.subr.mxu0 0.0
        %1159 = vmatpush1.xpose.msra.mxu0 0.0
        %1160 = vmatprep.subr.mxu0 0.0
        %1161 = vmatpush1.xpose.msra.mxu0 0.0
        %1162 = vmatprep.subr.mxu0 0.0
        %1163 = vmatpush1.xpose.msra.mxu0 0.0
        %1164 = vmatprep.subr.mxu0 0.0
        %1165 = vmatpush1.xpose.msra.mxu0 0.0
        %1166 = vmatprep.subr.mxu0 0.0
        %1167 = vmatpush1.xpose.msra.mxu0 0.0
        %1168 = vmatprep.subr.mxu0 0.0
        %1169 = vmatpush1.xpose.msra.mxu0 0.0
        %1170 = vmatprep.subr.mxu0 0.0
        %1171 = vmatpush1.xpose.msra.mxu0 0.0
        %1172 = vmatprep.subr.mxu0 0.0
        %1173 = vmatpush1.xpose.msra.mxu0 0.0
        %1174 = vmatprep.subr.mxu0 0.0
        %1175 = vmatpush1.xpose.msra.mxu0 0.0
        %1176 = vmatprep.subr.mxu0 0.0
        %1177 = vmatpush1.xpose.msra.mxu0 0.0
        %1178 = vmatprep.subr.mxu0 0.0
        %1179 = vmatpush1.xpose.msra.mxu0 0.0
        %1180 = vmatprep.subr.mxu0 0.0
        %1181 = vmatpush1.xpose.msra.mxu0 0.0
        %1182 = vmatprep.subr.mxu0 0.0
        %1183 = vmatpush1.xpose.msra.mxu0 0.0
        %1184 = vmatprep.subr.mxu0 0.0
        %1185 = vmatpush1.xpose.msra.mxu0 0.0
        %1186 = vmatprep.subr.mxu0 0.0
        %1187 = vmatpush1.xpose.msra.mxu0 0.0
        %1188 = vmatprep.subr.mxu0 0.0
        %1189 = vmatpush1.xpose.msra.mxu0 0.0
        %1190 = vmatprep.subr.mxu0 0.0
        %1191 = vmatpush1.xpose.msra.mxu0 0.0
        %1192 = vmatprep.subr.mxu0 0.0
        %1193 = vmatpush1.xpose.msra.mxu0 0.0
        %1194 = vmatprep.subr.mxu0 0.0
        %1195 = vmatpush1.xpose.msra.mxu0 0.0
        %1196 = vmatprep.subr.mxu0 0.0
        %1197 = vmatpush1.xpose.msra.mxu0 0.0
        %1198 = vmatprep.subr.mxu0 0.0
        %1199 = vmatpush1.xpose.msra.mxu0 0.0
        %1200 = vmatprep.subr.mxu0 0.0
        %1201 = vmatpush1.xpose.msra.mxu0 0.0
        %1202 = vmatprep.subr.mxu0 0.0
        %1203 = vmatpush1.xpose.msra.mxu0 0.0
        %1204 = vmatprep.subr.mxu0 0.0
        %1205 = vmatpush1.xpose.msra.mxu0 0.0
        %1206 = vmatprep.subr.mxu0 0.0
        %1207 = vmatpush1.xpose.msra.mxu0 0.0
        %1208 = vmatprep.subr.mxu0 0.0
        %1209 = vmatpush1.xpose.msra.mxu0 0.0
        %1210 = vmatprep.mubr.f32.mxu0 0.0
        %1211 = vmatmul.mubr.f32.gmra.mrb[0].mxu0 %v1142
        %v1212 = vpop.f32.mrb[0].mxu0
        %v1213 = vadd.f32 0.0, %v1212
        %v1214 = vpop.f32.mrb[0].mxu0
        %1215 = vdwg.mxu0
        %v1216 = vmul.f32 %v1213, 0.35355338
        %v1217 = vsel %vm882, %v1216, -1e+09
        %v1218 = vsel %vm806, %v1217, -inf
        %1219 = vmax.xlane.f32.xlu0 %v1218
        %v1220 = vpop.xlane.xlu0 %1219
        %v1221 = vsub.f32 %v1217, %v1220
        %v1222 = vmul.f32 %v1221, 1.442695
        %v1223 = vpow.pop %v1222
        %v1224 = vsel %vm806, %v1223, 0.0
        %1225 = vadd.xlane.f32.xlu0 %v1224
        %v1226 = vpop.xlane.xlu0 %1225
        %v1227 = vrcp.pop %v1226
        %v1228 = vmul.f32 %v1223, %v1227
        %1229 = vrot.lane.b32.xlu0 %v800, 48
        %v1230 = vpop.permute.xlu0 %1229
        %v1233 = vsel %vm806, %v1228, 0
        %1235 = vmatprep.subr.mxu0 0.0
        %1236 = vmatpush1.msra.mxu0 %v1230
        %1237 = vmatprep.subr.mxu0 0.0
        %1238 = vmatpush1.msra.mxu0 0.0
        %1239 = vmatprep.subr.mxu0 0.0
        %1240 = vmatpush1.msra.mxu0 0.0
        %1241 = vmatprep.subr.mxu0 0.0
        %1242 = vmatpush1.msra.mxu0 0.0
        %1243 = vmatprep.subr.mxu0 0.0
        %1244 = vmatpush1.msra.mxu0 0.0
        %1245 = vmatprep.subr.mxu0 0.0
        %1246 = vmatpush1.msra.mxu0 0.0
        %1247 = vmatprep.subr.mxu0 0.0
        %1248 = vmatpush1.msra.mxu0 0.0
        %1249 = vmatprep.subr.mxu0 0.0
        %1250 = vmatpush1.msra.mxu0 0.0
        %1251 = vmatprep.subr.mxu0 0.0
        %1252 = vmatpush1.msra.mxu0 0.0
        %1253 = vmatprep.subr.mxu0 0.0
        %1254 = vmatpush1.msra.mxu0 0.0
        %1255 = vmatprep.subr.mxu0 0.0
        %1256 = vmatpush1.msra.mxu0 0.0
        %1257 = vmatprep.subr.mxu0 0.0
        %1258 = vmatpush1.msra.mxu0 0.0
        %1259 = vmatprep.subr.mxu0 0.0
        %1260 = vmatpush1.msra.mxu0 0.0
        %1261 = vmatprep.subr.mxu0 0.0
        %1262 = vmatpush1.msra.mxu0 0.0
        %1263 = vmatprep.subr.mxu0 0.0
        %1264 = vmatpush1.msra.mxu0 0.0
        %1265 = vmatprep.subr.mxu0 0.0
        %1266 = vmatpush1.msra.mxu0 0.0
        %1267 = vmatprep.subr.mxu0 0.0
        %1268 = vmatpush1.msra.mxu0 0.0
        %1269 = vmatprep.subr.mxu0 0.0
        %1270 = vmatpush1.msra.mxu0 0.0
        %1271 = vmatprep.subr.mxu0 0.0
        %1272 = vmatpush1.msra.mxu0 0.0
        %1273 = vmatprep.subr.mxu0 0.0
        %1274 = vmatpush1.msra.mxu0 0.0
        %1275 = vmatprep.subr.mxu0 0.0
        %1276 = vmatpush1.msra.mxu0 0.0
        %1277 = vmatprep.subr.mxu0 0.0
        %1278 = vmatpush1.msra.mxu0 0.0
        %1279 = vmatprep.subr.mxu0 0.0
        %1280 = vmatpush1.msra.mxu0 0.0
        %1281 = vmatprep.subr.mxu0 0.0
        %1282 = vmatpush1.msra.mxu0 0.0
        %1283 = vmatprep.subr.mxu0 0.0
        %1284 = vmatpush1.msra.mxu0 0.0
        %1285 = vmatprep.subr.mxu0 0.0
        %1286 = vmatpush1.msra.mxu0 0.0
        %1287 = vmatprep.subr.mxu0 0.0
        %1288 = vmatpush1.msra.mxu0 0.0
        %1289 = vmatprep.subr.mxu0 0.0
        %1290 = vmatpush1.msra.mxu0 0.0
        %1291 = vmatprep.subr.mxu0 0.0
        %1292 = vmatpush1.msra.mxu0 0.0
        %1293 = vmatprep.subr.mxu0 0.0
        %1294 = vmatpush1.msra.mxu0 0.0
        %1295 = vmatprep.subr.mxu0 0.0
        %1296 = vmatpush1.msra.mxu0 0.0
        %1297 = vmatprep.subr.mxu0 0.0
        %1298 = vmatpush1.msra.mxu0 0.0
        %1299 = vmatprep.mubr.f32.mxu0 0.0
        %1300 = vmatmul.mubr.f32.gmra.mrb[0].mxu0 %v1233
        %v1301 = vpop.f32.mrb[0].mxu0
        %v1302 = vadd.f32 0.0, %v1301
        %v1303 = vpop.f32.mrb[0].mxu0
        %1304 = vdwg.mxu0
        %1305 = vrot.lane.b32.xlu0 %v800, 104
        %v1306 = vpop.permute.xlu0 %1305
        %1307 = vrot.lane.b32.xlu0 %v800, 72
        %v1308 = vpop.permute.xlu0 %1307
        %v1309 = vsel %vm806, %v1306, 0
        %v1311 = vsel %vm806, %v1308, 0
        %1313 = vmatprep.subr.mxu0 0.0
        %1314 = vmatpush1.xpose.msra.mxu0 %v1311
        %1315 = vmatprep.subr.mxu0 0.0
        %1316 = vmatpush1.xpose.msra.mxu0 0.0
        %1317 = vmatprep.subr.mxu0 0.0
        %1318 = vmatpush1.xpose.msra.mxu0 0.0
        %1319 = vmatprep.subr.mxu0 0.0
        %1320 = vmatpush1.xpose.msra.mxu0 0.0
        %1321 = vmatprep.subr.mxu0 0.0
        %1322 = vmatpush1.xpose.msra.mxu0 0.0
        %1323 = vmatprep.subr.mxu0 0.0
        %1324 = vmatpush1.xpose.msra.mxu0 0.0
        %1325 = vmatprep.subr.mxu0 0.0
        %1326 = vmatpush1.xpose.msra.mxu0 0.0
        %1327 = vmatprep.subr.mxu0 0.0
        %1328 = vmatpush1.xpose.msra.mxu0 0.0
        %1329 = vmatprep.subr.mxu0 0.0
        %1330 = vmatpush1.xpose.msra.mxu0 0.0
        %1331 = vmatprep.subr.mxu0 0.0
        %1332 = vmatpush1.xpose.msra.mxu0 0.0
        %1333 = vmatprep.subr.mxu0 0.0
        %1334 = vmatpush1.xpose.msra.mxu0 0.0
        %1335 = vmatprep.subr.mxu0 0.0
        %1336 = vmatpush1.xpose.msra.mxu0 0.0
        %1337 = vmatprep.subr.mxu0 0.0
        %1338 = vmatpush1.xpose.msra.mxu0 0.0
        %1339 = vmatprep.subr.mxu0 0.0
        %1340 = vmatpush1.xpose.msra.mxu0 0.0
        %1341 = vmatprep.subr.mxu0 0.0
        %1342 = vmatpush1.xpose.msra.mxu0 0.0
        %1343 = vmatprep.subr.mxu0 0.0
        %1344 = vmatpush1.xpose.msra.mxu0 0.0
        %1345 = vmatprep.subr.mxu0 0.0
        %1346 = vmatpush1.xpose.msra.mxu0 0.0
        %1347 = vmatprep.subr.mxu0 0.0
        %1348 = vmatpush1.xpose.msra.mxu0 0.0
        %1349 = vmatprep.subr.mxu0 0.0
        %1350 = vmatpush1.xpose.msra.mxu0 0.0
        %1351 = vmatprep.subr.mxu0 0.0
        %1352 = vmatpush1.xpose.msra.mxu0 0.0
        %1353 = vmatprep.subr.mxu0 0.0
        %1354 = vmatpush1.xpose.msra.mxu0 0.0
        %1355 = vmatprep.subr.mxu0 0.0
        %1356 = vmatpush1.xpose.msra.mxu0 0.0
        %1357 = vmatprep.subr.mxu0 0.0
        %1358 = vmatpush1.xpose.msra.mxu0 0.0
        %1359 = vmatprep.subr.mxu0 0.0
        %1360 = vmatpush1.xpose.msra.mxu0 0.0
        %1361 = vmatprep.subr.mxu0 0.0
        %1362 = vmatpush1.xpose.msra.mxu0 0.0
        %1363 = vmatprep.subr.mxu0 0.0
        %1364 = vmatpush1.xpose.msra.mxu0 0.0
        %1365 = vmatprep.subr.mxu0 0.0
        %1366 = vmatpush1.xpose.msra.mxu0 0.0
        %1367 = vmatprep.subr.mxu0 0.0
        %1368 = vmatpush1.xpose.msra.mxu0 0.0
        %1369 = vmatprep.subr.mxu0 0.0
        %1370 = vmatpush1.xpose.msra.mxu0 0.0
        %1371 = vmatprep.subr.mxu0 0.0
        %1372 = vmatpush1.xpose.msra.mxu0 0.0
        %1373 = vmatprep.subr.mxu0 0.0
        %1374 = vmatpush1.xpose.msra.mxu0 0.0
        %1375 = vmatprep.subr.mxu0 0.0
        %1376 = vmatpush1.xpose.msra.mxu0 0.0
        %1377 = vmatprep.mubr.f32.mxu0 0.0
        %1378 = vmatmul.mubr.f32.gmra.mrb[0].mxu0 %v1309
        %v1379 = vpop.f32.mrb[0].mxu0
        %v1380 = vadd.f32 0.0, %v1379
        %v1381 = vpop.f32.mrb[0].mxu0
        %1382 = vdwg.mxu0
        %v1383 = vmul.f32 %v1380, 0.35355338
        %v1384 = vsel %vm882, %v1383, -1e+09
        %v1385 = vsel %vm806, %v1384, -inf
        %1386 = vmax.xlane.f32.xlu0 %v1385
        %v1387 = vpop.xlane.xlu0 %1386
        %v1388 = vsub.f32 %v1384, %v1387
        %v1389 = vmul.f32 %v1388, 1.442695
        %v1390 = vpow.pop %v1389
        %v1391 = vsel %vm806, %v1390, 0.0
        %1392 = vadd.xlane.f32.xlu0 %v1391
        %v1393 = vpop.xlane.xlu0 %1392
        %v1394 = vrcp.pop %v1393
        %v1395 = vmul.f32 %v1390, %v1394
        %1396 = vrot.lane.b32.xlu0 %v800, 40
        %v1397 = vpop.permute.xlu0 %1396
        %v1400 = vsel %vm806, %v1395, 0
        %1402 = vmatprep.subr.mxu0 0.0
        %1403 = vmatpush1.msra.mxu0 %v1397
        %1404 = vmatprep.subr.mxu0 0.0
        %1405 = vmatpush1.msra.mxu0 0.0
        %1406 = vmatprep.subr.mxu0 0.0
        %1407 = vmatpush1.msra.mxu0 0.0
        %1408 = vmatprep.subr.mxu0 0.0
        %1409 = vmatpush1.msra.mxu0 0.0
        %1410 = vmatprep.subr.mxu0 0.0
        %1411 = vmatpush1.msra.mxu0 0.0
        %1412 = vmatprep.subr.mxu0 0.0
        %1413 = vmatpush1.msra.mxu0 0.0
        %1414 = vmatprep.subr.mxu0 0.0
        %1415 = vmatpush1.msra.mxu0 0.0
        %1416 = vmatprep.subr.mxu0 0.0
        %1417 = vmatpush1.msra.mxu0 0.0
        %1418 = vmatprep.subr.mxu0 0.0
        %1419 = vmatpush1.msra.mxu0 0.0
        %1420 = vmatprep.subr.mxu0 0.0
        %1421 = vmatpush1.msra.mxu0 0.0
        %1422 = vmatprep.subr.mxu0 0.0
        %1423 = vmatpush1.msra.mxu0 0.0
        %1424 = vmatprep.subr.mxu0 0.0
        %1425 = vmatpush1.msra.mxu0 0.0
        %1426 = vmatprep.subr.mxu0 0.0
        %1427 = vmatpush1.msra.mxu0 0.0
        %1428 = vmatprep.subr.mxu0 0.0
        %1429 = vmatpush1.msra.mxu0 0.0
        %1430 = vmatprep.subr.mxu0 0.0
        %1431 = vmatpush1.msra.mxu0 0.0
        %1432 = vmatprep.subr.mxu0 0.0
        %1433 = vmatpush1.msra.mxu0 0.0
        %1434 = vmatprep.subr.mxu0 0.0
        %1435 = vmatpush1.msra.mxu0 0.0
        %1436 = vmatprep.subr.mxu0 0.0
        %1437 = vmatpush1.msra.mxu0 0.0
        %1438 = vmatprep.subr.mxu0 0.0
        %1439 = vmatpush1.msra.mxu0 0.0
        %1440 = vmatprep.subr.mxu0 0.0
        %1441 = vmatpush1.msra.mxu0 0.0
        %1442 = vmatprep.subr.mxu0 0.0
        %1443 = vmatpush1.msra.mxu0 0.0
        %1444 = vmatprep.subr.mxu0 0.0
        %1445 = vmatpush1.msra.mxu0 0.0
        %1446 = vmatprep.subr.mxu0 0.0
        %1447 = vmatpush1.msra.mxu0 0.0
        %1448 = vmatprep.subr.mxu0 0.0
        %1449 = vmatpush1.msra.mxu0 0.0
        %1450 = vmatprep.subr.mxu0 0.0
        %1451 = vmatpush1.msra.mxu0 0.0
        %1452 = vmatprep.subr.mxu0 0.0
        %1453 = vmatpush1.msra.mxu0 0.0
        %1454 = vmatprep.subr.mxu0 0.0
        %1455 = vmatpush1.msra.mxu0 0.0
        %1456 = vmatprep.subr.mxu0 0.0
        %1457 = vmatpush1.msra.mxu0 0.0
        %1458 = vmatprep.subr.mxu0 0.0
        %1459 = vmatpush1.msra.mxu0 0.0
        %1460 = vmatprep.subr.mxu0 0.0
        %1461 = vmatpush1.msra.mxu0 0.0
        %1462 = vmatprep.subr.mxu0 0.0
        %1463 = vmatpush1.msra.mxu0 0.0
        %1464 = vmatprep.subr.mxu0 0.0
        %1465 = vmatpush1.msra.mxu0 0.0
        %1466 = vmatprep.mubr.f32.mxu0 0.0
        %1467 = vmatmul.mubr.f32.gmra.mrb[0].mxu0 %v1400
        %v1468 = vpop.f32.mrb[0].mxu0
        %v1469 = vadd.f32 0.0, %v1468
        %v1470 = vpop.f32.mrb[0].mxu0
        %1471 = vdwg.mxu0
        %1473 = vrot.lane.b32.xlu0 %v1135, 8
        %v1474 = vpop.permute.xlu0 %1473
        %1477 = vrot.lane.b32.xlu0 %v1302, 16
        %v1478 = vpop.permute.xlu0 %1477
        %1481 = vrot.lane.b32.xlu0 %v1469, 24
        %v1482 = vpop.permute.xlu0 %1481
        %v1484 = vsel %vm806, %v968, %v1474
        %vm1485 = vcmask 130048
        %v1486 = vsel %vm1485, %v1484, %v1478
        %vm1487 = vcmask 195584
        %v1488 = vsel %vm1487, %v1486, %v1482
        %v1489 = vld [vmem:[%s8] sm:$0xff]
        %v1490 = vld [vmem:[%s8 + $0x8] sm:$0xff]
        %v1491 = vld [vmem:[%s8 + $0x10] sm:$0xff]
        %v1492 = vld [vmem:[%s8 + $0x18] sm:$0xff]
        %v1493 = vld [vmem:[%s9] sm:$0x1]
        %v1495 = vlaneseq
        %v1496 = vshrl.u32 %v1495, 7
        %v1497 = vsub.s32 0, %v1496
        %v1498 = vrot.slane %v1493, %v1497
        %v1501 = vsel %vm686, %v1488, 0
        %1503 = vmatprep.subr.mxu0 0.0
        %1504 = vmatpush1.msra.mxu0 %v1489
        %1505 = vmatprep.subr.mxu0 0.0
        %1506 = vmatpush1.msra.mxu0 %v1490
        %1507 = vmatprep.subr.mxu0 0.0
        %1508 = vmatpush1.msra.mxu0 %v1491
        %1509 = vmatprep.subr.mxu0 0.0
        %1510 = vmatpush1.msra.mxu0 %v1492
        %1511 = vmatprep.subr.mxu0 0.0
        %1512 = vmatpush1.msra.mxu0 0.0
        %1513 = vmatprep.subr.mxu0 0.0
        %1514 = vmatpush1.msra.mxu0 0.0
        %1515 = vmatprep.subr.mxu0 0.0
        %1516 = vmatpush1.msra.mxu0 0.0
        %1517 = vmatprep.subr.mxu0 0.0
        %1518 = vmatpush1.msra.mxu0 0.0
        %1519 = vmatprep.subr.mxu0 0.0
        %1520 = vmatpush1.msra.mxu0 0.0
        %1521 = vmatprep.subr.mxu0 0.0
        %1522 = vmatpush1.msra.mxu0 0.0
        %1523 = vmatprep.subr.mxu0 0.0
        %1524 = vmatpush1.msra.mxu0 0.0
        %1525 = vmatprep.subr.mxu0 0.0
        %1526 = vmatpush1.msra.mxu0 0.0
        %1527 = vmatprep.subr.mxu0 0.0
        %1528 = vmatpush1.msra.mxu0 0.0
        %1529 = vmatprep.subr.mxu0 0.0
        %1530 = vmatpush1.msra.mxu0 0.0
        %1531 = vmatprep.subr.mxu0 0.0
        %1532 = vmatpush1.msra.mxu0 0.0
        %1533 = vmatprep.subr.mxu0 0.0
        %1534 = vmatpush1.msra.mxu0 0.0
        %1535 = vmatprep.subr.mxu0 0.0
        %1536 = vmatpush1.msra.mxu0 0.0
        %1537 = vmatprep.subr.mxu0 0.0
        %1538 = vmatpush1.msra.mxu0 0.0
        %1539 = vmatprep.subr.mxu0 0.0
        %1540 = vmatpush1.msra.mxu0 0.0
        %1541 = vmatprep.subr.mxu0 0.0
        %1542 = vmatpush1.msra.mxu0 0.0
        %1543 = vmatprep.subr.mxu0 0.0
        %1544 = vmatpush1.msra.mxu0 0.0
        %1545 = vmatprep.subr.mxu0 0.0
        %1546 = vmatpush1.msra.mxu0 0.0
        %1547 = vmatprep.subr.mxu0 0.0
        %1548 = vmatpush1.msra.mxu0 0.0
        %1549 = vmatprep.subr.mxu0 0.0
        %1550 = vmatpush1.msra.mxu0 0.0
        %1551 = vmatprep.subr.mxu0 0.0
        %1552 = vmatpush1.msra.mxu0 0.0
        %1553 = vmatprep.subr.mxu0 0.0
        %1554 = vmatpush1.msra.mxu0 0.0
        %1555 = vmatprep.subr.mxu0 0.0
        %1556 = vmatpush1.msra.mxu0 0.0
        %1557 = vmatprep.subr.mxu0 0.0
        %1558 = vmatpush1.msra.mxu0 0.0
        %1559 = vmatprep.subr.mxu0 0.0
        %1560 = vmatpush1.msra.mxu0 0.0
        %1561 = vmatprep.subr.mxu0 0.0
        %1562 = vmatpush1.msra.mxu0 0.0
        %1563 = vmatprep.subr.mxu0 0.0
        %1564 = vmatpush1.msra.mxu0 0.0
        %1565 = vmatprep.subr.mxu0 0.0
        %1566 = vmatpush1.msra.mxu0 0.0
        %1567 = vmatprep.mubr.f32.mxu0 0.0
        %1568 = vmatmul.mubr.f32.gmra.mrb[0].mxu0 %v1501
        %v1569 = vpop.f32.mrb[0].mxu0
        %v1570 = vadd.f32 %v1498, %v1569
        %v1571 = vpop.f32.mrb[0].mxu0
        %1572 = vdwg.mxu0
        %v1573 = vadd.f32 %v679, %v1570
        %v1574 = vld [vmem:[%s4 + $0x1] sm:$0x1]
        %v1575 = vld [vmem:[%s5 + $0x1] sm:$0x1]
        %v1576 = vsel %vm686, %v1573, 0.0
        %1577 = vadd.xlane.f32.xlu0 %v1576
        %v1578 = vpop.xlane.xlu0 %1577
        %v1579 = vmul.f32 %v1578, %v690
        %v1580 = vsub.f32 %v1573, %v1579
        %v1581 = vmul.f32 %v1580, %v1580
        %v1582 = vsel %vm686, %v1581, 0.0
        %1583 = vadd.xlane.f32.xlu0 %v1582
        %v1584 = vpop.xlane.xlu0 %1583
        %v1585 = vmul.f32 %v1584, %v697
        %v1586 = vrsqrt.pop %v1585
        %v1587 = vmul.f32 %v1585, %v1586
        %vm1588 = vcmp.eq.f32.partialorder %v1585, inf
        %v1589 = vsel %vm1588, %v1585, %v1587
        %vm1590 = vcmp.eq.f32.partialorder %v1585, 0.0
        %v1591 = vand.u32 %v1585, 2147483648
        %v1592 = vsel %vm1590, %v1591, %v1589
        %v1593 = vlaneseq
        %v1594 = vshrl.u32 %v1593, 7
        %v1595 = vsub.s32 0, %v1594
        %v1596 = vrot.slane %v1574, %v1595
        %v1597 = vmul.f32 %v1596, %v1580
        %v1598 = vadd.f32 %v1592, 1e-06
        %v1599 = vrcp.pop %v1598
        %v1600 = vmul.f32 %v1597, %v1599
        %v1601 = vlaneseq
        %v1602 = vshrl.u32 %v1601, 7
        %v1603 = vsub.s32 0, %v1602
        %v1604 = vrot.slane %v1575, %v1603
        %v1605 = vadd.f32 %v1600, %v1604
        %v1606 = vld [vmem:[%s10] sm:$0xff]
        %v1607 = vld [vmem:[%s10 + $0x8] sm:$0xff]
        %v1608 = vld [vmem:[%s10 + $0x10] sm:$0xff]
        %v1609 = vld [vmem:[%s10 + $0x18] sm:$0xff]
        %v1610 = vld [vmem:[%s11] sm:$0x1]
        %v1612 = vlaneseq
        %v1613 = vshrl.u32 %v1612, 7
        %v1614 = vsub.s32 0, %v1613
        %v1615 = vrot.slane %v1610, %v1614
        %v1618 = vsel %vm686, %v1605, 0
        %1620 = vmatprep.subr.mxu0 0.0
        %1621 = vmatpush1.msra.mxu0 %v1606
        %1622 = vmatprep.subr.mxu0 0.0
        %1623 = vmatpush1.msra.mxu0 %v1607
        %1624 = vmatprep.subr.mxu0 0.0
        %1625 = vmatpush1.msra.mxu0 %v1608
        %1626 = vmatprep.subr.mxu0 0.0
        %1627 = vmatpush1.msra.mxu0 %v1609
        %1628 = vmatprep.subr.mxu0 0.0
        %1629 = vmatpush1.msra.mxu0 0.0
        %1630 = vmatprep.subr.mxu0 0.0
        %1631 = vmatpush1.msra.mxu0 0.0
        %1632 = vmatprep.subr.mxu0 0.0
        %1633 = vmatpush1.msra.mxu0 0.0
        %1634 = vmatprep.subr.mxu0 0.0
        %1635 = vmatpush1.msra.mxu0 0.0
        %1636 = vmatprep.subr.mxu0 0.0
        %1637 = vmatpush1.msra.mxu0 0.0
        %1638 = vmatprep.subr.mxu0 0.0
        %1639 = vmatpush1.msra.mxu0 0.0
        %1640 = vmatprep.subr.mxu0 0.0
        %1641 = vmatpush1.msra.mxu0 0.0
        %1642 = vmatprep.subr.mxu0 0.0
        %1643 = vmatpush1.msra.mxu0 0.0
        %1644 = vmatprep.subr.mxu0 0.0
        %1645 = vmatpush1.msra.mxu0 0.0
        %1646 = vmatprep.subr.mxu0 0.0
        %1647 = vmatpush1.msra.mxu0 0.0
        %1648 = vmatprep.subr.mxu0 0.0
        %1649 = vmatpush1.msra.mxu0 0.0
        %1650 = vmatprep.subr.mxu0 0.0
        %1651 = vmatpush1.msra.mxu0 0.0
        %1652 = vmatprep.subr.mxu0 0.0
        %1653 = vmatpush1.msra.mxu0 0.0
        %1654 = vmatprep.subr.mxu0 0.0
        %1655 = vmatpush1.msra.mxu0 0.0
        %1656 = vmatprep.subr.mxu0 0.0
        %1657 = vmatpush1.msra.mxu0 0.0
        %1658 = vmatprep.subr.mxu0 0.0
        %1659 = vmatpush1.msra.mxu0 0.0
        %1660 = vmatprep.subr.mxu0 0.0
        %1661 = vmatpush1.msra.mxu0 0.0
        %1662 = vmatprep.subr.mxu0 0.0
        %1663 = vmatpush1.msra.mxu0 0.0
        %1664 = vmatprep.subr.mxu0 0.0
        %1665 = vmatpush1.msra.mxu0 0.0
        %1666 = vmatprep.subr.mxu0 0.0
        %1667 = vmatpush1.msra.mxu0 0.0
        %1668 = vmatprep.subr.mxu0 0.0
        %1669 = vmatpush1.msra.mxu0 0.0
        %1670 = vmatprep.subr.mxu0 0.0
        %1671 = vmatpush1.msra.mxu0 0.0
        %1672 = vmatprep.subr.mxu0 0.0
        %1673 = vmatpush1.msra.mxu0 0.0
        %1674 = vmatprep.subr.mxu0 0.0
        %1675 = vmatpush1.msra.mxu0 0.0
        %1676 = vmatprep.subr.mxu0 0.0
        %1677 = vmatpush1.msra.mxu0 0.0
        %1678 = vmatprep.subr.mxu0 0.0
        %1679 = vmatpush1.msra.mxu0 0.0
        %1680 = vmatprep.subr.mxu0 0.0
        %1681 = vmatpush1.msra.mxu0 0.0
        %1682 = vmatprep.subr.mxu0 0.0
        %1683 = vmatpush1.msra.mxu0 0.0
        %1684 = vmatprep.mubr.f32.mxu0 0.0
        %1685 = vmatmul.mubr.f32.gmra.mrb[0].mxu0 %v1618
        %v1686 = vpop.f32.mrb[0].mxu0
        %v1687 = vadd.f32 %v1615, %v1686
        %v1688 = vpop.f32.mrb[0].mxu0
        %1689 = vdwg.mxu0
        %v1690 = vld [vmem:[%s12] sm:$0xff]
        %v1691 = vld [vmem:[%s12 + $0x8] sm:$0xff]
        %v1692 = vld [vmem:[%s12 + $0x10] sm:$0xff]
        %v1693 = vld [vmem:[%s12 + $0x18] sm:$0xff]
        %v1694 = vld [vmem:[%s13] sm:$0x1]
        %v1696 = vlaneseq
        %v1697 = vshrl.u32 %v1696, 7
        %v1698 = vsub.s32 0, %v1697
        %v1699 = vrot.slane %v1694, %v1698
        %v1702 = vsel %vm686, %v680, 0
        %v1705 = vsel %vm686, %v681, 0
        %1707 = vmatprep.subr.mxu0 0.0
        %1708 = vmatpush1.msra.mxu0 %v1690
        %1709 = vmatprep.subr.mxu0 0.0
        %1710 = vmatpush1.msra.mxu0 %v1691
        %1711 = vmatprep.subr.mxu0 0.0
        %1712 = vmatpush1.msra.mxu0 %v1692
        %1713 = vmatprep.subr.mxu0 0.0
        %1714 = vmatpush1.msra.mxu0 %v1693
        %1715 = vmatprep.subr.mxu0 0.0
        %1716 = vmatpush1.msra.mxu0 0.0
        %1717 = vmatprep.subr.mxu0 0.0
        %1718 = vmatpush1.msra.mxu0 0.0
        %1719 = vmatprep.subr.mxu0 0.0
        %1720 = vmatpush1.msra.mxu0 0.0
        %1721 = vmatprep.subr.mxu0 0.0
        %1722 = vmatpush1.msra.mxu0 0.0
        %1723 = vmatprep.subr.mxu0 0.0
        %1724 = vmatpush1.msra.mxu0 0.0
        %1725 = vmatprep.subr.mxu0 0.0
        %1726 = vmatpush1.msra.mxu0 0.0
        %1727 = vmatprep.subr.mxu0 0.0
        %1728 = vmatpush1.msra.mxu0 0.0
        %1729 = vmatprep.subr.mxu0 0.0
        %1730 = vmatpush1.msra.mxu0 0.0
        %1731 = vmatprep.subr.mxu0 0.0
        %1732 = vmatpush1.msra.mxu0 0.0
        %1733 = vmatprep.subr.mxu0 0.0
        %1734 = vmatpush1.msra.mxu0 0.0
        %1735 = vmatprep.subr.mxu0 0.0
        %1736 = vmatpush1.msra.mxu0 0.0
        %1737 = vmatprep.subr.mxu0 0.0
        %1738 = vmatpush1.msra.mxu0 0.0
        %1739 = vmatprep.subr.mxu0 0.0
        %1740 = vmatpush1.msra.mxu0 0.0
        %1741 = vmatprep.subr.mxu0 0.0
        %1742 = vmatpush1.msra.mxu0 0.0
        %1743 = vmatprep.subr.mxu0 0.0
        %1744 = vmatpush1.msra.mxu0 0.0
        %1745 = vmatprep.subr.mxu0 0.0
        %1746 = vmatpush1.msra.mxu0 0.0
        %1747 = vmatprep.subr.mxu0 0.0
        %1748 = vmatpush1.msra.mxu0 0.0
        %1749 = vmatprep.subr.mxu0 0.0
        %1750 = vmatpush1.msra.mxu0 0.0
        %1751 = vmatprep.subr.mxu0 0.0
        %1752 = vmatpush1.msra.mxu0 0.0
        %1753 = vmatprep.subr.mxu0 0.0
        %1754 = vmatpush1.msra.mxu0 0.0
        %1755 = vmatprep.subr.mxu0 0.0
        %1756 = vmatpush1.msra.mxu0 0.0
        %1757 = vmatprep.subr.mxu0 0.0
        %1758 = vmatpush1.msra.mxu0 0.0
        %1759 = vmatprep.subr.mxu0 0.0
        %1760 = vmatpush1.msra.mxu0 0.0
        %1761 = vmatprep.subr.mxu0 0.0
        %1762 = vmatpush1.msra.mxu0 0.0
        %1763 = vmatprep.subr.mxu0 0.0
        %1764 = vmatpush1.msra.mxu0 0.0
        %1765 = vmatprep.subr.mxu0 0.0
        %1766 = vmatpush1.msra.mxu0 0.0
        %1767 = vmatprep.subr.mxu0 0.0
        %1768 = vmatpush1.msra.mxu0 0.0
        %1769 = vmatprep.subr.mxu0 0.0
        %1770 = vmatpush1.msra.mxu0 0.0
        %1771 = vmatprep.mubr.f32.mxu0 0.0
        %1772 = vmatmul.mubr.f32.gmra.mrb[0].mxu0 %v1702
        %v1773 = vpop.f32.mrb[0].mxu0
        %v1774 = vadd.f32 %v1699, %v1773
        %v1775 = vpop.f32.mrb[0].mxu0
        %1776 = vmatprep.mubr.f32.mxu0 0.0
        %1777 = vmatmul.mubr.f32.gmra.mrb[0].mxu0 %v1705
        %v1778 = vpop.f32.mrb[0].mxu0
        %v1779 = vadd.f32 %v1699, %v1778
        %v1780 = vpop.f32.mrb[0].mxu0
        %1781 = vdwg.mxu0
        %v1783 = vsel %vm806, %v1687, 0
        %v1786 = vsel %vm806, %v1774, 0
        %v1789 = vsel %vm806, %v1779, 0
        %1791 = vmatprep.subr.mxu0 0.0
        %1792 = vmatpush1.xpose.msra.mxu0 %v1786
        %1793 = vmatprep.subr.mxu0 0.0
        %1794 = vmatpush1.xpose.msra.mxu0 %v1789
        %1795 = vmatprep.subr.mxu0 0.0
        %1796 = vmatpush1.xpose.msra.mxu0 0.0
        %1797 = vmatprep.subr.mxu0 0.0
        %1798 = vmatpush1.xpose.msra.mxu0 0.0
        %1799 = vmatprep.subr.mxu0 0.0
        %1800 = vmatpush1.xpose.msra.mxu0 0.0
        %1801 = vmatprep.subr.mxu0 0.0
        %1802 = vmatpush1.xpose.msra.mxu0 0.0
        %1803 = vmatprep.subr.mxu0 0.0
        %1804 = vmatpush1.xpose.msra.mxu0 0.0
        %1805 = vmatprep.subr.mxu0 0.0
        %1806 = vmatpush1.xpose.msra.mxu0 0.0
        %1807 = vmatprep.subr.mxu0 0.0
        %1808 = vmatpush1.xpose.msra.mxu0 0.0
        %1809 = vmatprep.subr.mxu0 0.0
        %1810 = vmatpush1.xpose.msra.mxu0 0.0
        %1811 = vmatprep.subr.mxu0 0.0
        %1812 = vmatpush1.xpose.msra.mxu0 0.0
        %1813 = vmatprep.subr.mxu0 0.0
        %1814 = vmatpush1.xpose.msra.mxu0 0.0
        %1815 = vmatprep.subr.mxu0 0.0
        %1816 = vmatpush1.xpose.msra.mxu0 0.0
        %1817 = vmatprep.subr.mxu0 0.0
        %1818 = vmatpush1.xpose.msra.mxu0 0.0
        %1819 = vmatprep.subr.mxu0 0.0
        %1820 = vmatpush1.xpose.msra.mxu0 0.0
        %1821 = vmatprep.subr.mxu0 0.0
        %1822 = vmatpush1.xpose.msra.mxu0 0.0
        %1823 = vmatprep.subr.mxu0 0.0
        %1824 = vmatpush1.xpose.msra.mxu0 0.0
        %1825 = vmatprep.subr.mxu0 0.0
        %1826 = vmatpush1.xpose.msra.mxu0 0.0
        %1827 = vmatprep.subr.mxu0 0.0
        %1828 = vmatpush1.xpose.msra.mxu0 0.0
        %1829 = vmatprep.subr.mxu0 0.0
        %1830 = vmatpush1.xpose.msra.mxu0 0.0
        %1831 = vmatprep.subr.mxu0 0.0
        %1832 = vmatpush1.xpose.msra.mxu0 0.0
        %1833 = vmatprep.subr.mxu0 0.0
        %1834 = vmatpush1.xpose.msra.mxu0 0.0
        %1835 = vmatprep.subr.mxu0 0.0
        %1836 = vmatpush1.xpose.msra.mxu0 0.0
        %1837 = vmatprep.subr.mxu0 0.0
        %1838 = vmatpush1.xpose.msra.mxu0 0.0
        %1839 = vmatprep.subr.mxu0 0.0
        %1840 = vmatpush1.xpose.msra.mxu0 0.0
        %1841 = vmatprep.subr.mxu0 0.0
        %1842 = vmatpush1.xpose.msra.mxu0 0.0
        %1843 = vmatprep.subr.mxu0 0.0
        %1844 = vmatpush1.xpose.msra.mxu0 0.0
        %1845 = vmatprep.subr.mxu0 0.0
        %1846 = vmatpush1.xpose.msra.mxu0 0.0
        %1847 = vmatprep.subr.mxu0 0.0
        %1848 = vmatpush1.xpose.msra.mxu0 0.0
        %1849 = vmatprep.subr.mxu0 0.0
        %1850 = vmatpush1.xpose.msra.mxu0 0.0
        %1851 = vmatprep.subr.mxu0 0.0
        %1852 = vmatpush1.xpose.msra.mxu0 0.0
        %1853 = vmatprep.subr.mxu0 0.0
        %1854 = vmatpush1.xpose.msra.mxu0 0.0
        %1855 = vmatprep.mubr.f32.mxu0 0.0
        %1856 = vmatmul.mubr.f32.gmra.mrb[0].mxu0 %v1783
        %v1857 = vpop.f32.mrb[0].mxu0
        %v1858 = vadd.f32 0.0, %v1857
        %v1859 = vpop.f32.mrb[0].mxu0
        %1860 = vdwg.mxu0
        %v1861 = vmul.f32 %v1858, 0.35355338
        %vm1862 = vcmp.gt.f32.partialorder %v683, 0.0
        %v1863 = vsel %vm1862, %v1861, -1e+09
        %vm1864 = vcmask 80896
        %v1865 = vsel %vm1864, %v1863, -inf
        %1866 = vmax.xlane.f32.xlu0 %v1865
        %v1867 = vpop.xlane.xlu0 %1866
        %v1868 = vsub.f32 %v1863, %v1867
        %v1869 = vmul.f32 %v1868, 1.442695
        %v1870 = vpow.pop %v1869
        %v1871 = vsel %vm1864, %v1870, 0.0
        %1872 = vadd.xlane.f32.xlu0 %v1871
        %v1873 = vpop.xlane.xlu0 %1872
        %v1874 = vrcp.pop %v1873
        %v1875 = vmul.f32 %v1870, %v1874
        %1876 = vrot.lane.b32.xlu0 %v1774, 96
        %v1877 = vpop.permute.xlu0 %1876
        %1878 = vrot.lane.b32.xlu0 %v1779, 96
        %v1879 = vpop.permute.xlu0 %1878
        %v1882 = vsel %vm1864, %v1875, 0
        %vm1884 = vcmask 1041408
        %v1885 = vsel %vm1884, %v1879, 0
        %1887 = vmatprep.subr.mxu0 0.0
        %1888 = vmatpush1.msra.mxu0 %v1877
        %1889 = vmatprep.subr.mxu0 0.0
        %1890 = vmatpush1.msra.mxu0 %v1885
        %1891 = vmatprep.subr.mxu0 0.0
        %1892 = vmatpush1.msra.mxu0 0.0
        %1893 = vmatprep.subr.mxu0 0.0
        %1894 = vmatpush1.msra.mxu0 0.0
        %1895 = vmatprep.subr.mxu0 0.0
        %1896 = vmatpush1.msra.mxu0 0.0
        %1897 = vmatprep.subr.mxu0 0.0
        %1898 = vmatpush1.msra.mxu0 0.0
        %1899 = vmatprep.subr.mxu0 0.0
        %1900 = vmatpush1.msra.mxu0 0.0
        %1901 = vmatprep.subr.mxu0 0.0
        %1902 = vmatpush1.msra.mxu0 0.0
        %1903 = vmatprep.subr.mxu0 0.0
        %1904 = vmatpush1.msra.mxu0 0.0
        %1905 = vmatprep.subr.mxu0 0.0
        %1906 = vmatpush1.msra.mxu0 0.0
        %1907 = vmatprep.subr.mxu0 0.0
        %1908 = vmatpush1.msra.mxu0 0.0
        %1909 = vmatprep.subr.mxu0 0.0
        %1910 = vmatpush1.msra.mxu0 0.0
        %1911 = vmatprep.subr.mxu0 0.0
        %1912 = vmatpush1.msra.mxu0 0.0
        %1913 = vmatprep.subr.mxu0 0.0
        %1914 = vmatpush1.msra.mxu0 0.0
        %1915 = vmatprep.subr.mxu0 0.0
        %1916 = vmatpush1.msra.mxu0 0.0
        %1917 = vmatprep.subr.mxu0 0.0
        %1918 = vmatpush1.msra.mxu0 0.0
        %1919 = vmatprep.subr.mxu0 0.0
        %1920 = vmatpush1.msra.mxu0 0.0
        %1921 = vmatprep.subr.mxu0 0.0
        %1922 = vmatpush1.msra.mxu0 0.0
        %1923 = vmatprep.subr.mxu0 0.0
        %1924 = vmatpush1.msra.mxu0 0.0
        %1925 = vmatprep.subr.mxu0 0.0
        %1926 = vmatpush1.msra.mxu0 0.0
        %1927 = vmatprep.subr.mxu0 0.0
        %1928 = vmatpush1.msra.mxu0 0.0
        %1929 = vmatprep.subr.mxu0 0.0
        %1930 = vmatpush1.msra.mxu0 0.0
        %1931 = vmatprep.subr.mxu0 0.0
        %1932 = vmatpush1.msra.mxu0 0.0
        %1933 = vmatprep.subr.mxu0 0.0
        %1934 = vmatpush1.msra.mxu0 0.0
        %1935 = vmatprep.subr.mxu0 0.0
        %1936 = vmatpush1.msra.mxu0 0.0
        %1937 = vmatprep.subr.mxu0 0.0
        %1938 = vmatpush1.msra.mxu0 0.0
        %1939 = vmatprep.subr.mxu0 0.0
        %1940 = vmatpush1.msra.mxu0 0.0
        %1941 = vmatprep.subr.mxu0 0.0
        %1942 = vmatpush1.msra.mxu0 0.0
        %1943 = vmatprep.subr.mxu0 0.0
        %1944 = vmatpush1.msra.mxu0 0.0
        %1945 = vmatprep.subr.mxu0 0.0
        %1946 = vmatpush1.msra.mxu0 0.0
        %1947 = vmatprep.subr.mxu0 0.0
        %1948 = vmatpush1.msra.mxu0 0.0
        %1949 = vmatprep.subr.mxu0 0.0
        %1950 = vmatpush1.msra.mxu0 0.0
        %1951 = vmatprep.mubr.f32.mxu0 0.0
        %1952 = vmatmul.mubr.f32.gmra.mrb[0].mxu0 %v1882
        %v1953 = vpop.f32.mrb[0].mxu0
        %v1954 = vadd.f32 0.0, %v1953
        %v1955 = vpop.f32.mrb[0].mxu0
        %1956 = vdwg.mxu0
        %1957 = vrot.lane.b32.xlu0 %v1687, 120
        %v1958 = vpop.permute.xlu0 %1957
        %1959 = vrot.lane.b32.xlu0 %v1774, 120
        %v1960 = vpop.permute.xlu0 %1959
        %1961 = vrot.lane.b32.xlu0 %v1779, 120
        %v1962 = vpop.permute.xlu0 %1961
        %v1963 = vsel %vm806, %v1958, 0
        %v1965 = vsel %vm806, %v1960, 0
        %v1967 = vsel %vm806, %v1962, 0
        %1969 = vmatprep.subr.mxu0 0.0
        %1970 = vmatpush1.xpose.msra.mxu0 %v1965
        %1971 = vmatprep.subr.mxu0 0.0
        %1972 = vmatpush1.xpose.msra.mxu0 %v1967
        %1973 = vmatprep.subr.mxu0 0.0
        %1974 = vmatpush1.xpose.msra.mxu0 0.0
        %1975 = vmatprep.subr.mxu0 0.0
        %1976 = vmatpush1.xpose.msra.mxu0 0.0
        %1977 = vmatprep.subr.mxu0 0.0
        %1978 = vmatpush1.xpose.msra.mxu0 0.0
        %1979 = vmatprep.subr.mxu0 0.0
        %1980 = vmatpush1.xpose.msra.mxu0 0.0
        %1981 = vmatprep.subr.mxu0 0.0
        %1982 = vmatpush1.xpose.msra.mxu0 0.0
        %1983 = vmatprep.subr.mxu0 0.0
        %1984 = vmatpush1.xpose.msra.mxu0 0.0
        %1985 = vmatprep.subr.mxu0 0.0
        %1986 = vmatpush1.xpose.msra.mxu0 0.0
        %1987 = vmatprep.subr.mxu0 0.0
        %1988 = vmatpush1.xpose.msra.mxu0 0.0
        %1989 = vmatprep.subr.mxu0 0.0
        %1990 = vmatpush1.xpose.msra.mxu0 0.0
        %1991 = vmatprep.subr.mxu0 0.0
        %1992 = vmatpush1.xpose.msra.mxu0 0.0
        %1993 = vmatprep.subr.mxu0 0.0
        %1994 = vmatpush1.xpose.msra.mxu0 0.0
        %1995 = vmatprep.subr.mxu0 0.0
        %1996 = vmatpush1.xpose.msra.mxu0 0.0
        %1997 = vmatprep.subr.mxu0 0.0
        %1998 = vmatpush1.xpose.msra.mxu0 0.0
        %1999 = vmatprep.subr.mxu0 0.0
        %2000 = vmatpush1.xpose.msra.mxu0 0.0
        %2001 = vmatprep.subr.mxu0 0.0
        %2002 = vmatpush1.xpose.msra.mxu0 0.0
        %2003 = vmatprep.subr.mxu0 0.0
        %2004 = vmatpush1.xpose.msra.mxu0 0.0
        %2005 = vmatprep.subr.mxu0 0.0
        %2006 = vmatpush1.xpose.msra.mxu0 0.0
        %2007 = vmatprep.subr.mxu0 0.0
        %2008 = vmatpush1.xpose.msra.mxu0 0.0
        %2009 = vmatprep.subr.mxu0 0.0
        %2010 = vmatpush1.xpose.msra.mxu0 0.0
        %2011 = vmatprep.subr.mxu0 0.0
        %2012 = vmatpush1.xpose.msra.mxu0 0.0
        %2013 = vmatprep.subr.mxu0 0.0
        %2014 = vmatpush1.xpose.msra.mxu0 0.0
        %2015 = vmatprep.subr.mxu0 0.0
        %2016 = vmatpush1.xpose.msra.mxu0 0.0
        %2017 = vmatprep.subr.mxu0 0.0
        %2018 = vmatpush1.xpose.msra.mxu0 0.0
        %2019 = vmatprep.subr.mxu0 0.0
        %2020 = vmatpush1.xpose.msra.mxu0 0.0
        %2021 = vmatprep.subr.mxu0 0.0
        %2022 = vmatpush1.xpose.msra.mxu0 0.0
        %2023 = vmatprep.subr.mxu0 0.0
        %2024 = vmatpush1.xpose.msra.mxu0 0.0
        %2025 = vmatprep.subr.mxu0 0.0
        %2026 = vmatpush1.xpose.msra.mxu0 0.0
        %2027 = vmatprep.subr.mxu0 0.0
        %2028 = vmatpush1.xpose.msra.mxu0 0.0
        %2029 = vmatprep.subr.mxu0 0.0
        %2030 = vmatpush1.xpose.msra.mxu0 0.0
        %2031 = vmatprep.subr.mxu0 0.0
        %2032 = vmatpush1.xpose.msra.mxu0 0.0
        %2033 = vmatprep.mubr.f32.mxu0 0.0
        %2034 = vmatmul.mubr.f32.gmra.mrb[0].mxu0 %v1963
        %v2035 = vpop.f32.mrb[0].mxu0
        %v2036 = vadd.f32 0.0, %v2035
        %v2037 = vpop.f32.mrb[0].mxu0
        %2038 = vdwg.mxu0
        %v2039 = vmul.f32 %v2036, 0.35355338
        %v2040 = vsel %vm1862, %v2039, -1e+09
        %v2041 = vsel %vm1864, %v2040, -inf
        %2042 = vmax.xlane.f32.xlu0 %v2041
        %v2043 = vpop.xlane.xlu0 %2042
        %v2044 = vsub.f32 %v2040, %v2043
        %v2045 = vmul.f32 %v2044, 1.442695
        %v2046 = vpow.pop %v2045
        %v2047 = vsel %vm1864, %v2046, 0.0
        %2048 = vadd.xlane.f32.xlu0 %v2047
        %v2049 = vpop.xlane.xlu0 %2048
        %v2050 = vrcp.pop %v2049
        %v2051 = vmul.f32 %v2046, %v2050
        %2052 = vrot.lane.b32.xlu0 %v1774, 88
        %v2053 = vpop.permute.xlu0 %2052
        %2054 = vrot.lane.b32.xlu0 %v1779, 88
        %v2055 = vpop.permute.xlu0 %2054
        %v2058 = vsel %vm1864, %v2051, 0
        %v2060 = vsel %vm1884, %v2055, 0
        %2062 = vmatprep.subr.mxu0 0.0
        %2063 = vmatpush1.msra.mxu0 %v2053
        %2064 = vmatprep.subr.mxu0 0.0
        %2065 = vmatpush1.msra.mxu0 %v2060
        %2066 = vmatprep.subr.mxu0 0.0
        %2067 = vmatpush1.msra.mxu0 0.0
        %2068 = vmatprep.subr.mxu0 0.0
        %2069 = vmatpush1.msra.mxu0 0.0
        %2070 = vmatprep.subr.mxu0 0.0
        %2071 = vmatpush1.msra.mxu0 0.0
        %2072 = vmatprep.subr.mxu0 0.0
        %2073 = vmatpush1.msra.mxu0 0.0
        %2074 = vmatprep.subr.mxu0 0.0
        %2075 = vmatpush1.msra.mxu0 0.0
        %2076 = vmatprep.subr.mxu0 0.0
        %2077 = vmatpush1.msra.mxu0 0.0
        %2078 = vmatprep.subr.mxu0 0.0
        %2079 = vmatpush1.msra.mxu0 0.0
        %2080 = vmatprep.subr.mxu0 0.0
        %2081 = vmatpush1.msra.mxu0 0.0
        %2082 = vmatprep.subr.mxu0 0.0
        %2083 = vmatpush1.msra.mxu0 0.0
        %2084 = vmatprep.subr.mxu0 0.0
        %2085 = vmatpush1.msra.mxu0 0.0
        %2086 = vmatprep.subr.mxu0 0.0
        %2087 = vmatpush1.msra.mxu0 0.0
        %2088 = vmatprep.subr.mxu0 0.0
        %2089 = vmatpush1.msra.mxu0 0.0
        %2090 = vmatprep.subr.mxu0 0.0
        %2091 = vmatpush1.msra.mxu0 0.0
        %2092 = vmatprep.subr.mxu0 0.0
        %2093 = vmatpush1.msra.mxu0 0.0
        %2094 = vmatprep.subr.mxu0 0.0
        %2095 = vmatpush1.msra.mxu0 0.0
        %2096 = vmatprep.subr.mxu0 0.0
        %2097 = vmatpush1.msra.mxu0 0.0
        %2098 = vmatprep.subr.mxu0 0.0
        %2099 = vmatpush1.msra.mxu0 0.0
        %2100 = vmatprep.subr.mxu0 0.0
        %2101 = vmatpush1.msra.mxu0 0.0
        %2102 = vmatprep.subr.mxu0 0.0
        %2103 = vmatpush1.msra.mxu0 0.0
        %2104 = vmatprep.subr.mxu0 0.0
        %2105 = vmatpush1.msra.mxu0 0.0
        %2106 = vmatprep.subr.mxu0 0.0
        %2107 = vmatpush1.msra.mxu0 0.0
        %2108 = vmatprep.subr.mxu0 0.0
        %2109 = vmatpush1.msra.mxu0 0.0
        %2110 = vmatprep.subr.mxu0 0.0
        %2111 = vmatpush1.msra.mxu0 0.0
        %2112 = vmatprep.subr.mxu0 0.0
        %2113 = vmatpush1.msra.mxu0 0.0
        %2114 = vmatprep.subr.mxu0 0.0
        %2115 = vmatpush1.msra.mxu0 0.0
        %2116 = vmatprep.subr.mxu0 0.0
        %2117 = vmatpush1.msra.mxu0 0.0
        %2118 = vmatprep.subr.mxu0 0.0
        %2119 = vmatpush1.msra.mxu0 0.0
        %2120 = vmatprep.subr.mxu0 0.0
        %2121 = vmatpush1.msra.mxu0 0.0
        %2122 = vmatprep.subr.mxu0 0.0
        %2123 = vmatpush1.msra.mxu0 0.0
        %2124 = vmatprep.subr.mxu0 0.0
        %2125 = vmatpush1.msra.mxu0 0.0
        %2126 = vmatprep.mubr.f32.mxu0 0.0
        %2127 = vmatmul.mubr.f32.gmra.mrb[0].mxu0 %v2058
        %v2128 = vpop.f32.mrb[0].mxu0
        %v2129 = vadd.f32 0.0, %v2128
        %v2130 = vpop.f32.mrb[0].mxu0
        %2131 = vdwg.mxu0
        %2132 = vrot.lane.b32.xlu0 %v1687, 112
        %v2133 = vpop.permute.xlu0 %2132
        %2134 = vrot.lane.b32.xlu0 %v1774, 112
        %v2135 = vpop.permute.xlu0 %2134
        %2136 = vrot.lane.b32.xlu0 %v1779, 112
        %v2137 = vpop.permute.xlu0 %2136
        %v2138 = vsel %vm806, %v2133, 0
        %v2140 = vsel %vm806, %v2135, 0
        %v2142 = vsel %vm806, %v2137, 0
        %2144 = vmatprep.subr.mxu0 0.0
        %2145 = vmatpush1.xpose.msra.mxu0 %v2140
        %2146 = vmatprep.subr.mxu0 0.0
        %2147 = vmatpush1.xpose.msra.mxu0 %v2142
        %2148 = vmatprep.subr.mxu0 0.0
        %2149 = vmatpush1.xpose.msra.mxu0 0.0
        %2150 = vmatprep.subr.mxu0 0.0
        %2151 = vmatpush1.xpose.msra.mxu0 0.0
        %2152 = vmatprep.subr.mxu0 0.0
        %2153 = vmatpush1.xpose.msra.mxu0 0.0
        %2154 = vmatprep.subr.mxu0 0.0
        %2155 = vmatpush1.xpose.msra.mxu0 0.0
        %2156 = vmatprep.subr.mxu0 0.0
        %2157 = vmatpush1.xpose.msra.mxu0 0.0
        %2158 = vmatprep.subr.mxu0 0.0
        %2159 = vmatpush1.xpose.msra.mxu0 0.0
        %2160 = vmatprep.subr.mxu0 0.0
        %2161 = vmatpush1.xpose.msra.mxu0 0.0
        %2162 = vmatprep.subr.mxu0 0.0
        %2163 = vmatpush1.xpose.msra.mxu0 0.0
        %2164 = vmatprep.subr.mxu0 0.0
        %2165 = vmatpush1.xpose.msra.mxu0 0.0
        %2166 = vmatprep.subr.mxu0 0.0
        %2167 = vmatpush1.xpose.msra.mxu0 0.0
        %2168 = vmatprep.subr.mxu0 0.0
        %2169 = vmatpush1.xpose.msra.mxu0 0.0
        %2170 = vmatprep.subr.mxu0 0.0
        %2171 = vmatpush1.xpose.msra.mxu0 0.0
        %2172 = vmatprep.subr.mxu0 0.0
        %2173 = vmatpush1.xpose.msra.mxu0 0.0
        %2174 = vmatprep.subr.mxu0 0.0
        %2175 = vmatpush1.xpose.msra.mxu0 0.0
        %2176 = vmatprep.subr.mxu0 0.0
        %2177 = vmatpush1.xpose.msra.mxu0 0.0
        %2178 = vmatprep.subr.mxu0 0.0
        %2179 = vmatpush1.xpose.msra.mxu0 0.0
        %2180 = vmatprep.subr.mxu0 0.0
        %2181 = vmatpush1.xpose.msra.mxu0 0.0
        %2182 = vmatprep.subr.mxu0 0.0
        %2183 = vmatpush1.xpose.msra.mxu0 0.0
        %2184 = vmatprep.subr.mxu0 0.0
        %2185 = vmatpush1.xpose.msra.mxu0 0.0
        %2186 = vmatprep.subr.mxu0 0.0
        %2187 = vmatpush1.xpose.msra.mxu0 0.0
        %2188 = vmatprep.subr.mxu0 0.0
        %2189 = vmatpush1.xpose.msra.mxu0 0.0
        %2190 = vmatprep.subr.mxu0 0.0
        %2191 = vmatpush1.xpose.msra.mxu0 0.0
        %2192 = vmatprep.subr.mxu0 0.0
        %2193 = vmatpush1.xpose.msra.mxu0 0.0
        %2194 = vmatprep.subr.mxu0 0.0
        %2195 = vmatpush1.xpose.msra.mxu0 0.0
        %2196 = vmatprep.subr.mxu0 0.0
        %2197 = vmatpush1.xpose.msra.mxu0 0.0
        %2198 = vmatprep.subr.mxu0 0.0
        %2199 = vmatpush1.xpose.msra.mxu0 0.0
        %2200 = vmatprep.subr.mxu0 0.0
        %2201 = vmatpush1.xpose.msra.mxu0 0.0
        %2202 = vmatprep.subr.mxu0 0.0
        %2203 = vmatpush1.xpose.msra.mxu0 0.0
        %2204 = vmatprep.subr.mxu0 0.0
        %2205 = vmatpush1.xpose.msra.mxu0 0.0
        %2206 = vmatprep.subr.mxu0 0.0
        %2207 = vmatpush1.xpose.msra.mxu0 0.0
        %2208 = vmatprep.mubr.f32.mxu0 0.0
        %2209 = vmatmul.mubr.f32.gmra.mrb[0].mxu0 %v2138
        %v2210 = vpop.f32.mrb[0].mxu0
        %v2211 = vadd.f32 0.0, %v2210
        %v2212 = vpop.f32.mrb[0].mxu0
        %2213 = vdwg.mxu0
        %v2214 = vmul.f32 %v2211, 0.35355338
        %v2215 = vsel %vm1862, %v2214, -1e+09
        %v2216 = vsel %vm1864, %v2215, -inf
        %2217 = vmax.xlane.f32.xlu0 %v2216
        %v2218 = vpop.xlane.xlu0 %2217
        %v2219 = vsub.f32 %v2215, %v2218
        %v2220 = vmul.f32 %v2219, 1.442695
        %v2221 = vpow.pop %v2220
        %v2222 = vsel %vm1864, %v2221, 0.0
        %2223 = vadd.xlane.f32.xlu0 %v2222
        %v2224 = vpop.xlane.xlu0 %2223
        %v2225 = vrcp.pop %v2224
        %v2226 = vmul.f32 %v2221, %v2225
        %2227 = vrot.lane.b32.xlu0 %v1774, 80
        %v2228 = vpop.permute.xlu0 %2227
        %2229 = vrot.lane.b32.xlu0 %v1779, 80
        %v2230 = vpop.permute.xlu0 %2229
        %v2233 = vsel %vm1864, %v2226, 0
        %v2235 = vsel %vm1884, %v2230, 0
        %2237 = vmatprep.subr.mxu0 0.0
        %2238 = vmatpush1.msra.mxu0 %v2228
        %2239 = vmatprep.subr.mxu0 0.0
        %2240 = vmatpush1.msra.mxu0 %v2235
        %2241 = vmatprep.subr.mxu0 0.0
        %2242 = vmatpush1.msra.mxu0 0.0
        %2243 = vmatprep.subr.mxu0 0.0
        %2244 = vmatpush1.msra.mxu0 0.0
        %2245 = vmatprep.subr.mxu0 0.0
        %2246 = vmatpush1.msra.mxu0 0.0
        %2247 = vmatprep.subr.mxu0 0.0
        %2248 = vmatpush1.msra.mxu0 0.0
        %2249 = vmatprep.subr.mxu0 0.0
        %2250 = vmatpush1.msra.mxu0 0.0
        %2251 = vmatprep.subr.mxu0 0.0
        %2252 = vmatpush1.msra.mxu0 0.0
        %2253 = vmatprep.subr.mxu0 0.0
        %2254 = vmatpush1.msra.mxu0 0.0
        %2255 = vmatprep.subr.mxu0 0.0
        %2256 = vmatpush1.msra.mxu0 0.0
        %2257 = vmatprep.subr.mxu0 0.0
        %2258 = vmatpush1.msra.mxu0 0.0
        %2259 = vmatprep.subr.mxu0 0.0
        %2260 = vmatpush1.msra.mxu0 0.0
        %2261 = vmatprep.subr.mxu0 0.0
        %2262 = vmatpush1.msra.mxu0 0.0
        %2263 = vmatprep.subr.mxu0 0.0
        %2264 = vmatpush1.msra.mxu0 0.0
        %2265 = vmatprep.subr.mxu0 0.0
        %2266 = vmatpush1.msra.mxu0 0.0
        %2267 = vmatprep.subr.mxu0 0.0
        %2268 = vmatpush1.msra.mxu0 0.0
        %2269 = vmatprep.subr.mxu0 0.0
        %2270 = vmatpush1.msra.mxu0 0.0
        %2271 = vmatprep.subr.mxu0 0.0
        %2272 = vmatpush1.msra.mxu0 0.0
        %2273 = vmatprep.subr.mxu0 0.0
        %2274 = vmatpush1.msra.mxu0 0.0
        %2275 = vmatprep.subr.mxu0 0.0
        %2276 = vmatpush1.msra.mxu0 0.0
        %2277 = vmatprep.subr.mxu0 0.0
        %2278 = vmatpush1.msra.mxu0 0.0
        %2279 = vmatprep.subr.mxu0 0.0
        %2280 = vmatpush1.msra.mxu0 0.0
        %2281 = vmatprep.subr.mxu0 0.0
        %2282 = vmatpush1.msra.mxu0 0.0
        %2283 = vmatprep.subr.mxu0 0.0
        %2284 = vmatpush1.msra.mxu0 0.0
        %2285 = vmatprep.subr.mxu0 0.0
        %2286 = vmatpush1.msra.mxu0 0.0
        %2287 = vmatprep.subr.mxu0 0.0
        %2288 = vmatpush1.msra.mxu0 0.0
        %2289 = vmatprep.subr.mxu0 0.0
        %2290 = vmatpush1.msra.mxu0 0.0
        %2291 = vmatprep.subr.mxu0 0.0
        %2292 = vmatpush1.msra.mxu0 0.0
        %2293 = vmatprep.subr.mxu0 0.0
        %2294 = vmatpush1.msra.mxu0 0.0
        %2295 = vmatprep.subr.mxu0 0.0
        %2296 = vmatpush1.msra.mxu0 0.0
        %2297 = vmatprep.subr.mxu0 0.0
        %2298 = vmatpush1.msra.mxu0 0.0
        %2299 = vmatprep.subr.mxu0 0.0
        %2300 = vmatpush1.msra.mxu0 0.0
        %2301 = vmatprep.mubr.f32.mxu0 0.0
        %2302 = vmatmul.mubr.f32.gmra.mrb[0].mxu0 %v2233
        %v2303 = vpop.f32.mrb[0].mxu0
        %v2304 = vadd.f32 0.0, %v2303
        %v2305 = vpop.f32.mrb[0].mxu0
        %2306 = vdwg.mxu0
        %2307 = vrot.lane.b32.xlu0 %v1687, 104
        %v2308 = vpop.permute.xlu0 %2307
        %2309 = vrot.lane.b32.xlu0 %v1774, 104
        %v2310 = vpop.permute.xlu0 %2309
        %2311 = vrot.lane.b32.xlu0 %v1779, 104
        %v2312 = vpop.permute.xlu0 %2311
        %v2313 = vsel %vm806, %v2308, 0
        %v2315 = vsel %vm806, %v2310, 0
        %v2317 = vsel %vm806, %v2312, 0
        %2319 = vmatprep.subr.mxu0 0.0
        %2320 = vmatpush1.xpose.msra.mxu0 %v2315
        %2321 = vmatprep.subr.mxu0 0.0
        %2322 = vmatpush1.xpose.msra.mxu0 %v2317
        %2323 = vmatprep.subr.mxu0 0.0
        %2324 = vmatpush1.xpose.msra.mxu0 0.0
        %2325 = vmatprep.subr.mxu0 0.0
        %2326 = vmatpush1.xpose.msra.mxu0 0.0
        %2327 = vmatprep.subr.mxu0 0.0
        %2328 = vmatpush1.xpose.msra.mxu0 0.0
        %2329 = vmatprep.subr.mxu0 0.0
        %2330 = vmatpush1.xpose.msra.mxu0 0.0
        %2331 = vmatprep.subr.mxu0 0.0
        %2332 = vmatpush1.xpose.msra.mxu0 0.0
        %2333 = vmatprep.subr.mxu0 0.0
        %2334 = vmatpush1.xpose.msra.mxu0 0.0
        %2335 = vmatprep.subr.mxu0 0.0
        %2336 = vmatpush1.xpose.msra.mxu0 0.0
        %2337 = vmatprep.subr.mxu0 0.0
        %2338 = vmatpush1.xpose.msra.mxu0 0.0
        %2339 = vmatprep.subr.mxu0 0.0
        %2340 = vmatpush1.xpose.msra.mxu0 0.0
        %2341 = vmatprep.subr.mxu0 0.0
        %2342 = vmatpush1.xpose.msra.mxu0 0.0
        %2343 = vmatprep.subr.mxu0 0.0
        %2344 = vmatpush1.xpose.msra.mxu0 0.0
        %2345 = vmatprep.subr.mxu0 0.0
        %2346 = vmatpush1.xpose.msra.mxu0 0.0
        %2347 = vmatprep.subr.mxu0 0.0
        %2348 = vmatpush1.xpose.msra.mxu0 0.0
        %2349 = vmatprep.subr.mxu0 0.0
        %2350 = vmatpush1.xpose.msra.mxu0 0.0
        %2351 = vmatprep.subr.mxu0 0.0
        %2352 = vmatpush1.xpose.msra.mxu0 0.0
        %2353 = vmatprep.subr.mxu0 0.0
        %2354 = vmatpush1.xpose.msra.mxu0 0.0
        %2355 = vmatprep.subr.mxu0 0.0
        %2356 = vmatpush1.xpose.msra.mxu0 0.0
        %2357 = vmatprep.subr.mxu0 0.0
        %2358 = vmatpush1.xpose.msra.mxu0 0.0
        %2359 = vmatprep.subr.mxu0 0.0
        %2360 = vmatpush1.xpose.msra.mxu0 0.0
        %2361 = vmatprep.subr.mxu0 0.0
        %2362 = vmatpush1.xpose.msra.mxu0 0.0
        %2363 = vmatprep.subr.mxu0 0.0
        %2364 = vmatpush1.xpose.msra.mxu0 0.0
        %2365 = vmatprep.subr.mxu0 0.0
        %2366 = vmatpush1.xpose.msra.mxu0 0.0
        %2367 = vmatprep.subr.mxu0 0.0
        %2368 = vmatpush1.xpose.msra.mxu0 0.0
        %2369 = vmatprep.subr.mxu0 0.0
        %2370 = vmatpush1.xpose.msra.mxu0 0.0
        %2371 = vmatprep.subr.mxu0 0.0
        %2372 = vmatpush1.xpose.msra.mxu0 0.0
        %2373 = vmatprep.subr.mxu0 0.0
        %2374 = vmatpush1.xpose.msra.mxu0 0.0
        %2375 = vmatprep.subr.mxu0 0.0
        %2376 = vmatpush1.xpose.msra.mxu0 0.0
        %2377 = vmatprep.subr.mxu0 0.0
        %2378 = vmatpush1.xpose.msra.mxu0 0.0
        %2379 = vmatprep.subr.mxu0 0.0
        %2380 = vmatpush1.xpose.msra.mxu0 0.0
        %2381 = vmatprep.subr.mxu0 0.0
        %2382 = vmatpush1.xpose.msra.mxu0 0.0
        %2383 = vmatprep.mubr.f32.mxu0 0.0
        %2384 = vmatmul.mubr.f32.gmra.mrb[0].mxu0 %v2313
        %v2385 = vpop.f32.mrb[0].mxu0
        %v2386 = vadd.f32 0.0, %v2385
        %v2387 = vpop.f32.mrb[0].mxu0
        %2388 = vdwg.mxu0
        %v2389 = vmul.f32 %v2386, 0.35355338
        %v2390 = vsel %vm1862, %v2389, -1e+09
        %v2391 = vsel %vm1864, %v2390, -inf
        %2392 = vmax.xlane.f32.xlu0 %v2391
        %v2393 = vpop.xlane.xlu0 %2392
        %v2394 = vsub.f32 %v2390, %v2393
        %v2395 = vmul.f32 %v2394, 1.442695
        %v2396 = vpow.pop %v2395
        %v2397 = vsel %vm1864, %v2396, 0.0
        %2398 = vadd.xlane.f32.xlu0 %v2397
        %v2399 = vpop.xlane.xlu0 %2398
        %v2400 = vrcp.pop %v2399
        %v2401 = vmul.f32 %v2396, %v2400
        %2402 = vrot.lane.b32.xlu0 %v1774, 72
        %v2403 = vpop.permute.xlu0 %2402
        %2404 = vrot.lane.b32.xlu0 %v1779, 72
        %v2405 = vpop.permute.xlu0 %2404
        %v2408 = vsel %vm1864, %v2401, 0
        %v2410 = vsel %vm1884, %v2405, 0
        %2412 = vmatprep.subr.mxu0 0.0
        %2413 = vmatpush1.msra.mxu0 %v2403
        %2414 = vmatprep.subr.mxu0 0.0
        %2415 = vmatpush1.msra.mxu0 %v2410
        %2416 = vmatprep.subr.mxu0 0.0
        %2417 = vmatpush1.msra.mxu0 0.0
        %2418 = vmatprep.subr.mxu0 0.0
        %2419 = vmatpush1.msra.mxu0 0.0
        %2420 = vmatprep.subr.mxu0 0.0
        %2421 = vmatpush1.msra.mxu0 0.0
        %2422 = vmatprep.subr.mxu0 0.0
        %2423 = vmatpush1.msra.mxu0 0.0
        %2424 = vmatprep.subr.mxu0 0.0
        %2425 = vmatpush1.msra.mxu0 0.0
        %2426 = vmatprep.subr.mxu0 0.0
        %2427 = vmatpush1.msra.mxu0 0.0
        %2428 = vmatprep.subr.mxu0 0.0
        %2429 = vmatpush1.msra.mxu0 0.0
        %2430 = vmatprep.subr.mxu0 0.0
        %2431 = vmatpush1.msra.mxu0 0.0
        %2432 = vmatprep.subr.mxu0 0.0
        %2433 = vmatpush1.msra.mxu0 0.0
        %2434 = vmatprep.subr.mxu0 0.0
        %2435 = vmatpush1.msra.mxu0 0.0
        %2436 = vmatprep.subr.mxu0 0.0
        %2437 = vmatpush1.msra.mxu0 0.0
        %2438 = vmatprep.subr.mxu0 0.0
        %2439 = vmatpush1.msra.mxu0 0.0
        %2440 = vmatprep.subr.mxu0 0.0
        %2441 = vmatpush1.msra.mxu0 0.0
        %2442 = vmatprep.subr.mxu0 0.0
        %2443 = vmatpush1.msra.mxu0 0.0
        %2444 = vmatprep.subr.mxu0 0.0
        %2445 = vmatpush1.msra.mxu0 0.0
        %2446 = vmatprep.subr.mxu0 0.0
        %2447 = vmatpush1.msra.mxu0 0.0
        %2448 = vmatprep.subr.mxu0 0.0
        %2449 = vmatpush1.msra.mxu0 0.0
        %2450 = vmatprep.subr.mxu0 0.0
        %2451 = vmatpush1.msra.mxu0 0.0
        %2452 = vmatprep.subr.mxu0 0.0
        %2453 = vmatpush1.msra.mxu0 0.0
        %2454 = vmatprep.subr.mxu0 0.0
        %2455 = vmatpush1.msra.mxu0 0.0
        %2456 = vmatprep.subr.mxu0 0.0
        %2457 = vmatpush1.msra.mxu0 0.0
        %2458 = vmatprep.subr.mxu0 0.0
        %2459 = vmatpush1.msra.mxu0 0.0
        %2460 = vmatprep.subr.mxu0 0.0
        %2461 = vmatpush1.msra.mxu0 0.0
        %2462 = vmatprep.subr.mxu0 0.0
        %2463 = vmatpush1.msra.mxu0 0.0
        %2464 = vmatprep.subr.mxu0 0.0
        %2465 = vmatpush1.msra.mxu0 0.0
        %2466 = vmatprep.subr.mxu0 0.0
        %2467 = vmatpush1.msra.mxu0 0.0
        %2468 = vmatprep.subr.mxu0 0.0
        %2469 = vmatpush1.msra.mxu0 0.0
        %2470 = vmatprep.subr.mxu0 0.0
        %2471 = vmatpush1.msra.mxu0 0.0
        %2472 = vmatprep.subr.mxu0 0.0
        %2473 = vmatpush1.msra.mxu0 0.0
        %2474 = vmatprep.subr.mxu0 0.0
        %2475 = vmatpush1.msra.mxu0 0.0
        %2476 = vmatprep.mubr.f32.mxu0 0.0
        %2477 = vmatmul.mubr.f32.gmra.mrb[0].mxu0 %v2408
        %v2478 = vpop.f32.mrb[0].mxu0
        %v2479 = vadd.f32 0.0, %v2478
        %v2480 = vpop.f32.mrb[0].mxu0
        %2481 = vdwg.mxu0
        %2483 = vrot.lane.b32.xlu0 %v2129, 8
        %v2484 = vpop.permute.xlu0 %2483
        %2487 = vrot.lane.b32.xlu0 %v2304, 16
        %v2488 = vpop.permute.xlu0 %2487
        %2491 = vrot.lane.b32.xlu0 %v2479, 24
        %v2492 = vpop.permute.xlu0 %2491
        %v2494 = vsel %vm806, %v1954, %v2484
        %v2495 = vsel %vm1485, %v2494, %v2488
        %v2496 = vsel %vm1487, %v2495, %v2492
        %v2497 = vld [vmem:[%s14] sm:$0xff]
        %v2498 = vld [vmem:[%s14 + $0x8] sm:$0xff]
        %v2499 = vld [vmem:[%s14 + $0x10] sm:$0xff]
        %v2500 = vld [vmem:[%s14 + $0x18] sm:$0xff]
        %v2501 = vld [vmem:[%s15] sm:$0x1]
        %v2503 = vlaneseq
        %v2504 = vshrl.u32 %v2503, 7
        %v2505 = vsub.s32 0, %v2504
        %v2506 = vrot.slane %v2501, %v2505
        %v2509 = vsel %vm686, %v2496, 0
        %2511 = vmatprep.subr.mxu0 0.0
        %2512 = vmatpush1.msra.mxu0 %v2497
        %2513 = vmatprep.subr.mxu0 0.0
        %2514 = vmatpush1.msra.mxu0 %v2498
        %2515 = vmatprep.subr.mxu0 0.0
        %2516 = vmatpush1.msra.mxu0 %v2499
        %2517 = vmatprep.subr.mxu0 0.0
        %2518 = vmatpush1.msra.mxu0 %v2500
        %2519 = vmatprep.subr.mxu0 0.0
        %2520 = vmatpush1.msra.mxu0 0.0
        %2521 = vmatprep.subr.mxu0 0.0
        %2522 = vmatpush1.msra.mxu0 0.0
        %2523 = vmatprep.subr.mxu0 0.0
        %2524 = vmatpush1.msra.mxu0 0.0
        %2525 = vmatprep.subr.mxu0 0.0
        %2526 = vmatpush1.msra.mxu0 0.0
        %2527 = vmatprep.subr.mxu0 0.0
        %2528 = vmatpush1.msra.mxu0 0.0
        %2529 = vmatprep.subr.mxu0 0.0
        %2530 = vmatpush1.msra.mxu0 0.0
        %2531 = vmatprep.subr.mxu0 0.0
        %2532 = vmatpush1.msra.mxu0 0.0
        %2533 = vmatprep.subr.mxu0 0.0
        %2534 = vmatpush1.msra.mxu0 0.0
        %2535 = vmatprep.subr.mxu0 0.0
        %2536 = vmatpush1.msra.mxu0 0.0
        %2537 = vmatprep.subr.mxu0 0.0
        %2538 = vmatpush1.msra.mxu0 0.0
        %2539 = vmatprep.subr.mxu0 0.0
        %2540 = vmatpush1.msra.mxu0 0.0
        %2541 = vmatprep.subr.mxu0 0.0
        %2542 = vmatpush1.msra.mxu0 0.0
        %2543 = vmatprep.subr.mxu0 0.0
        %2544 = vmatpush1.msra.mxu0 0.0
        %2545 = vmatprep.subr.mxu0 0.0
        %2546 = vmatpush1.msra.mxu0 0.0
        %2547 = vmatprep.subr.mxu0 0.0
        %2548 = vmatpush1.msra.mxu0 0.0
        %2549 = vmatprep.subr.mxu0 0.0
        %2550 = vmatpush1.msra.mxu0 0.0
        %2551 = vmatprep.subr.mxu0 0.0
        %2552 = vmatpush1.msra.mxu0 0.0
        %2553 = vmatprep.subr.mxu0 0.0
        %2554 = vmatpush1.msra.mxu0 0.0
        %2555 = vmatprep.subr.mxu0 0.0
        %2556 = vmatpush1.msra.mxu0 0.0
        %2557 = vmatprep.subr.mxu0 0.0
        %2558 = vmatpush1.msra.mxu0 0.0
        %2559 = vmatprep.subr.mxu0 0.0
        %2560 = vmatpush1.msra.mxu0 0.0
        %2561 = vmatprep.subr.mxu0 0.0
        %2562 = vmatpush1.msra.mxu0 0.0
        %2563 = vmatprep.subr.mxu0 0.0
        %2564 = vmatpush1.msra.mxu0 0.0
        %2565 = vmatprep.subr.mxu0 0.0
        %2566 = vmatpush1.msra.mxu0 0.0
        %2567 = vmatprep.subr.mxu0 0.0
        %2568 = vmatpush1.msra.mxu0 0.0
        %2569 = vmatprep.subr.mxu0 0.0
        %2570 = vmatpush1.msra.mxu0 0.0
        %2571 = vmatprep.subr.mxu0 0.0
        %2572 = vmatpush1.msra.mxu0 0.0
        %2573 = vmatprep.subr.mxu0 0.0
        %2574 = vmatpush1.msra.mxu0 0.0
        %2575 = vmatprep.mubr.f32.mxu0 0.0
        %2576 = vmatmul.mubr.f32.gmra.mrb[0].mxu0 %v2509
        %v2577 = vpop.f32.mrb[0].mxu0
        %v2578 = vadd.f32 %v2506, %v2577
        %v2579 = vpop.f32.mrb[0].mxu0
        %2580 = vdwg.mxu0
        %v2581 = vadd.f32 %v1573, %v2578
        %v2582 = vld [vmem:[%s4 + $0x2] sm:$0x1]
        %v2583 = vld [vmem:[%s5 + $0x2] sm:$0x1]
        %v2584 = vsel %vm686, %v2581, 0.0
        %2585 = vadd.xlane.f32.xlu0 %v2584
        %v2586 = vpop.xlane.xlu0 %2585
        %v2587 = vmul.f32 %v2586, %v690
        %v2588 = vsub.f32 %v2581, %v2587
        %v2589 = vmul.f32 %v2588, %v2588
        %v2590 = vsel %vm686, %v2589, 0.0
        %2591 = vadd.xlane.f32.xlu0 %v2590
        %v2592 = vpop.xlane.xlu0 %2591
        %v2593 = vmul.f32 %v2592, %v697
        %v2594 = vrsqrt.pop %v2593
        %v2595 = vmul.f32 %v2593, %v2594
        %vm2596 = vcmp.eq.f32.partialorder %v2593, inf
        %v2597 = vsel %vm2596, %v2593, %v2595
        %vm2598 = vcmp.eq.f32.partialorder %v2593, 0.0
        %v2599 = vand.u32 %v2593, 2147483648
        %v2600 = vsel %vm2598, %v2599, %v2597
        %v2601 = vlaneseq
        %v2602 = vshrl.u32 %v2601, 7
        %v2603 = vsub.s32 0, %v2602
        %v2604 = vrot.slane %v2582, %v2603
        %v2605 = vmul.f32 %v2604, %v2588
        %v2606 = vadd.f32 %v2600, 1e-06
        %v2607 = vrcp.pop %v2606
        %v2608 = vmul.f32 %v2605, %v2607
        %v2609 = vlaneseq
        %v2610 = vshrl.u32 %v2609, 7
        %v2611 = vsub.s32 0, %v2610
        %v2612 = vrot.slane %v2583, %v2611
        %v2613 = vadd.f32 %v2608, %v2612
        %v2614 = vld [vmem:[%s16] sm:$0xff]
        %v2615 = vld [vmem:[%s16 + $0x8] sm:$0xff]
        %v2616 = vld [vmem:[%s16 + $0x10] sm:$0xff]
        %v2617 = vld [vmem:[%s16 + $0x18] sm:$0xff]
        %v2618 = vld [vmem:[%s17] sm:$0x1]
        %v2620 = vlaneseq
        %v2621 = vshrl.u32 %v2620, 7
        %v2622 = vsub.s32 0, %v2621
        %v2623 = vrot.slane %v2618, %v2622
        %v2626 = vsel %vm686, %v2613, 0
        %2628 = vmatprep.subr.mxu0 0.0
        %2629 = vmatpush1.msra.mxu0 %v2614
        %2630 = vmatprep.subr.mxu0 0.0
        %2631 = vmatpush1.msra.mxu0 %v2615
        %2632 = vmatprep.subr.mxu0 0.0
        %2633 = vmatpush1.msra.mxu0 %v2616
        %2634 = vmatprep.subr.mxu0 0.0
        %2635 = vmatpush1.msra.mxu0 %v2617
        %2636 = vmatprep.subr.mxu0 0.0
        %2637 = vmatpush1.msra.mxu0 0.0
        %2638 = vmatprep.subr.mxu0 0.0
        %2639 = vmatpush1.msra.mxu0 0.0
        %2640 = vmatprep.subr.mxu0 0.0
        %2641 = vmatpush1.msra.mxu0 0.0
        %2642 = vmatprep.subr.mxu0 0.0
        %2643 = vmatpush1.msra.mxu0 0.0
        %2644 = vmatprep.subr.mxu0 0.0
        %2645 = vmatpush1.msra.mxu0 0.0
        %2646 = vmatprep.subr.mxu0 0.0
        %2647 = vmatpush1.msra.mxu0 0.0
        %2648 = vmatprep.subr.mxu0 0.0
        %2649 = vmatpush1.msra.mxu0 0.0
        %2650 = vmatprep.subr.mxu0 0.0
        %2651 = vmatpush1.msra.mxu0 0.0
        %2652 = vmatprep.subr.mxu0 0.0
        %2653 = vmatpush1.msra.mxu0 0.0
        %2654 = vmatprep.subr.mxu0 0.0
        %2655 = vmatpush1.msra.mxu0 0.0
        %2656 = vmatprep.subr.mxu0 0.0
        %2657 = vmatpush1.msra.mxu0 0.0
        %2658 = vmatprep.subr.mxu0 0.0
        %2659 = vmatpush1.msra.mxu0 0.0
        %2660 = vmatprep.subr.mxu0 0.0
        %2661 = vmatpush1.msra.mxu0 0.0
        %2662 = vmatprep.subr.mxu0 0.0
        %2663 = vmatpush1.msra.mxu0 0.0
        %2664 = vmatprep.subr.mxu0 0.0
        %2665 = vmatpush1.msra.mxu0 0.0
        %2666 = vmatprep.subr.mxu0 0.0
        %2667 = vmatpush1.msra.mxu0 0.0
        %2668 = vmatprep.subr.mxu0 0.0
        %2669 = vmatpush1.msra.mxu0 0.0
        %2670 = vmatprep.subr.mxu0 0.0
        %2671 = vmatpush1.msra.mxu0 0.0
        %2672 = vmatprep.subr.mxu0 0.0
        %2673 = vmatpush1.msra.mxu0 0.0
        %2674 = vmatprep.subr.mxu0 0.0
        %2675 = vmatpush1.msra.mxu0 0.0
        %2676 = vmatprep.subr.mxu0 0.0
        %2677 = vmatpush1.msra.mxu0 0.0
        %2678 = vmatprep.subr.mxu0 0.0
        %2679 = vmatpush1.msra.mxu0 0.0
        %2680 = vmatprep.subr.mxu0 0.0
        %2681 = vmatpush1.msra.mxu0 0.0
        %2682 = vmatprep.subr.mxu0 0.0
        %2683 = vmatpush1.msra.mxu0 0.0
        %2684 = vmatprep.subr.mxu0 0.0
        %2685 = vmatpush1.msra.mxu0 0.0
        %2686 = vmatprep.subr.mxu0 0.0
        %2687 = vmatpush1.msra.mxu0 0.0
        %2688 = vmatprep.subr.mxu0 0.0
        %2689 = vmatpush1.msra.mxu0 0.0
        %2690 = vmatprep.subr.mxu0 0.0
        %2691 = vmatpush1.msra.mxu0 0.0
        %2692 = vmatprep.mubr.f32.mxu0 0.0
        %2693 = vmatmul.mubr.f32.gmra.mrb[0].mxu0 %v2626
        %v2694 = vpop.f32.mrb[0].mxu0
        %v2695 = vadd.f32 %v2623, %v2694
        %v2696 = vpop.f32.mrb[0].mxu0
        %2697 = vdwg.mxu0
        %v2698 = vmax.f32 %v2695, 0.0
        %v2699 = vld [vmem:[%s18] sm:$0xff]
        %v2700 = vld [vmem:[%s18 + $0x8] sm:$0xff]
        %v2701 = vld [vmem:[%s18 + $0x10] sm:$0xff]
        %v2702 = vld [vmem:[%s18 + $0x18] sm:$0xff]
        %v2703 = vld [vmem:[%s18 + $0x20] sm:$0xff]
        %v2704 = vld [vmem:[%s18 + $0x28] sm:$0xff]
        %v2705 = vld [vmem:[%s18 + $0x30] sm:$0xff]
        %v2706 = vld [vmem:[%s18 + $0x38] sm:$0xff]
        %v2707 = vld [vmem:[%s19] sm:$0x1]
        %v2709 = vlaneseq
        %v2710 = vshrl.u32 %v2709, 7
        %v2711 = vsub.s32 0, %v2710
        %v2712 = vrot.slane %v2707, %v2711
        %vm2714 = vcmask 523264
        %v2716 = vsel %vm2714, %v2698, 0
        %2718 = vmatprep.subr.mxu0 0.0
        %2719 = vmatpush1.msra.mxu0 %v2699
        %2720 = vmatprep.subr.mxu0 0.0
        %2721 = vmatpush1.msra.mxu0 %v2700
        %2722 = vmatprep.subr.mxu0 0.0
        %2723 = vmatpush1.msra.mxu0 %v2701
        %2724 = vmatprep.subr.mxu0 0.0
        %2725 = vmatpush1.msra.mxu0 %v2702
        %2726 = vmatprep.subr.mxu0 0.0
        %2727 = vmatpush1.msra.mxu0 %v2703
        %2728 = vmatprep.subr.mxu0 0.0
        %2729 = vmatpush1.msra.mxu0 %v2704
        %2730 = vmatprep.subr.mxu0 0.0
        %2731 = vmatpush1.msra.mxu0 %v2705
        %2732 = vmatprep.subr.mxu0 0.0
        %2733 = vmatpush1.msra.mxu0 %v2706
        %2734 = vmatprep.subr.mxu0 0.0
        %2735 = vmatpush1.msra.mxu0 0.0
        %2736 = vmatprep.subr.mxu0 0.0
        %2737 = vmatpush1.msra.mxu0 0.0
        %2738 = vmatprep.subr.mxu0 0.0
        %2739 = vmatpush1.msra.mxu0 0.0
        %2740 = vmatprep.subr.mxu0 0.0
        %2741 = vmatpush1.msra.mxu0 0.0
        %2742 = vmatprep.subr.mxu0 0.0
        %2743 = vmatpush1.msra.mxu0 0.0
        %2744 = vmatprep.subr.mxu0 0.0
        %2745 = vmatpush1.msra.mxu0 0.0
        %2746 = vmatprep.subr.mxu0 0.0
        %2747 = vmatpush1.msra.mxu0 0.0
        %2748 = vmatprep.subr.mxu0 0.0
        %2749 = vmatpush1.msra.mxu0 0.0
        %2750 = vmatprep.subr.mxu0 0.0
        %2751 = vmatpush1.msra.mxu0 0.0
        %2752 = vmatprep.subr.mxu0 0.0
        %2753 = vmatpush1.msra.mxu0 0.0
        %2754 = vmatprep.subr.mxu0 0.0
        %2755 = vmatpush1.msra.mxu0 0.0
        %2756 = vmatprep.subr.mxu0 0.0
        %2757 = vmatpush1.msra.mxu0 0.0
        %2758 = vmatprep.subr.mxu0 0.0
        %2759 = vmatpush1.msra.mxu0 0.0
        %2760 = vmatprep.subr.mxu0 0.0
        %2761 = vmatpush1.msra.mxu0 0.0
        %2762 = vmatprep.subr.mxu0 0.0
        %2763 = vmatpush1.msra.mxu0 0.0
        %2764 = vmatprep.subr.mxu0 0.0
        %2765 = vmatpush1.msra.mxu0 0.0
        %2766 = vmatprep.subr.mxu0 0.0
        %2767 = vmatpush1.msra.mxu0 0.0
        %2768 = vmatprep.subr.mxu0 0.0
        %2769 = vmatpush1.msra.mxu0 0.0
        %2770 = vmatprep.subr.mxu0 0.0
        %2771 = vmatpush1.msra.mxu0 0.0
        %2772 = vmatprep.subr.mxu0 0.0
        %2773 = vmatpush1.msra.mxu0 0.0
        %2774 = vmatprep.subr.mxu0 0.0
        %2775 = vmatpush1.msra.mxu0 0.0
        %2776 = vmatprep.subr.mxu0 0.0
        %2777 = vmatpush1.msra.mxu0 0.0
        %2778 = vmatprep.subr.mxu0 0.0
        %2779 = vmatpush1.msra.mxu0 0.0
        %2780 = vmatprep.subr.mxu0 0.0
        %2781 = vmatpush1.msra.mxu0 0.0
        %2782 = vmatprep.mubr.f32.mxu0 0.0
        %2783 = vmatmul.mubr.f32.gmra.mrb[0].mxu0 %v2716
        %v2784 = vpop.f32.mrb[0].mxu0
        %v2785 = vadd.f32 %v2712, %v2784
        %v2786 = vpop.f32.mrb[0].mxu0
        %2787 = vdwg.mxu0
        %v2788 = vadd.f32 %v2581, %v2785
        %2789 = vst.msk [vmem:[%s661] sm:$0xff] %vm686, %v2788
        %s2790 = sand.u32 %s482, 1
        %s2791 = scalar_lea.sflag [#allocation3], %s2790
        %s2792 = sand.u32 %s482, 1
        %s2793 = smul.addr %s2792, 8
        %s2794 = scalar_lea.vmem [#allocation2], %s2793
        // Predicated region
        $region101: #{decoder_layer.1} parent=99 // pred_check
          %p2795 = pneg %p492
        $region102: #{decoder_layer.1} parent=99 // pred_check_branch
          %2797 = sbr.rel (%p2795) target = $region104
        $region103: #{decoder_layer.1} parent=99 // pred_region
          %s2799 = ssub.s32 128, 128
          %2800 = vsyncadd %s2791, %s2799
          %s2801 = smul.addr %s34, 128
          %s2802 = scalar_lea.hbm %s20, %s2801
          %s2804 = sshll.u32 %s2794, 4
          %s2805 = int_to_ptr.vmem [resolvable:$true] %s2804
          %2807 = dma.vmem_to_hbm [thread:$0]  %s2805, 128, %s2802, %s2791
        $region104: #{decoder_layer.1} parent=99 // pred_fallthru
          _
      $region100: #{decoder_layer.1} parent=5 // pred_fallthru
        _
      %p2808 = scmp.le.s32.totalorder 2, %s29
      // Predicated region
      $region105: #{decoder_layer.1} parent=5 // pred_check
        %p2809 = pneg %p2808
      $region106: #{decoder_layer.1} parent=5 // pred_check_branch
        %2811 = sbr.rel (%p2809) target = $region108
      $region107: #{decoder_layer.1} parent=5 // pred_region
        %s2812 = ssub.s32 %s29, 2
        // Predicated region
        $region109: #{decoder_layer.1} parent=107 // pred_check
          %p2813 = pneg %p498
        $region110: #{decoder_layer.1} parent=107 // pred_check_branch
          %2815 = sbr.rel (%p2813) target = $region112
        $region111: #{decoder_layer.1} parent=107 // pred_region
          %s2816 = sand.u32 %s483, 1
          %s2817 = scalar_lea.sflag [#allocation3], %s2816
          %s2818 = sand.u32 %s483, 1
          %s2819 = smul.addr %s2818, 8
          %s2820 = scalar_lea.vmem [#allocation2], %s2819
          %2821 = dma.done %s2817, 128
        $region112: #{decoder_layer.1} parent=107 // pred_fallthru
          _
      $region108: #{decoder_layer.1} parent=5 // pred_fallthru
        _
    $region6: #{decoder_layer.1} parent=1 // loop_footer
      %s33 = sadd.s32 1, %s29
    $region7: #{decoder_layer.1} parent=1 // loop_footer_branch
      %28 = sbr.rel target = $region3
    $region8: #{decoder_layer.1} parent=1 // loop_exit
      _
    %2822 = vsyncpa [#allocation3], 1
    %s2823 = scalar_lea.sflag [#allocation3], 1
    %2824 = vsyncpa %s2823, 1

</llo_original>
